<compile_context>
chip_gen: v7x
topology: tpu7x:2x2x1
jax: 0.10.0
libtpu: 0.0.40
codegen_flags: <defaults>
</compile_context>

<pallas_src>
import math
import jax
import jax.numpy as jnp
from jax.experimental import pallas as pl
from jax.experimental.pallas import tpu as pltpu

# ----------------------------- model config ---------------------------------
VOCAB_SIZE = 50
EMBED_DIM = 16
HIDDEN_DIM = 32
N_LAYERS = 2
N_CLASSES = 5
SEQ_LEN = 8
BATCH = 2
FC_PAD = 128  # lane-dense fc output width (sliced to N_CLASSES in the wrapper)

_VMEM = pl.BlockSpec(memory_space=pltpu.MemorySpace.VMEM)
_SMEM = pl.BlockSpec(memory_space=pltpu.MemorySpace.SMEM)


# --------------------------- in-kernel LSTM layer ----------------------------
def _bilstm_layer(gx_list, whh, fwd_gate_mask, g_gate_mask, h_fwd_mask):
    """One bidirectional LSTM layer, fwd/bwd interleaved in one unrolled loop.

    gx_list[t]: (B, 8H) input-projected gate pre-activations (+bias) for time t,
                gate-major packed columns [i_f,i_b, f_f,f_b, g_f,g_b, o_f,o_b].
    whh:        (2H, 8H) recurrent weights (rows [h_f | h_b], same column order,
                block-structured so fwd h only feeds fwd gate lanes and v.v.).
    Returns a list of T per-time outputs (B, 2H) = [h_fwd(t) | h_bwd(t)].
    """
    T = len(gx_list)
    B, G = gx_list[0].shape
    H2 = G // 4  # 2H

    h = jnp.zeros((B, H2), jnp.float32)   # [h_f | h_b] packed
    c = jnp.zeros((B, H2), jnp.float32)   # [c_f | c_b] packed
    h_steps = []
    for s in range(T):
        # fwd direction reads time s, bwd direction reads time T-1-s (VPU select)
        gx = jnp.where(fwd_gate_mask, gx_list[s], gx_list[T - 1 - s])
        pre = gx + jnp.dot(h, whh, preferred_element_type=jnp.float32)   # (B, 8H)
        # one full-width sigmoid + one full-width tanh per step
        act = jnp.where(g_gate_mask, jnp.tanh(pre), jax.nn.sigmoid(pre))
        i_g = act[:, 0 * H2:1 * H2]
        f_g = act[:, 1 * H2:2 * H2]
        g_g = act[:, 2 * H2:3 * H2]
        o_g = act[:, 3 * H2:4 * H2]
        c = f_g * c + i_g * g_g
        h = o_g * jnp.tanh(c)              # stays packed [h_f | h_b]
        h_steps.append(h)

    # PyTorch time order: fwd lanes come from step t, bwd lanes from step T-1-t.
    # Trace-time reindexing + VPU select — no scratch stores, no lane shuffles.
    return [jnp.where(h_fwd_mask, h_steps[t], h_steps[T - 1 - t]) for t in range(T)]


# --------------------------- fused forward kernel ----------------------------
def _fused_kernel(ids_ref, embp_ref, whh0_ref, wih1_ref, b1_ref, whh1_ref,
                  fcw_ref, fcb_ref, logit_ref):
    H, B, T = HIDDEN_DIM, BATCH, SEQ_LEN

    # loop-invariant lane masks
    lane8 = jax.lax.broadcasted_iota(jnp.int32, (B, 8 * H), 1)
    fwd_gate_mask = (lane8 & (2 * H - 1)) < H          # fwd half of each 2H gate block
    g_gate_mask = (lane8 >= 4 * H) & (lane8 < 6 * H)   # g-gate lanes -> tanh
    lane2 = jax.lax.broadcasted_iota(jnp.int32, (B, 2 * H), 1)
    h_fwd_mask = lane2 < H

    # ---- layer 0: embedding gather from pre-projected (V, 8H) table ----
    # emb_proj already contains embedding @ W_ih0 + b0, so the gather IS the
    # whole layer-0 input projection.
    gx0 = []
    for t in range(T):
        rows = [embp_ref[pl.ds(ids_ref[t * B + b], 1), :] for b in range(B)]
        gx0.append(jnp.concatenate(rows, axis=0))      # (B, 8H)

    out0 = _bilstm_layer(gx0, whh0_ref[...], fwd_gate_mask, g_gate_mask, h_fwd_mask)

    # ---- layer 1 input projection (off the serial chain) ----
    wih1 = wih1_ref[...]
    b1 = b1_ref[...]
    gx1 = [jnp.dot(out0[t], wih1, preferred_element_type=jnp.float32) + b1
           for t in range(T)]
    out1_list = _bilstm_layer(gx1, whh1_ref[...], fwd_gate_mask, g_gate_mask,
                              h_fwd_mask)

    # ---- attention (query = output, dropout identity) + fc ----
    out1 = jnp.stack(out1_list, axis=1)                # (B, T, 2H) batch-major
    d_k = 2 * H
    scores = jnp.einsum("btd,bsd->bts", out1, out1,
                        preferred_element_type=jnp.float32) * (1.0 / math.sqrt(d_k))
    p_attn = jax.nn.softmax(scores, axis=-1)           # (B, T, T)
    # context = (p_attn @ x).sum(1) == sum_s (sum_t p_attn[:, t, s]) * x[:, s, :]
    w = jnp.sum(p_attn, axis=1)                        # (B, T)
    context = jnp.sum(w[:, :, None] * out1, axis=1)    # (B, 2H)
    logit_ref[...] = (jnp.dot(context, fcw_ref[...],
                              preferred_element_type=jnp.float32) + fcb_ref[...])


# ----------------------------- host-side packing ------------------------------
def pack_params(params):
    """One-time (outside jit) repacking of PyTorch-layout weights into the
    gate-major lane layout consumed by the kernel."""
    H = HIDDEN_DIM

    def pack_dir_pair(fwd, bwd, din):
        w_ih_f, w_hh_f, b_ih_f, b_hh_f = fwd
        w_ih_b, w_hh_b, b_ih_b, b_hh_b = bwd
        wih = jnp.zeros((din, 8 * H), jnp.float32)
        whh = jnp.zeros((2 * H, 8 * H), jnp.float32)
        b = jnp.zeros((1, 8 * H), jnp.float32)
        bf = b_ih_f + b_hh_f
        bb = b_ih_b + b_hh_b
        for k in range(4):                              # PyTorch gate order i, f, g, o
            cf = slice((2 * k) * H, (2 * k + 1) * H)    # fwd lanes of gate k
            cb = slice((2 * k + 1) * H, (2 * k + 2) * H)  # bwd lanes of gate k
            rows = slice(k * H, (k + 1) * H)
            wih = wih.at[:, cf].set(w_ih_f[rows, :].T)
            wih = wih.at[:, cb].set(w_ih_b[rows, :].T)
            whh = whh.at[0:H, cf].set(w_hh_f[rows, :].T)
            whh = whh.at[H:2 * H, cb].set(w_hh_b[rows, :].T)
            b = b.at[:, cf].set(bf[rows].reshape(1, H))
            b = b.at[:, cb].set(bb[rows].reshape(1, H))
        return wih, whh, b

    wih0, whh0, b0 = pack_dir_pair(params["l0_fwd"], params["l0_bwd"], EMBED_DIM)
    wih1, whh1, b1 = pack_dir_pair(params["l1_fwd"], params["l1_bwd"], 2 * H)

    # pre-project the embedding table through layer-0's input weights (+bias)
    emb_proj = params["embedding"].astype(jnp.float32) @ wih0 + b0   # (V, 8H)

    fcw = jnp.zeros((2 * H, FC_PAD), jnp.float32).at[:, :N_CLASSES].set(
        params["fc_w"].T)
    fcb = jnp.zeros((1, FC_PAD), jnp.float32).at[:, :N_CLASSES].set(params["fc_b"])

    return dict(emb_proj=emb_proj, whh0=whh0, wih1=wih1, b1=b1, whh1=whh1,
                fcw=fcw, fcb=fcb)


# --------------------------------- forward ------------------------------------
@jax.jit
def bilstm_attention_forward(x_ids, packed):
    """x_ids: (T, B) int32 token ids (seq-major, like PyTorch default LSTM)."""
    T, B = x_ids.shape
    ids_flat = x_ids.reshape(T * B).astype(jnp.int32)   # row (t, b) -> t*B + b
    logits_pad = pl.pallas_call(
        _fused_kernel,
        out_shape=jax.ShapeDtypeStruct((B, FC_PAD), jnp.float32),
        in_specs=[_SMEM, _VMEM, _VMEM, _VMEM, _VMEM, _VMEM, _VMEM, _VMEM],
        out_specs=_VMEM,
    )(ids_flat, packed["emb_proj"], packed["whh0"], packed["wih1"],
      packed["b1"], packed["whh1"], packed["fcw"], packed["fcb"])
    return logits_pad[:, :N_CLASSES]


# ------------------------- parameter construction ----------------------------
def init_params(key):
    params = {}
    k_emb, k_fc_w, k_fc_b, k_lstm = jax.random.split(key, 4)
    params["embedding"] = jax.random.normal(
        k_emb, (VOCAB_SIZE, EMBED_DIM), jnp.float32)
    bound_fc = 1.0 / math.sqrt(2 * HIDDEN_DIM)
    params["fc_w"] = jax.random.uniform(
        k_fc_w, (N_CLASSES, 2 * HIDDEN_DIM), jnp.float32, -bound_fc, bound_fc)
    params["fc_b"] = jax.random.uniform(
        k_fc_b, (N_CLASSES,), jnp.float32, -bound_fc, bound_fc)
    bound = 1.0 / math.sqrt(HIDDEN_DIM)
    keys = jax.random.split(k_lstm, N_LAYERS * 2 * 4)
    ki = 0
    for layer in range(N_LAYERS):
        din = EMBED_DIM if layer == 0 else 2 * HIDDEN_DIM
        for direction in ("fwd", "bwd"):
            w_ih = jax.random.uniform(
                keys[ki + 0], (4 * HIDDEN_DIM, din), jnp.float32, -bound, bound)
            w_hh = jax.random.uniform(
                keys[ki + 1], (4 * HIDDEN_DIM, HIDDEN_DIM), jnp.float32, -bound, bound)
            b_ih = jax.random.uniform(
                keys[ki + 2], (4 * HIDDEN_DIM,), jnp.float32, -bound, bound)
            b_hh = jax.random.uniform(
                keys[ki + 3], (4 * HIDDEN_DIM,), jnp.float32, -bound, bound)
            params[f"l{layer}_{direction}"] = (w_ih, w_hh, b_ih, b_hh)
            ki += 4
    return params


# --------------------------------- main ---------------------------------------
if __name__ == "__main__":
    key = jax.random.PRNGKey(0)
    k_params, k_ids = jax.random.split(key)
    params = init_params(k_params)
    packed = pack_params(params)                       # one-time, outside jit
    x_ids = jax.random.randint(k_ids, (SEQ_LEN, BATCH), 0, VOCAB_SIZE, jnp.int32)

    logits = bilstm_attention_forward(x_ids, packed)
    jax.block_until_ready(logits)
    assert logits.shape == (BATCH, N_CLASSES)
    assert bool(jnp.all(jnp.isfinite(logits)))
    print("KERNEL_OK")
</pallas_src>

<mosaic_0001>
module attributes {stable_mosaic.version = 11 : i64} {
  func.func @_fused_kernel(%arg0: memref<16xi32, #tpu.memory_space<smem>>, %arg1: memref<50x256xf32, #tpu.memory_space<vmem>>, %arg2: memref<64x256xf32, #tpu.memory_space<vmem>>, %arg3: memref<64x256xf32, #tpu.memory_space<vmem>>, %arg4: memref<1x256xf32, #tpu.memory_space<vmem>>, %arg5: memref<64x256xf32, #tpu.memory_space<vmem>>, %arg6: memref<64x128xf32, #tpu.memory_space<vmem>>, %arg7: memref<1x128xf32, #tpu.memory_space<vmem>>, %arg8: memref<2x128xf32, #tpu.memory_space<vmem>>) attributes {dimension_semantics = [], scalar_prefetch = 0 : i64, scratch_operands = 0 : i64, tpu.core_type = #tpu.core_type<tc>} {
    %0 = tpu.iota {dimensions = array<i32: 1>} : vector<2x256xi32>
    %c63_i32 = arith.constant 63 : i32
    %1 = vector.broadcast %c63_i32 : i32 to vector<2x256xi32>
    %2 = arith.andi %0, %1 : vector<2x256xi32>
    %c32_i32 = arith.constant 32 : i32
    %3 = vector.broadcast %c32_i32 : i32 to vector<2x256xi32>
    %4 = arith.cmpi slt, %2, %3 : vector<2x256xi32>
    %c128_i32 = arith.constant 128 : i32
    %5 = vector.broadcast %c128_i32 : i32 to vector<2x256xi32>
    %6 = arith.cmpi sge, %0, %5 : vector<2x256xi32>
    %c192_i32 = arith.constant 192 : i32
    %7 = vector.broadcast %c192_i32 : i32 to vector<2x256xi32>
    %8 = arith.cmpi slt, %0, %7 : vector<2x256xi32>
    %9 = arith.andi %6, %8 : vector<2x256xi1>
    %10 = tpu.iota {dimensions = array<i32: 1>} : vector<2x64xi32>
    %c32_i32_0 = arith.constant 32 : i32
    %11 = vector.broadcast %c32_i32_0 : i32 to vector<2x64xi32>
    %12 = arith.cmpi slt, %10, %11 : vector<2x64xi32>
    %c0 = arith.constant 0 : index
    %13 = memref.load %arg0[%c0] : memref<16xi32, #tpu.memory_space<smem>>
    %14 = arith.index_cast %13 : i32 to index
    %c0_1 = arith.constant 0 : index
    %15 = vector.load %arg1[%14, %c0_1] : memref<50x256xf32, #tpu.memory_space<vmem>>, vector<1x256xf32>
    %c1 = arith.constant 1 : index
    %16 = memref.load %arg0[%c1] : memref<16xi32, #tpu.memory_space<smem>>
    %17 = arith.index_cast %16 : i32 to index
    %c0_2 = arith.constant 0 : index
    %18 = vector.load %arg1[%17, %c0_2] : memref<50x256xf32, #tpu.memory_space<vmem>>, vector<1x256xf32>
    %19 = tpu.concatenate %15, %18 in 0 : vector<1x256xf32>, vector<1x256xf32> -> vector<2x256xf32>
    %c2 = arith.constant 2 : index
    %20 = memref.load %arg0[%c2] : memref<16xi32, #tpu.memory_space<smem>>
    %21 = arith.index_cast %20 : i32 to index
    %c0_3 = arith.constant 0 : index
    %22 = vector.load %arg1[%21, %c0_3] : memref<50x256xf32, #tpu.memory_space<vmem>>, vector<1x256xf32>
    %c3 = arith.constant 3 : index
    %23 = memref.load %arg0[%c3] : memref<16xi32, #tpu.memory_space<smem>>
    %24 = arith.index_cast %23 : i32 to index
    %c0_4 = arith.constant 0 : index
    %25 = vector.load %arg1[%24, %c0_4] : memref<50x256xf32, #tpu.memory_space<vmem>>, vector<1x256xf32>
    %26 = tpu.concatenate %22, %25 in 0 : vector<1x256xf32>, vector<1x256xf32> -> vector<2x256xf32>
    %c4 = arith.constant 4 : index
    %27 = memref.load %arg0[%c4] : memref<16xi32, #tpu.memory_space<smem>>
    %28 = arith.index_cast %27 : i32 to index
    %c0_5 = arith.constant 0 : index
    %29 = vector.load %arg1[%28, %c0_5] : memref<50x256xf32, #tpu.memory_space<vmem>>, vector<1x256xf32>
    %c5 = arith.constant 5 : index
    %30 = memref.load %arg0[%c5] : memref<16xi32, #tpu.memory_space<smem>>
    %31 = arith.index_cast %30 : i32 to index
    %c0_6 = arith.constant 0 : index
    %32 = vector.load %arg1[%31, %c0_6] : memref<50x256xf32, #tpu.memory_space<vmem>>, vector<1x256xf32>
    %33 = tpu.concatenate %29, %32 in 0 : vector<1x256xf32>, vector<1x256xf32> -> vector<2x256xf32>
    %c6 = arith.constant 6 : index
    %34 = memref.load %arg0[%c6] : memref<16xi32, #tpu.memory_space<smem>>
    %35 = arith.index_cast %34 : i32 to index
    %c0_7 = arith.constant 0 : index
    %36 = vector.load %arg1[%35, %c0_7] : memref<50x256xf32, #tpu.memory_space<vmem>>, vector<1x256xf32>
    %c7 = arith.constant 7 : index
    %37 = memref.load %arg0[%c7] : memref<16xi32, #tpu.memory_space<smem>>
    %38 = arith.index_cast %37 : i32 to index
    %c0_8 = arith.constant 0 : index
    %39 = vector.load %arg1[%38, %c0_8] : memref<50x256xf32, #tpu.memory_space<vmem>>, vector<1x256xf32>
    %40 = tpu.concatenate %36, %39 in 0 : vector<1x256xf32>, vector<1x256xf32> -> vector<2x256xf32>
    %c8 = arith.constant 8 : index
    %41 = memref.load %arg0[%c8] : memref<16xi32, #tpu.memory_space<smem>>
    %42 = arith.index_cast %41 : i32 to index
    %c0_9 = arith.constant 0 : index
    %43 = vector.load %arg1[%42, %c0_9] : memref<50x256xf32, #tpu.memory_space<vmem>>, vector<1x256xf32>
    %c9 = arith.constant 9 : index
    %44 = memref.load %arg0[%c9] : memref<16xi32, #tpu.memory_space<smem>>
    %45 = arith.index_cast %44 : i32 to index
    %c0_10 = arith.constant 0 : index
    %46 = vector.load %arg1[%45, %c0_10] : memref<50x256xf32, #tpu.memory_space<vmem>>, vector<1x256xf32>
    %47 = tpu.concatenate %43, %46 in 0 : vector<1x256xf32>, vector<1x256xf32> -> vector<2x256xf32>
    %c10 = arith.constant 10 : index
    %48 = memref.load %arg0[%c10] : memref<16xi32, #tpu.memory_space<smem>>
    %49 = arith.index_cast %48 : i32 to index
    %c0_11 = arith.constant 0 : index
    %50 = vector.load %arg1[%49, %c0_11] : memref<50x256xf32, #tpu.memory_space<vmem>>, vector<1x256xf32>
    %c11 = arith.constant 11 : index
    %51 = memref.load %arg0[%c11] : memref<16xi32, #tpu.memory_space<smem>>
    %52 = arith.index_cast %51 : i32 to index
    %c0_12 = arith.constant 0 : index
    %53 = vector.load %arg1[%52, %c0_12] : memref<50x256xf32, #tpu.memory_space<vmem>>, vector<1x256xf32>
    %54 = tpu.concatenate %50, %53 in 0 : vector<1x256xf32>, vector<1x256xf32> -> vector<2x256xf32>
    %c12 = arith.constant 12 : index
    %55 = memref.load %arg0[%c12] : memref<16xi32, #tpu.memory_space<smem>>
    %56 = arith.index_cast %55 : i32 to index
    %c0_13 = arith.constant 0 : index
    %57 = vector.load %arg1[%56, %c0_13] : memref<50x256xf32, #tpu.memory_space<vmem>>, vector<1x256xf32>
    %c13 = arith.constant 13 : index
    %58 = memref.load %arg0[%c13] : memref<16xi32, #tpu.memory_space<smem>>
    %59 = arith.index_cast %58 : i32 to index
    %c0_14 = arith.constant 0 : index
    %60 = vector.load %arg1[%59, %c0_14] : memref<50x256xf32, #tpu.memory_space<vmem>>, vector<1x256xf32>
    %61 = tpu.concatenate %57, %60 in 0 : vector<1x256xf32>, vector<1x256xf32> -> vector<2x256xf32>
    %c14 = arith.constant 14 : index
    %62 = memref.load %arg0[%c14] : memref<16xi32, #tpu.memory_space<smem>>
    %63 = arith.index_cast %62 : i32 to index
    %c0_15 = arith.constant 0 : index
    %64 = vector.load %arg1[%63, %c0_15] : memref<50x256xf32, #tpu.memory_space<vmem>>, vector<1x256xf32>
    %c15 = arith.constant 15 : index
    %65 = memref.load %arg0[%c15] : memref<16xi32, #tpu.memory_space<smem>>
    %66 = arith.index_cast %65 : i32 to index
    %c0_16 = arith.constant 0 : index
    %67 = vector.load %arg1[%66, %c0_16] : memref<50x256xf32, #tpu.memory_space<vmem>>, vector<1x256xf32>
    %68 = tpu.concatenate %64, %67 in 0 : vector<1x256xf32>, vector<1x256xf32> -> vector<2x256xf32>
    %c0_17 = arith.constant 0 : index
    %c0_18 = arith.constant 0 : index
    %69 = vector.load %arg2[%c0_17, %c0_18] : memref<64x256xf32, #tpu.memory_space<vmem>>, vector<64x256xf32>
    %cst = arith.constant 0.000000e+00 : f32
    %70 = vector.broadcast %cst : f32 to vector<2x64xf32>
    %cst_19 = arith.constant 0.000000e+00 : f32
    %71 = vector.broadcast %cst_19 : f32 to vector<2x64xf32>
    %72 = arith.select %4, %19, %68 : vector<2x256xi1>, vector<2x256xf32>
    %cst_20 = arith.constant dense<0.000000e+00> : vector<2x256xf32>
    %73 = tpu.matmul %70, %69, %cst_20 {dimension_numbers = #tpu.dot_dimension_numbers<[1], [0], [0], [1], [0, 0, 1, 1], [], []>} : vector<2x64xf32>, vector<64x256xf32>, vector<2x256xf32> -> vector<2x256xf32>
    %74 = arith.addf %72, %73 : vector<2x256xf32>
    %75 = math.tanh %74 : vector<2x256xf32>
    %76 = arith.negf %74 : vector<2x256xf32>
    %77 = math.exp %76 : vector<2x256xf32>
    %cst_21 = arith.constant 1.000000e+00 : f32
    %78 = vector.broadcast %cst_21 : f32 to vector<2x256xf32>
    %79 = arith.addf %78, %77 : vector<2x256xf32>
    %80 = arith.divf %78, %79 : vector<2x256xf32>
    %81 = arith.select %9, %75, %80 : vector<2x256xi1>, vector<2x256xf32>
    %82 = vector.extract_strided_slice %81 {offsets = [0, 0], sizes = [2, 64], strides = [1, 1]} : vector<2x256xf32> to vector<2x64xf32>
    %83 = vector.extract_strided_slice %81 {offsets = [0, 64], sizes = [2, 64], strides = [1, 1]} : vector<2x256xf32> to vector<2x64xf32>
    %84 = vector.extract_strided_slice %81 {offsets = [0, 128], sizes = [2, 64], strides = [1, 1]} : vector<2x256xf32> to vector<2x64xf32>
    %85 = vector.extract_strided_slice %81 {offsets = [0, 192], sizes = [2, 64], strides = [1, 1]} : vector<2x256xf32> to vector<2x64xf32>
    %86 = arith.mulf %83, %71 : vector<2x64xf32>
    %87 = arith.mulf %82, %84 : vector<2x64xf32>
    %88 = arith.addf %86, %87 : vector<2x64xf32>
    %89 = math.tanh %88 : vector<2x64xf32>
    %90 = arith.mulf %85, %89 : vector<2x64xf32>
    %91 = arith.select %4, %26, %61 : vector<2x256xi1>, vector<2x256xf32>
    %cst_22 = arith.constant dense<0.000000e+00> : vector<2x256xf32>
    %92 = tpu.matmul %90, %69, %cst_22 {dimension_numbers = #tpu.dot_dimension_numbers<[1], [0], [0], [1], [0, 0, 1, 1], [], []>} : vector<2x64xf32>, vector<64x256xf32>, vector<2x256xf32> -> vector<2x256xf32>
    %93 = arith.addf %91, %92 : vector<2x256xf32>
    %94 = math.tanh %93 : vector<2x256xf32>
    %95 = arith.negf %93 : vector<2x256xf32>
    %96 = math.exp %95 : vector<2x256xf32>
    %cst_23 = arith.constant 1.000000e+00 : f32
    %97 = vector.broadcast %cst_23 : f32 to vector<2x256xf32>
    %98 = arith.addf %97, %96 : vector<2x256xf32>
    %99 = arith.divf %97, %98 : vector<2x256xf32>
    %100 = arith.select %9, %94, %99 : vector<2x256xi1>, vector<2x256xf32>
    %101 = vector.extract_strided_slice %100 {offsets = [0, 0], sizes = [2, 64], strides = [1, 1]} : vector<2x256xf32> to vector<2x64xf32>
    %102 = vector.extract_strided_slice %100 {offsets = [0, 64], sizes = [2, 64], strides = [1, 1]} : vector<2x256xf32> to vector<2x64xf32>
    %103 = vector.extract_strided_slice %100 {offsets = [0, 128], sizes = [2, 64], strides = [1, 1]} : vector<2x256xf32> to vector<2x64xf32>
    %104 = vector.extract_strided_slice %100 {offsets = [0, 192], sizes = [2, 64], strides = [1, 1]} : vector<2x256xf32> to vector<2x64xf32>
    %105 = arith.mulf %102, %88 : vector<2x64xf32>
    %106 = arith.mulf %101, %103 : vector<2x64xf32>
    %107 = arith.addf %105, %106 : vector<2x64xf32>
    %108 = math.tanh %107 : vector<2x64xf32>
    %109 = arith.mulf %104, %108 : vector<2x64xf32>
    %110 = arith.select %4, %33, %54 : vector<2x256xi1>, vector<2x256xf32>
    %cst_24 = arith.constant dense<0.000000e+00> : vector<2x256xf32>
    %111 = tpu.matmul %109, %69, %cst_24 {dimension_numbers = #tpu.dot_dimension_numbers<[1], [0], [0], [1], [0, 0, 1, 1], [], []>} : vector<2x64xf32>, vector<64x256xf32>, vector<2x256xf32> -> vector<2x256xf32>
    %112 = arith.addf %110, %111 : vector<2x256xf32>
    %113 = math.tanh %112 : vector<2x256xf32>
    %114 = arith.negf %112 : vector<2x256xf32>
    %115 = math.exp %114 : vector<2x256xf32>
    %cst_25 = arith.constant 1.000000e+00 : f32
    %116 = vector.broadcast %cst_25 : f32 to vector<2x256xf32>
    %117 = arith.addf %116, %115 : vector<2x256xf32>
    %118 = arith.divf %116, %117 : vector<2x256xf32>
    %119 = arith.select %9, %113, %118 : vector<2x256xi1>, vector<2x256xf32>
    %120 = vector.extract_strided_slice %119 {offsets = [0, 0], sizes = [2, 64], strides = [1, 1]} : vector<2x256xf32> to vector<2x64xf32>
    %121 = vector.extract_strided_slice %119 {offsets = [0, 64], sizes = [2, 64], strides = [1, 1]} : vector<2x256xf32> to vector<2x64xf32>
    %122 = vector.extract_strided_slice %119 {offsets = [0, 128], sizes = [2, 64], strides = [1, 1]} : vector<2x256xf32> to vector<2x64xf32>
    %123 = vector.extract_strided_slice %119 {offsets = [0, 192], sizes = [2, 64], strides = [1, 1]} : vector<2x256xf32> to vector<2x64xf32>
    %124 = arith.mulf %121, %107 : vector<2x64xf32>
    %125 = arith.mulf %120, %122 : vector<2x64xf32>
    %126 = arith.addf %124, %125 : vector<2x64xf32>
    %127 = math.tanh %126 : vector<2x64xf32>
    %128 = arith.mulf %123, %127 : vector<2x64xf32>
    %129 = arith.select %4, %40, %47 : vector<2x256xi1>, vector<2x256xf32>
    %cst_26 = arith.constant dense<0.000000e+00> : vector<2x256xf32>
    %130 = tpu.matmul %128, %69, %cst_26 {dimension_numbers = #tpu.dot_dimension_numbers<[1], [0], [0], [1], [0, 0, 1, 1], [], []>} : vector<2x64xf32>, vector<64x256xf32>, vector<2x256xf32> -> vector<2x256xf32>
    %131 = arith.addf %129, %130 : vector<2x256xf32>
    %132 = math.tanh %131 : vector<2x256xf32>
    %133 = arith.negf %131 : vector<2x256xf32>
    %134 = math.exp %133 : vector<2x256xf32>
    %cst_27 = arith.constant 1.000000e+00 : f32
    %135 = vector.broadcast %cst_27 : f32 to vector<2x256xf32>
    %136 = arith.addf %135, %134 : vector<2x256xf32>
    %137 = arith.divf %135, %136 : vector<2x256xf32>
    %138 = arith.select %9, %132, %137 : vector<2x256xi1>, vector<2x256xf32>
    %139 = vector.extract_strided_slice %138 {offsets = [0, 0], sizes = [2, 64], strides = [1, 1]} : vector<2x256xf32> to vector<2x64xf32>
    %140 = vector.extract_strided_slice %138 {offsets = [0, 64], sizes = [2, 64], strides = [1, 1]} : vector<2x256xf32> to vector<2x64xf32>
    %141 = vector.extract_strided_slice %138 {offsets = [0, 128], sizes = [2, 64], strides = [1, 1]} : vector<2x256xf32> to vector<2x64xf32>
    %142 = vector.extract_strided_slice %138 {offsets = [0, 192], sizes = [2, 64], strides = [1, 1]} : vector<2x256xf32> to vector<2x64xf32>
    %143 = arith.mulf %140, %126 : vector<2x64xf32>
    %144 = arith.mulf %139, %141 : vector<2x64xf32>
    %145 = arith.addf %143, %144 : vector<2x64xf32>
    %146 = math.tanh %145 : vector<2x64xf32>
    %147 = arith.mulf %142, %146 : vector<2x64xf32>
    %148 = arith.select %4, %47, %40 : vector<2x256xi1>, vector<2x256xf32>
    %cst_28 = arith.constant dense<0.000000e+00> : vector<2x256xf32>
    %149 = tpu.matmul %147, %69, %cst_28 {dimension_numbers = #tpu.dot_dimension_numbers<[1], [0], [0], [1], [0, 0, 1, 1], [], []>} : vector<2x64xf32>, vector<64x256xf32>, vector<2x256xf32> -> vector<2x256xf32>
    %150 = arith.addf %148, %149 : vector<2x256xf32>
    %151 = math.tanh %150 : vector<2x256xf32>
    %152 = arith.negf %150 : vector<2x256xf32>
    %153 = math.exp %152 : vector<2x256xf32>
    %cst_29 = arith.constant 1.000000e+00 : f32
    %154 = vector.broadcast %cst_29 : f32 to vector<2x256xf32>
    %155 = arith.addf %154, %153 : vector<2x256xf32>
    %156 = arith.divf %154, %155 : vector<2x256xf32>
    %157 = arith.select %9, %151, %156 : vector<2x256xi1>, vector<2x256xf32>
    %158 = vector.extract_strided_slice %157 {offsets = [0, 0], sizes = [2, 64], strides = [1, 1]} : vector<2x256xf32> to vector<2x64xf32>
    %159 = vector.extract_strided_slice %157 {offsets = [0, 64], sizes = [2, 64], strides = [1, 1]} : vector<2x256xf32> to vector<2x64xf32>
    %160 = vector.extract_strided_slice %157 {offsets = [0, 128], sizes = [2, 64], strides = [1, 1]} : vector<2x256xf32> to vector<2x64xf32>
    %161 = vector.extract_strided_slice %157 {offsets = [0, 192], sizes = [2, 64], strides = [1, 1]} : vector<2x256xf32> to vector<2x64xf32>
    %162 = arith.mulf %159, %145 : vector<2x64xf32>
    %163 = arith.mulf %158, %160 : vector<2x64xf32>
    %164 = arith.addf %162, %163 : vector<2x64xf32>
    %165 = math.tanh %164 : vector<2x64xf32>
    %166 = arith.mulf %161, %165 : vector<2x64xf32>
    %167 = arith.select %4, %54, %33 : vector<2x256xi1>, vector<2x256xf32>
    %cst_30 = arith.constant dense<0.000000e+00> : vector<2x256xf32>
    %168 = tpu.matmul %166, %69, %cst_30 {dimension_numbers = #tpu.dot_dimension_numbers<[1], [0], [0], [1], [0, 0, 1, 1], [], []>} : vector<2x64xf32>, vector<64x256xf32>, vector<2x256xf32> -> vector<2x256xf32>
    %169 = arith.addf %167, %168 : vector<2x256xf32>
    %170 = math.tanh %169 : vector<2x256xf32>
    %171 = arith.negf %169 : vector<2x256xf32>
    %172 = math.exp %171 : vector<2x256xf32>
    %cst_31 = arith.constant 1.000000e+00 : f32
    %173 = vector.broadcast %cst_31 : f32 to vector<2x256xf32>
    %174 = arith.addf %173, %172 : vector<2x256xf32>
    %175 = arith.divf %173, %174 : vector<2x256xf32>
    %176 = arith.select %9, %170, %175 : vector<2x256xi1>, vector<2x256xf32>
    %177 = vector.extract_strided_slice %176 {offsets = [0, 0], sizes = [2, 64], strides = [1, 1]} : vector<2x256xf32> to vector<2x64xf32>
    %178 = vector.extract_strided_slice %176 {offsets = [0, 64], sizes = [2, 64], strides = [1, 1]} : vector<2x256xf32> to vector<2x64xf32>
    %179 = vector.extract_strided_slice %176 {offsets = [0, 128], sizes = [2, 64], strides = [1, 1]} : vector<2x256xf32> to vector<2x64xf32>
    %180 = vector.extract_strided_slice %176 {offsets = [0, 192], sizes = [2, 64], strides = [1, 1]} : vector<2x256xf32> to vector<2x64xf32>
    %181 = arith.mulf %178, %164 : vector<2x64xf32>
    %182 = arith.mulf %177, %179 : vector<2x64xf32>
    %183 = arith.addf %181, %182 : vector<2x64xf32>
    %184 = math.tanh %183 : vector<2x64xf32>
    %185 = arith.mulf %180, %184 : vector<2x64xf32>
    %186 = arith.select %4, %61, %26 : vector<2x256xi1>, vector<2x256xf32>
    %cst_32 = arith.constant dense<0.000000e+00> : vector<2x256xf32>
    %187 = tpu.matmul %185, %69, %cst_32 {dimension_numbers = #tpu.dot_dimension_numbers<[1], [0], [0], [1], [0, 0, 1, 1], [], []>} : vector<2x64xf32>, vector<64x256xf32>, vector<2x256xf32> -> vector<2x256xf32>
    %188 = arith.addf %186, %187 : vector<2x256xf32>
    %189 = math.tanh %188 : vector<2x256xf32>
    %190 = arith.negf %188 : vector<2x256xf32>
    %191 = math.exp %190 : vector<2x256xf32>
    %cst_33 = arith.constant 1.000000e+00 : f32
    %192 = vector.broadcast %cst_33 : f32 to vector<2x256xf32>
    %193 = arith.addf %192, %191 : vector<2x256xf32>
    %194 = arith.divf %192, %193 : vector<2x256xf32>
    %195 = arith.select %9, %189, %194 : vector<2x256xi1>, vector<2x256xf32>
    %196 = vector.extract_strided_slice %195 {offsets = [0, 0], sizes = [2, 64], strides = [1, 1]} : vector<2x256xf32> to vector<2x64xf32>
    %197 = vector.extract_strided_slice %195 {offsets = [0, 64], sizes = [2, 64], strides = [1, 1]} : vector<2x256xf32> to vector<2x64xf32>
    %198 = vector.extract_strided_slice %195 {offsets = [0, 128], sizes = [2, 64], strides = [1, 1]} : vector<2x256xf32> to vector<2x64xf32>
    %199 = vector.extract_strided_slice %195 {offsets = [0, 192], sizes = [2, 64], strides = [1, 1]} : vector<2x256xf32> to vector<2x64xf32>
    %200 = arith.mulf %197, %183 : vector<2x64xf32>
    %201 = arith.mulf %196, %198 : vector<2x64xf32>
    %202 = arith.addf %200, %201 : vector<2x64xf32>
    %203 = math.tanh %202 : vector<2x64xf32>
    %204 = arith.mulf %199, %203 : vector<2x64xf32>
    %205 = arith.select %4, %68, %19 : vector<2x256xi1>, vector<2x256xf32>
    %cst_34 = arith.constant dense<0.000000e+00> : vector<2x256xf32>
    %206 = tpu.matmul %204, %69, %cst_34 {dimension_numbers = #tpu.dot_dimension_numbers<[1], [0], [0], [1], [0, 0, 1, 1], [], []>} : vector<2x64xf32>, vector<64x256xf32>, vector<2x256xf32> -> vector<2x256xf32>
    %207 = arith.addf %205, %206 : vector<2x256xf32>
    %208 = math.tanh %207 : vector<2x256xf32>
    %209 = arith.negf %207 : vector<2x256xf32>
    %210 = math.exp %209 : vector<2x256xf32>
    %cst_35 = arith.constant 1.000000e+00 : f32
    %211 = vector.broadcast %cst_35 : f32 to vector<2x256xf32>
    %212 = arith.addf %211, %210 : vector<2x256xf32>
    %213 = arith.divf %211, %212 : vector<2x256xf32>
    %214 = arith.select %9, %208, %213 : vector<2x256xi1>, vector<2x256xf32>
    %215 = vector.extract_strided_slice %214 {offsets = [0, 0], sizes = [2, 64], strides = [1, 1]} : vector<2x256xf32> to vector<2x64xf32>
    %216 = vector.extract_strided_slice %214 {offsets = [0, 64], sizes = [2, 64], strides = [1, 1]} : vector<2x256xf32> to vector<2x64xf32>
    %217 = vector.extract_strided_slice %214 {offsets = [0, 128], sizes = [2, 64], strides = [1, 1]} : vector<2x256xf32> to vector<2x64xf32>
    %218 = vector.extract_strided_slice %214 {offsets = [0, 192], sizes = [2, 64], strides = [1, 1]} : vector<2x256xf32> to vector<2x64xf32>
    %219 = arith.mulf %216, %202 : vector<2x64xf32>
    %220 = arith.mulf %215, %217 : vector<2x64xf32>
    %221 = arith.addf %219, %220 : vector<2x64xf32>
    %222 = math.tanh %221 : vector<2x64xf32>
    %223 = arith.mulf %218, %222 : vector<2x64xf32>
    %224 = arith.select %12, %90, %223 : vector<2x64xi1>, vector<2x64xf32>
    %225 = arith.select %12, %109, %204 : vector<2x64xi1>, vector<2x64xf32>
    %226 = arith.select %12, %128, %185 : vector<2x64xi1>, vector<2x64xf32>
    %227 = arith.select %12, %147, %166 : vector<2x64xi1>, vector<2x64xf32>
    %228 = arith.select %12, %166, %147 : vector<2x64xi1>, vector<2x64xf32>
    %229 = arith.select %12, %185, %128 : vector<2x64xi1>, vector<2x64xf32>
    %230 = arith.select %12, %204, %109 : vector<2x64xi1>, vector<2x64xf32>
    %231 = arith.select %12, %223, %90 : vector<2x64xi1>, vector<2x64xf32>
    %c0_36 = arith.constant 0 : index
    %c0_37 = arith.constant 0 : index
    %232 = vector.load %arg3[%c0_36, %c0_37] : memref<64x256xf32, #tpu.memory_space<vmem>>, vector<64x256xf32>
    %c0_38 = arith.constant 0 : index
    %c0_39 = arith.constant 0 : index
    %233 = vector.load %arg4[%c0_38, %c0_39] : memref<1x256xf32, #tpu.memory_space<vmem>>, vector<1x256xf32>
    %cst_40 = arith.constant dense<0.000000e+00> : vector<2x256xf32>
    %234 = tpu.matmul %224, %232, %cst_40 {dimension_numbers = #tpu.dot_dimension_numbers<[1], [0], [0], [1], [0, 0, 1, 1], [], []>} : vector<2x64xf32>, vector<64x256xf32>, vector<2x256xf32> -> vector<2x256xf32>
    %235 = vector.broadcast %233 : vector<1x256xf32> to vector<2x256xf32>
    %236 = arith.addf %234, %235 : vector<2x256xf32>
    %cst_41 = arith.constant dense<0.000000e+00> : vector<2x256xf32>
    %237 = tpu.matmul %225, %232, %cst_41 {dimension_numbers = #tpu.dot_dimension_numbers<[1], [0], [0], [1], [0, 0, 1, 1], [], []>} : vector<2x64xf32>, vector<64x256xf32>, vector<2x256xf32> -> vector<2x256xf32>
    %238 = vector.broadcast %233 : vector<1x256xf32> to vector<2x256xf32>
    %239 = arith.addf %237, %238 : vector<2x256xf32>
    %cst_42 = arith.constant dense<0.000000e+00> : vector<2x256xf32>
    %240 = tpu.matmul %226, %232, %cst_42 {dimension_numbers = #tpu.dot_dimension_numbers<[1], [0], [0], [1], [0, 0, 1, 1], [], []>} : vector<2x64xf32>, vector<64x256xf32>, vector<2x256xf32> -> vector<2x256xf32>
    %241 = vector.broadcast %233 : vector<1x256xf32> to vector<2x256xf32>
    %242 = arith.addf %240, %241 : vector<2x256xf32>
    %cst_43 = arith.constant dense<0.000000e+00> : vector<2x256xf32>
    %243 = tpu.matmul %227, %232, %cst_43 {dimension_numbers = #tpu.dot_dimension_numbers<[1], [0], [0], [1], [0, 0, 1, 1], [], []>} : vector<2x64xf32>, vector<64x256xf32>, vector<2x256xf32> -> vector<2x256xf32>
    %244 = vector.broadcast %233 : vector<1x256xf32> to vector<2x256xf32>
    %245 = arith.addf %243, %244 : vector<2x256xf32>
    %cst_44 = arith.constant dense<0.000000e+00> : vector<2x256xf32>
    %246 = tpu.matmul %228, %232, %cst_44 {dimension_numbers = #tpu.dot_dimension_numbers<[1], [0], [0], [1], [0, 0, 1, 1], [], []>} : vector<2x64xf32>, vector<64x256xf32>, vector<2x256xf32> -> vector<2x256xf32>
    %247 = vector.broadcast %233 : vector<1x256xf32> to vector<2x256xf32>
    %248 = arith.addf %246, %247 : vector<2x256xf32>
    %cst_45 = arith.constant dense<0.000000e+00> : vector<2x256xf32>
    %249 = tpu.matmul %229, %232, %cst_45 {dimension_numbers = #tpu.dot_dimension_numbers<[1], [0], [0], [1], [0, 0, 1, 1], [], []>} : vector<2x64xf32>, vector<64x256xf32>, vector<2x256xf32> -> vector<2x256xf32>
    %250 = vector.broadcast %233 : vector<1x256xf32> to vector<2x256xf32>
    %251 = arith.addf %249, %250 : vector<2x256xf32>
    %cst_46 = arith.constant dense<0.000000e+00> : vector<2x256xf32>
    %252 = tpu.matmul %230, %232, %cst_46 {dimension_numbers = #tpu.dot_dimension_numbers<[1], [0], [0], [1], [0, 0, 1, 1], [], []>} : vector<2x64xf32>, vector<64x256xf32>, vector<2x256xf32> -> vector<2x256xf32>
    %253 = vector.broadcast %233 : vector<1x256xf32> to vector<2x256xf32>
    %254 = arith.addf %252, %253 : vector<2x256xf32>
    %cst_47 = arith.constant dense<0.000000e+00> : vector<2x256xf32>
    %255 = tpu.matmul %231, %232, %cst_47 {dimension_numbers = #tpu.dot_dimension_numbers<[1], [0], [0], [1], [0, 0, 1, 1], [], []>} : vector<2x64xf32>, vector<64x256xf32>, vector<2x256xf32> -> vector<2x256xf32>
    %256 = vector.broadcast %233 : vector<1x256xf32> to vector<2x256xf32>
    %257 = arith.addf %255, %256 : vector<2x256xf32>
    %c0_48 = arith.constant 0 : index
    %c0_49 = arith.constant 0 : index
    %258 = vector.load %arg5[%c0_48, %c0_49] : memref<64x256xf32, #tpu.memory_space<vmem>>, vector<64x256xf32>
    %cst_50 = arith.constant 0.000000e+00 : f32
    %259 = vector.broadcast %cst_50 : f32 to vector<2x64xf32>
    %cst_51 = arith.constant 0.000000e+00 : f32
    %260 = vector.broadcast %cst_51 : f32 to vector<2x64xf32>
    %261 = arith.select %4, %236, %257 : vector<2x256xi1>, vector<2x256xf32>
    %cst_52 = arith.constant dense<0.000000e+00> : vector<2x256xf32>
    %262 = tpu.matmul %259, %258, %cst_52 {dimension_numbers = #tpu.dot_dimension_numbers<[1], [0], [0], [1], [0, 0, 1, 1], [], []>} : vector<2x64xf32>, vector<64x256xf32>, vector<2x256xf32> -> vector<2x256xf32>
    %263 = arith.addf %261, %262 : vector<2x256xf32>
    %264 = math.tanh %263 : vector<2x256xf32>
    %265 = arith.negf %263 : vector<2x256xf32>
    %266 = math.exp %265 : vector<2x256xf32>
    %cst_53 = arith.constant 1.000000e+00 : f32
    %267 = vector.broadcast %cst_53 : f32 to vector<2x256xf32>
    %268 = arith.addf %267, %266 : vector<2x256xf32>
    %269 = arith.divf %267, %268 : vector<2x256xf32>
    %270 = arith.select %9, %264, %269 : vector<2x256xi1>, vector<2x256xf32>
    %271 = vector.extract_strided_slice %270 {offsets = [0, 0], sizes = [2, 64], strides = [1, 1]} : vector<2x256xf32> to vector<2x64xf32>
    %272 = vector.extract_strided_slice %270 {offsets = [0, 64], sizes = [2, 64], strides = [1, 1]} : vector<2x256xf32> to vector<2x64xf32>
    %273 = vector.extract_strided_slice %270 {offsets = [0, 128], sizes = [2, 64], strides = [1, 1]} : vector<2x256xf32> to vector<2x64xf32>
    %274 = vector.extract_strided_slice %270 {offsets = [0, 192], sizes = [2, 64], strides = [1, 1]} : vector<2x256xf32> to vector<2x64xf32>
    %275 = arith.mulf %272, %260 : vector<2x64xf32>
    %276 = arith.mulf %271, %273 : vector<2x64xf32>
    %277 = arith.addf %275, %276 : vector<2x64xf32>
    %278 = math.tanh %277 : vector<2x64xf32>
    %279 = arith.mulf %274, %278 : vector<2x64xf32>
    %280 = arith.select %4, %239, %254 : vector<2x256xi1>, vector<2x256xf32>
    %cst_54 = arith.constant dense<0.000000e+00> : vector<2x256xf32>
    %281 = tpu.matmul %279, %258, %cst_54 {dimension_numbers = #tpu.dot_dimension_numbers<[1], [0], [0], [1], [0, 0, 1, 1], [], []>} : vector<2x64xf32>, vector<64x256xf32>, vector<2x256xf32> -> vector<2x256xf32>
    %282 = arith.addf %280, %281 : vector<2x256xf32>
    %283 = math.tanh %282 : vector<2x256xf32>
    %284 = arith.negf %282 : vector<2x256xf32>
    %285 = math.exp %284 : vector<2x256xf32>
    %cst_55 = arith.constant 1.000000e+00 : f32
    %286 = vector.broadcast %cst_55 : f32 to vector<2x256xf32>
    %287 = arith.addf %286, %285 : vector<2x256xf32>
    %288 = arith.divf %286, %287 : vector<2x256xf32>
    %289 = arith.select %9, %283, %288 : vector<2x256xi1>, vector<2x256xf32>
    %290 = vector.extract_strided_slice %289 {offsets = [0, 0], sizes = [2, 64], strides = [1, 1]} : vector<2x256xf32> to vector<2x64xf32>
    %291 = vector.extract_strided_slice %289 {offsets = [0, 64], sizes = [2, 64], strides = [1, 1]} : vector<2x256xf32> to vector<2x64xf32>
    %292 = vector.extract_strided_slice %289 {offsets = [0, 128], sizes = [2, 64], strides = [1, 1]} : vector<2x256xf32> to vector<2x64xf32>
    %293 = vector.extract_strided_slice %289 {offsets = [0, 192], sizes = [2, 64], strides = [1, 1]} : vector<2x256xf32> to vector<2x64xf32>
    %294 = arith.mulf %291, %277 : vector<2x64xf32>
    %295 = arith.mulf %290, %292 : vector<2x64xf32>
    %296 = arith.addf %294, %295 : vector<2x64xf32>
    %297 = math.tanh %296 : vector<2x64xf32>
    %298 = arith.mulf %293, %297 : vector<2x64xf32>
    %299 = arith.select %4, %242, %251 : vector<2x256xi1>, vector<2x256xf32>
    %cst_56 = arith.constant dense<0.000000e+00> : vector<2x256xf32>
    %300 = tpu.matmul %298, %258, %cst_56 {dimension_numbers = #tpu.dot_dimension_numbers<[1], [0], [0], [1], [0, 0, 1, 1], [], []>} : vector<2x64xf32>, vector<64x256xf32>, vector<2x256xf32> -> vector<2x256xf32>
    %301 = arith.addf %299, %300 : vector<2x256xf32>
    %302 = math.tanh %301 : vector<2x256xf32>
    %303 = arith.negf %301 : vector<2x256xf32>
    %304 = math.exp %303 : vector<2x256xf32>
    %cst_57 = arith.constant 1.000000e+00 : f32
    %305 = vector.broadcast %cst_57 : f32 to vector<2x256xf32>
    %306 = arith.addf %305, %304 : vector<2x256xf32>
    %307 = arith.divf %305, %306 : vector<2x256xf32>
    %308 = arith.select %9, %302, %307 : vector<2x256xi1>, vector<2x256xf32>
    %309 = vector.extract_strided_slice %308 {offsets = [0, 0], sizes = [2, 64], strides = [1, 1]} : vector<2x256xf32> to vector<2x64xf32>
    %310 = vector.extract_strided_slice %308 {offsets = [0, 64], sizes = [2, 64], strides = [1, 1]} : vector<2x256xf32> to vector<2x64xf32>
    %311 = vector.extract_strided_slice %308 {offsets = [0, 128], sizes = [2, 64], strides = [1, 1]} : vector<2x256xf32> to vector<2x64xf32>
    %312 = vector.extract_strided_slice %308 {offsets = [0, 192], sizes = [2, 64], strides = [1, 1]} : vector<2x256xf32> to vector<2x64xf32>
    %313 = arith.mulf %310, %296 : vector<2x64xf32>
    %314 = arith.mulf %309, %311 : vector<2x64xf32>
    %315 = arith.addf %313, %314 : vector<2x64xf32>
    %316 = math.tanh %315 : vector<2x64xf32>
    %317 = arith.mulf %312, %316 : vector<2x64xf32>
    %318 = arith.select %4, %245, %248 : vector<2x256xi1>, vector<2x256xf32>
    %cst_58 = arith.constant dense<0.000000e+00> : vector<2x256xf32>
    %319 = tpu.matmul %317, %258, %cst_58 {dimension_numbers = #tpu.dot_dimension_numbers<[1], [0], [0], [1], [0, 0, 1, 1], [], []>} : vector<2x64xf32>, vector<64x256xf32>, vector<2x256xf32> -> vector<2x256xf32>
    %320 = arith.addf %318, %319 : vector<2x256xf32>
    %321 = math.tanh %320 : vector<2x256xf32>
    %322 = arith.negf %320 : vector<2x256xf32>
    %323 = math.exp %322 : vector<2x256xf32>
    %cst_59 = arith.constant 1.000000e+00 : f32
    %324 = vector.broadcast %cst_59 : f32 to vector<2x256xf32>
    %325 = arith.addf %324, %323 : vector<2x256xf32>
    %326 = arith.divf %324, %325 : vector<2x256xf32>
    %327 = arith.select %9, %321, %326 : vector<2x256xi1>, vector<2x256xf32>
    %328 = vector.extract_strided_slice %327 {offsets = [0, 0], sizes = [2, 64], strides = [1, 1]} : vector<2x256xf32> to vector<2x64xf32>
    %329 = vector.extract_strided_slice %327 {offsets = [0, 64], sizes = [2, 64], strides = [1, 1]} : vector<2x256xf32> to vector<2x64xf32>
    %330 = vector.extract_strided_slice %327 {offsets = [0, 128], sizes = [2, 64], strides = [1, 1]} : vector<2x256xf32> to vector<2x64xf32>
    %331 = vector.extract_strided_slice %327 {offsets = [0, 192], sizes = [2, 64], strides = [1, 1]} : vector<2x256xf32> to vector<2x64xf32>
    %332 = arith.mulf %329, %315 : vector<2x64xf32>
    %333 = arith.mulf %328, %330 : vector<2x64xf32>
    %334 = arith.addf %332, %333 : vector<2x64xf32>
    %335 = math.tanh %334 : vector<2x64xf32>
    %336 = arith.mulf %331, %335 : vector<2x64xf32>
    %337 = arith.select %4, %248, %245 : vector<2x256xi1>, vector<2x256xf32>
    %cst_60 = arith.constant dense<0.000000e+00> : vector<2x256xf32>
    %338 = tpu.matmul %336, %258, %cst_60 {dimension_numbers = #tpu.dot_dimension_numbers<[1], [0], [0], [1], [0, 0, 1, 1], [], []>} : vector<2x64xf32>, vector<64x256xf32>, vector<2x256xf32> -> vector<2x256xf32>
    %339 = arith.addf %337, %338 : vector<2x256xf32>
    %340 = math.tanh %339 : vector<2x256xf32>
    %341 = arith.negf %339 : vector<2x256xf32>
    %342 = math.exp %341 : vector<2x256xf32>
    %cst_61 = arith.constant 1.000000e+00 : f32
    %343 = vector.broadcast %cst_61 : f32 to vector<2x256xf32>
    %344 = arith.addf %343, %342 : vector<2x256xf32>
    %345 = arith.divf %343, %344 : vector<2x256xf32>
    %346 = arith.select %9, %340, %345 : vector<2x256xi1>, vector<2x256xf32>
    %347 = vector.extract_strided_slice %346 {offsets = [0, 0], sizes = [2, 64], strides = [1, 1]} : vector<2x256xf32> to vector<2x64xf32>
    %348 = vector.extract_strided_slice %346 {offsets = [0, 64], sizes = [2, 64], strides = [1, 1]} : vector<2x256xf32> to vector<2x64xf32>
    %349 = vector.extract_strided_slice %346 {offsets = [0, 128], sizes = [2, 64], strides = [1, 1]} : vector<2x256xf32> to vector<2x64xf32>
    %350 = vector.extract_strided_slice %346 {offsets = [0, 192], sizes = [2, 64], strides = [1, 1]} : vector<2x256xf32> to vector<2x64xf32>
    %351 = arith.mulf %348, %334 : vector<2x64xf32>
    %352 = arith.mulf %347, %349 : vector<2x64xf32>
    %353 = arith.addf %351, %352 : vector<2x64xf32>
    %354 = math.tanh %353 : vector<2x64xf32>
    %355 = arith.mulf %350, %354 : vector<2x64xf32>
    %356 = arith.select %4, %251, %242 : vector<2x256xi1>, vector<2x256xf32>
    %cst_62 = arith.constant dense<0.000000e+00> : vector<2x256xf32>
    %357 = tpu.matmul %355, %258, %cst_62 {dimension_numbers = #tpu.dot_dimension_numbers<[1], [0], [0], [1], [0, 0, 1, 1], [], []>} : vector<2x64xf32>, vector<64x256xf32>, vector<2x256xf32> -> vector<2x256xf32>
    %358 = arith.addf %356, %357 : vector<2x256xf32>
    %359 = math.tanh %358 : vector<2x256xf32>
    %360 = arith.negf %358 : vector<2x256xf32>
    %361 = math.exp %360 : vector<2x256xf32>
    %cst_63 = arith.constant 1.000000e+00 : f32
    %362 = vector.broadcast %cst_63 : f32 to vector<2x256xf32>
    %363 = arith.addf %362, %361 : vector<2x256xf32>
    %364 = arith.divf %362, %363 : vector<2x256xf32>
    %365 = arith.select %9, %359, %364 : vector<2x256xi1>, vector<2x256xf32>
    %366 = vector.extract_strided_slice %365 {offsets = [0, 0], sizes = [2, 64], strides = [1, 1]} : vector<2x256xf32> to vector<2x64xf32>
    %367 = vector.extract_strided_slice %365 {offsets = [0, 64], sizes = [2, 64], strides = [1, 1]} : vector<2x256xf32> to vector<2x64xf32>
    %368 = vector.extract_strided_slice %365 {offsets = [0, 128], sizes = [2, 64], strides = [1, 1]} : vector<2x256xf32> to vector<2x64xf32>
    %369 = vector.extract_strided_slice %365 {offsets = [0, 192], sizes = [2, 64], strides = [1, 1]} : vector<2x256xf32> to vector<2x64xf32>
    %370 = arith.mulf %367, %353 : vector<2x64xf32>
    %371 = arith.mulf %366, %368 : vector<2x64xf32>
    %372 = arith.addf %370, %371 : vector<2x64xf32>
    %373 = math.tanh %372 : vector<2x64xf32>
    %374 = arith.mulf %369, %373 : vector<2x64xf32>
    %375 = arith.select %4, %254, %239 : vector<2x256xi1>, vector<2x256xf32>
    %cst_64 = arith.constant dense<0.000000e+00> : vector<2x256xf32>
    %376 = tpu.matmul %374, %258, %cst_64 {dimension_numbers = #tpu.dot_dimension_numbers<[1], [0], [0], [1], [0, 0, 1, 1], [], []>} : vector<2x64xf32>, vector<64x256xf32>, vector<2x256xf32> -> vector<2x256xf32>
    %377 = arith.addf %375, %376 : vector<2x256xf32>
    %378 = math.tanh %377 : vector<2x256xf32>
    %379 = arith.negf %377 : vector<2x256xf32>
    %380 = math.exp %379 : vector<2x256xf32>
    %cst_65 = arith.constant 1.000000e+00 : f32
    %381 = vector.broadcast %cst_65 : f32 to vector<2x256xf32>
    %382 = arith.addf %381, %380 : vector<2x256xf32>
    %383 = arith.divf %381, %382 : vector<2x256xf32>
    %384 = arith.select %9, %378, %383 : vector<2x256xi1>, vector<2x256xf32>
    %385 = vector.extract_strided_slice %384 {offsets = [0, 0], sizes = [2, 64], strides = [1, 1]} : vector<2x256xf32> to vector<2x64xf32>
    %386 = vector.extract_strided_slice %384 {offsets = [0, 64], sizes = [2, 64], strides = [1, 1]} : vector<2x256xf32> to vector<2x64xf32>
    %387 = vector.extract_strided_slice %384 {offsets = [0, 128], sizes = [2, 64], strides = [1, 1]} : vector<2x256xf32> to vector<2x64xf32>
    %388 = vector.extract_strided_slice %384 {offsets = [0, 192], sizes = [2, 64], strides = [1, 1]} : vector<2x256xf32> to vector<2x64xf32>
    %389 = arith.mulf %386, %372 : vector<2x64xf32>
    %390 = arith.mulf %385, %387 : vector<2x64xf32>
    %391 = arith.addf %389, %390 : vector<2x64xf32>
    %392 = math.tanh %391 : vector<2x64xf32>
    %393 = arith.mulf %388, %392 : vector<2x64xf32>
    %394 = arith.select %4, %257, %236 : vector<2x256xi1>, vector<2x256xf32>
    %cst_66 = arith.constant dense<0.000000e+00> : vector<2x256xf32>
    %395 = tpu.matmul %393, %258, %cst_66 {dimension_numbers = #tpu.dot_dimension_numbers<[1], [0], [0], [1], [0, 0, 1, 1], [], []>} : vector<2x64xf32>, vector<64x256xf32>, vector<2x256xf32> -> vector<2x256xf32>
    %396 = arith.addf %394, %395 : vector<2x256xf32>
    %397 = math.tanh %396 : vector<2x256xf32>
    %398 = arith.negf %396 : vector<2x256xf32>
    %399 = math.exp %398 : vector<2x256xf32>
    %cst_67 = arith.constant 1.000000e+00 : f32
    %400 = vector.broadcast %cst_67 : f32 to vector<2x256xf32>
    %401 = arith.addf %400, %399 : vector<2x256xf32>
    %402 = arith.divf %400, %401 : vector<2x256xf32>
    %403 = arith.select %9, %397, %402 : vector<2x256xi1>, vector<2x256xf32>
    %404 = vector.extract_strided_slice %403 {offsets = [0, 0], sizes = [2, 64], strides = [1, 1]} : vector<2x256xf32> to vector<2x64xf32>
    %405 = vector.extract_strided_slice %403 {offsets = [0, 64], sizes = [2, 64], strides = [1, 1]} : vector<2x256xf32> to vector<2x64xf32>
    %406 = vector.extract_strided_slice %403 {offsets = [0, 128], sizes = [2, 64], strides = [1, 1]} : vector<2x256xf32> to vector<2x64xf32>
    %407 = vector.extract_strided_slice %403 {offsets = [0, 192], sizes = [2, 64], strides = [1, 1]} : vector<2x256xf32> to vector<2x64xf32>
    %408 = arith.mulf %405, %391 : vector<2x64xf32>
    %409 = arith.mulf %404, %406 : vector<2x64xf32>
    %410 = arith.addf %408, %409 : vector<2x64xf32>
    %411 = math.tanh %410 : vector<2x64xf32>
    %412 = arith.mulf %407, %411 : vector<2x64xf32>
    %413 = arith.select %12, %279, %412 : vector<2x64xi1>, vector<2x64xf32>
    %414 = arith.select %12, %298, %393 : vector<2x64xi1>, vector<2x64xf32>
    %415 = arith.select %12, %317, %374 : vector<2x64xi1>, vector<2x64xf32>
    %416 = arith.select %12, %336, %355 : vector<2x64xi1>, vector<2x64xf32>
    %417 = arith.select %12, %355, %336 : vector<2x64xi1>, vector<2x64xf32>
    %418 = arith.select %12, %374, %317 : vector<2x64xi1>, vector<2x64xf32>
    %419 = arith.select %12, %393, %298 : vector<2x64xi1>, vector<2x64xf32>
    %420 = arith.select %12, %412, %279 : vector<2x64xi1>, vector<2x64xf32>
    %421 = vector.shape_cast %413 : vector<2x64xf32> to vector<2x1x64xf32>
    %422 = vector.shape_cast %414 : vector<2x64xf32> to vector<2x1x64xf32>
    %423 = vector.shape_cast %415 : vector<2x64xf32> to vector<2x1x64xf32>
    %424 = vector.shape_cast %416 : vector<2x64xf32> to vector<2x1x64xf32>
    %425 = vector.shape_cast %417 : vector<2x64xf32> to vector<2x1x64xf32>
    %426 = vector.shape_cast %418 : vector<2x64xf32> to vector<2x1x64xf32>
    %427 = vector.shape_cast %419 : vector<2x64xf32> to vector<2x1x64xf32>
    %428 = vector.shape_cast %420 : vector<2x64xf32> to vector<2x1x64xf32>
    %429 = tpu.concatenate %421, %422, %423, %424, %425, %426, %427, %428 in 1 : vector<2x1x64xf32>, vector<2x1x64xf32>, vector<2x1x64xf32>, vector<2x1x64xf32>, vector<2x1x64xf32>, vector<2x1x64xf32>, vector<2x1x64xf32>, vector<2x1x64xf32> -> vector<2x8x64xf32>
    "tpu.trace_start"() <{level = 10 : i32, message = "btd,bsd->bts"}> : () -> ()
    %cst_68 = arith.constant dense<0.000000e+00> : vector<2x8x8xf32>
    %430 = tpu.matmul %429, %429, %cst_68 {dimension_numbers = #tpu.dot_dimension_numbers<[2], [2], [1], [1], [0, 0, 0, 1, 1, 1], [0], [0]>} : vector<2x8x64xf32>, vector<2x8x64xf32>, vector<2x8x8xf32> -> vector<2x8x8xf32>
    "tpu.trace_stop"() : () -> ()
    %cst_69 = arith.constant 1.250000e-01 : f32
    %431 = vector.broadcast %cst_69 : f32 to vector<2x8x8xf32>
    %432 = arith.mulf %430, %431 : vector<2x8x8xf32>
    %cst_70 = arith.constant dense<0xFF800000> : vector<2x8xf32>
    %433 = vector.multi_reduction <maximumf>, %432, %cst_70 [2] : vector<2x8x8xf32> to vector<2x8xf32>
    %cst_71 = arith.constant 0xFF800000 : f32
    %434 = vector.broadcast %cst_71 : f32 to vector<2x8xf32>
    %435 = arith.maximumf %434, %433 : vector<2x8xf32>
    %436 = vector.shape_cast %435 : vector<2x8xf32> to vector<2x8x1xf32>
    %437 = vector.broadcast %436 : vector<2x8x1xf32> to vector<2x8x8xf32>
    %438 = arith.subf %432, %437 : vector<2x8x8xf32>
    %439 = math.exp %438 : vector<2x8x8xf32>
    %cst_72 = arith.constant dense<0.000000e+00> : vector<2x8xf32>
    %440 = vector.multi_reduction <add>, %439, %cst_72 [2] : vector<2x8x8xf32> to vector<2x8xf32>
    %441 = vector.shape_cast %440 : vector<2x8xf32> to vector<2x8x1xf32>
    %442 = vector.broadcast %441 : vector<2x8x1xf32> to vector<2x8x8xf32>
    %443 = arith.divf %439, %442 : vector<2x8x8xf32>
    %cst_73 = arith.constant dense<0.000000e+00> : vector<2x8xf32>
    %444 = vector.multi_reduction <add>, %443, %cst_73 [1] : vector<2x8x8xf32> to vector<2x8xf32>
    %445 = vector.shape_cast %444 : vector<2x8xf32> to vector<2x8x1xf32>
    %446 = vector.broadcast %445 : vector<2x8x1xf32> to vector<2x8x64xf32>
    %447 = arith.mulf %446, %429 : vector<2x8x64xf32>
    %cst_74 = arith.constant dense<0.000000e+00> : vector<2x64xf32>
    %448 = vector.multi_reduction <add>, %447, %cst_74 [1] : vector<2x8x64xf32> to vector<2x64xf32>
    %c0_75 = arith.constant 0 : index
    %c0_76 = arith.constant 0 : index
    %449 = vector.load %arg6[%c0_75, %c0_76] : memref<64x128xf32, #tpu.memory_space<vmem>>, vector<64x128xf32>
    %cst_77 = arith.constant dense<0.000000e+00> : vector<2x128xf32>
    %450 = tpu.matmul %448, %449, %cst_77 {dimension_numbers = #tpu.dot_dimension_numbers<[1], [0], [0], [1], [0, 0, 1, 1], [], []>} : vector<2x64xf32>, vector<64x128xf32>, vector<2x128xf32> -> vector<2x128xf32>
    %c0_78 = arith.constant 0 : index
    %c0_79 = arith.constant 0 : index
    %451 = vector.load %arg7[%c0_78, %c0_79] : memref<1x128xf32, #tpu.memory_space<vmem>>, vector<1x128xf32>
    %452 = vector.broadcast %451 : vector<1x128xf32> to vector<2x128xf32>
    %453 = arith.addf %450, %452 : vector<2x128xf32>
    %c0_80 = arith.constant 0 : index
    %c0_81 = arith.constant 0 : index
    %454 = vector.load %arg8[%c0_80, %c0_81] : memref<2x128xf32, #tpu.memory_space<vmem>>, vector<2x128xf32>
    tpu.vector_store %arg8[%c0_80, %c0_81], %453 {strides = array<i32>} : memref<2x128xf32, #tpu.memory_space<vmem>>, vector<2x128xf32>,
    return
  }
}

</mosaic_0001>

<llo_original>
// kernel: bilstm_attention_forward.1
$region0: #{bilstm_attention_forward.1}
  #allocation0 [shape = 'u32[]', space=smem, size = 0x4, offset = 0x4, fixed_abs, tag = 'smem constant byte address 0x4 - core index']
  #allocation1 [shape = 'u32[144,128]{1,0:T(1,128)}', space=vmem, size = 0x12000, scoped, tag = 'internal scratch']
  %s0 = inlined_call_operand.vmem [shape: s32[16], index: 0, kind: input, shape index: {}]
  %s1 = inlined_call_operand.hbm [shape: f32[50,256], index: 1, kind: input, shape index: {}]
  %s2 = inlined_call_operand.hbm [shape: f32[64,256], index: 2, kind: input, shape index: {}]
  %s3 = inlined_call_operand.hbm [shape: f32[64,256], index: 3, kind: input, shape index: {}]
  %s4 = inlined_call_operand.vmem [shape: f32[1,256], index: 4, kind: input, shape index: {}]
  %s5 = inlined_call_operand.hbm [shape: f32[64,256], index: 5, kind: input, shape index: {}]
  %s6 = inlined_call_operand.hbm [shape: f32[64,128], index: 6, kind: input, shape index: {}]
  %s7 = inlined_call_operand.vmem [shape: f32[1,128], index: 7, kind: input, shape index: {}]
  %s8 = inlined_call_operand.hbm [shape: f32[2,128], index: 8, kind: output, shape index: {}]
  %s9 = sld [smem:[#allocation0]]
  $region66: #{bilstm_attention_forward.1} parent=0
    _
  %s11 = ssub.s32 1, %s9
  %s12 = scalar_select 0, %s11, %s9
  $region1: #{bilstm_attention_forward.1} parent=0
    #allocation2 [shape = 'u8[512]{0}', space=smem, size = 0x200, scoped, tag = 'input window, operand 0, single buffered']
    #allocation3 [shape = 's32[1]{0}', space=sflag, size = 0x4, scoped, tag = 'scoped memory for bilstm_attention_forward.1']
    #allocation4 [shape = 's32[1]{0}', space=sflag, size = 0x4, scoped, tag = 'scoped memory for bilstm_attention_forward.1']
    #allocation5 [shape = 's32[1]{0}', space=sflag, size = 0x4, scoped, tag = 'scoped memory for bilstm_attention_forward.1']
    #allocation6 [shape = 'u8[57344]{0}', space=vmem, size = 0xe000, scoped, tag = 'input window, operand 1, single buffered']
    #allocation7 [shape = 'u8[65536]{0}', space=vmem, size = 0x10000, scoped, tag = 'input window, operand 2, single buffered']
    #allocation8 [shape = 's32[1]{0}', space=sflag, size = 0x4, scoped, tag = 'scoped memory for bilstm_attention_forward.1']
    #allocation9 [shape = 'u8[65536]{0}', space=vmem, size = 0x10000, scoped, tag = 'input window, operand 3, single buffered']
    #allocation10 [shape = 'u8[65536]{0}', space=vmem, size = 0x10000, scoped, tag = 'input window, operand 5, single buffered']
    #allocation11 [shape = 's32[1]{0}', space=sflag, size = 0x4, scoped, tag = 'scoped memory for bilstm_attention_forward.1']
    #allocation12 [shape = 'u8[32768]{0}', space=vmem, size = 0x8000, scoped, tag = 'input window, operand 6, single buffered']
    #allocation13 [shape = 'u8[1024]{0}', space=vmem, size = 0x400, scoped, tag = 'output window, operand 0, single buffered']
    %13 = vsyncpa [#allocation5], 0
    %14 = vsyncpa [#allocation3], 0
    %15 = vsyncpa [#allocation8], 0
    %16 = vsyncpa [#allocation11], 0
    %17 = vsyncpa [#allocation4], 0
    // Predicated region
    $region2: #{bilstm_attention_forward.1} parent=1 // pred_check
      _
    $region3: #{bilstm_attention_forward.1} parent=1 // pred_check_branch
      %19 = sbr.rel (0) target = $region5
    $region4: #{bilstm_attention_forward.1} parent=1 // pred_region
      %s21 = ssub.s32 16, 16
      %22 = vsyncadd [#allocation5], %s21
      %s24 = sshll.u32 %s0, 4
      %s25 = int_to_ptr.vmem [resolvable:$true] %s24
      %27 = dma.vmem_to_smem %s25, 16, [#allocation2], [#allocation5]
    $region5: #{bilstm_attention_forward.1} parent=1 // pred_fallthru
      _
    // Predicated region
    $region6: #{bilstm_attention_forward.1} parent=1 // pred_check
      _
    $region7: #{bilstm_attention_forward.1} parent=1 // pred_check_branch
      %29 = sbr.rel (0) target = $region9
    $region8: #{bilstm_attention_forward.1} parent=1 // pred_region
      %s31 = ssub.s32 1792, 1792
      %32 = vsyncadd [#allocation3], %s31
      %s33 = sshll.u32 [#allocation6], 4
      %s34 = int_to_ptr.vmem [resolvable:$true] %s33
      %39 = dma.hbm_to_vmem [thread:$0]  %s1, 1792, %s34, [#allocation3], 256, 256, 16
    $region9: #{bilstm_attention_forward.1} parent=1 // pred_fallthru
      _
    // Predicated region
    $region10: #{bilstm_attention_forward.1} parent=1 // pred_check
      _
    $region11: #{bilstm_attention_forward.1} parent=1 // pred_check_branch
      %41 = sbr.rel (0) target = $region13
    $region12: #{bilstm_attention_forward.1} parent=1 // pred_region
      %s43 = ssub.s32 2048, 2048
      %44 = vsyncadd [#allocation8], %s43
      %s45 = sshll.u32 [#allocation7], 4
      %s46 = int_to_ptr.vmem [resolvable:$true] %s45
      %51 = dma.hbm_to_vmem [thread:$0]  %s2, 2048, %s46, [#allocation8], 256, 256, 16
    $region13: #{bilstm_attention_forward.1} parent=1 // pred_fallthru
      _
    // Predicated region
    $region14: #{bilstm_attention_forward.1} parent=1 // pred_check
      _
    $region15: #{bilstm_attention_forward.1} parent=1 // pred_check_branch
      %53 = sbr.rel (0) target = $region17
    $region16: #{bilstm_attention_forward.1} parent=1 // pred_region
      %s55 = ssub.s32 2048, 2048
      %56 = vsyncadd [#allocation8], %s55
      %s57 = sshll.u32 [#allocation9], 4
      %s58 = int_to_ptr.vmem [resolvable:$true] %s57
      %63 = dma.hbm_to_vmem [thread:$0]  %s3, 2048, %s58, [#allocation8], 256, 256, 16
    $region17: #{bilstm_attention_forward.1} parent=1 // pred_fallthru
      _
    // Predicated region
    $region18: #{bilstm_attention_forward.1} parent=1 // pred_check
      _
    $region19: #{bilstm_attention_forward.1} parent=1 // pred_check_branch
      %65 = sbr.rel (0) target = $region21
    $region20: #{bilstm_attention_forward.1} parent=1 // pred_region
      _
    $region21: #{bilstm_attention_forward.1} parent=1 // pred_fallthru
      _
    // Predicated region
    $region22: #{bilstm_attention_forward.1} parent=1 // pred_check
      _
    $region23: #{bilstm_attention_forward.1} parent=1 // pred_check_branch
      %67 = sbr.rel (0) target = $region25
    $region24: #{bilstm_attention_forward.1} parent=1 // pred_region
      %s69 = ssub.s32 2048, 2048
      %70 = vsyncadd [#allocation11], %s69
      %s71 = sshll.u32 [#allocation10], 4
      %s72 = int_to_ptr.vmem [resolvable:$true] %s71
      %77 = dma.hbm_to_vmem [thread:$0]  %s5, 2048, %s72, [#allocation11], 256, 256, 16
    $region25: #{bilstm_attention_forward.1} parent=1 // pred_fallthru
      _
    // Predicated region
    $region26: #{bilstm_attention_forward.1} parent=1 // pred_check
      _
    $region27: #{bilstm_attention_forward.1} parent=1 // pred_check_branch
      %79 = sbr.rel (0) target = $region29
    $region28: #{bilstm_attention_forward.1} parent=1 // pred_region
      %s81 = ssub.s32 1024, 1024
      %82 = vsyncadd [#allocation11], %s81
      %s83 = sshll.u32 [#allocation12], 4
      %s84 = int_to_ptr.vmem [resolvable:$true] %s83
      %89 = dma.hbm_to_vmem [thread:$0]  %s6, 1024, %s84, [#allocation11], 128, 128, 8
    $region29: #{bilstm_attention_forward.1} parent=1 // pred_fallthru
      _
    // Predicated region
    $region30: #{bilstm_attention_forward.1} parent=1 // pred_check
      _
    $region31: #{bilstm_attention_forward.1} parent=1 // pred_check_branch
      %91 = sbr.rel (0) target = $region33
    $region32: #{bilstm_attention_forward.1} parent=1 // pred_region
      _
    $region33: #{bilstm_attention_forward.1} parent=1 // pred_fallthru
      _
    // Predicated region
    $region34: #{bilstm_attention_forward.1} parent=1 // pred_check
      _
    $region35: #{bilstm_attention_forward.1} parent=1 // pred_check_branch
      %93 = sbr.rel (0) target = $region37
    $region36: #{bilstm_attention_forward.1} parent=1 // pred_region
      %94 = dma.done [#allocation5], 16
    $region37: #{bilstm_attention_forward.1} parent=1 // pred_fallthru
      _
    // Predicated region
    $region38: #{bilstm_attention_forward.1} parent=1 // pred_check
      _
    $region39: #{bilstm_attention_forward.1} parent=1 // pred_check_branch
      %96 = sbr.rel (0) target = $region41
    $region40: #{bilstm_attention_forward.1} parent=1 // pred_region
      %97 = dma.done [#allocation3], 1792
    $region41: #{bilstm_attention_forward.1} parent=1 // pred_fallthru
      _
    // Predicated region
    $region42: #{bilstm_attention_forward.1} parent=1 // pred_check
      _
    $region43: #{bilstm_attention_forward.1} parent=1 // pred_check_branch
      %99 = sbr.rel (0) target = $region45
    $region44: #{bilstm_attention_forward.1} parent=1 // pred_region
      %100 = dma.done [#allocation8], 2048
    $region45: #{bilstm_attention_forward.1} parent=1 // pred_fallthru
      _
    // Predicated region
    $region46: #{bilstm_attention_forward.1} parent=1 // pred_check
      _
    $region47: #{bilstm_attention_forward.1} parent=1 // pred_check_branch
      %102 = sbr.rel (0) target = $region49
    $region48: #{bilstm_attention_forward.1} parent=1 // pred_region
      %103 = dma.done [#allocation8], 2048
    $region49: #{bilstm_attention_forward.1} parent=1 // pred_fallthru
      _
    // Predicated region
    $region50: #{bilstm_attention_forward.1} parent=1 // pred_check
      _
    $region51: #{bilstm_attention_forward.1} parent=1 // pred_check_branch
      %105 = sbr.rel (0) target = $region53
    $region52: #{bilstm_attention_forward.1} parent=1 // pred_region
      %106 = dma.done [#allocation11], 2048
    $region53: #{bilstm_attention_forward.1} parent=1 // pred_fallthru
      _
    // Predicated region
    $region54: #{bilstm_attention_forward.1} parent=1 // pred_check
      _
    $region55: #{bilstm_attention_forward.1} parent=1 // pred_check_branch
      %108 = sbr.rel (0) target = $region57
    $region56: #{bilstm_attention_forward.1} parent=1 // pred_region
      %109 = dma.done [#allocation11], 1024
    $region57: #{bilstm_attention_forward.1} parent=1 // pred_fallthru
      _
    %110 = sfence
    %v111 = vlaneseq
    %v112 = vand.u32 %v111, 127
    %v113 = vadd.s32 %v112, 128
    %v114 = vand.u32 %v112, 63
    %v115 = vand.u32 %v113, 63
    %vm116 = vcmp.lt.s32.totalorder %v114, 32
    %vm117 = vcmp.lt.s32.totalorder %v115, 32
    %vm118 = vcmp.ge.s32.totalorder %v112, 128
    %vm119 = vcmp.ge.s32.totalorder %v113, 128
    %vm120 = vcmp.lt.s32.totalorder %v112, 192
    %vm121 = vcmp.lt.s32.totalorder %v113, 192
    %vm122 = vmand %vm118, %vm120
    %vm123 = vmand %vm119, %vm121
    %vm124 = vcmp.lt.s32.totalorder %v112, 32
    %s125 = sld [smem:[#allocation2]]
    %s126 = sshra.s32 %s125, 3
    %s127 = sand.u32 %s125, 7
    %s128 = sshra.s32 %s125, 3
    %s129 = sand.u32 %s125, 7
    %s130 = smul.u32 %s126, 2
    %s131 = smul.u32 %s130, 8
    %s132 = sadd.s32 %s131, %s129
    %s133 = scalar_lea.vmem [#allocation6], %s132
    %v134 = vld [vmem:[%s133] ss:$8 sm:$0x3]
    %s135 = sld [smem:[#allocation2 + $0x1]]
    %s136 = sshra.s32 %s135, 3
    %s137 = sand.u32 %s135, 7
    %s138 = sshra.s32 %s135, 3
    %s139 = sand.u32 %s135, 7
    %s140 = smul.u32 %s136, 2
    %s141 = smul.u32 %s140, 8
    %s142 = sadd.s32 %s141, %s139
    %s143 = scalar_lea.vmem [#allocation6], %s142
    %v144 = vld [vmem:[%s143] ss:$8 sm:$0x3]
    %v146 = vlaneseq
    %v147 = vshrl.u32 %v146, 7
    %v148 = vsub.s32 0, %v147
    %v149 = vrot.slane %v134, %v148
    %v150 = vlaneseq
    %v151 = vshrl.u32 %v150, 7
    %v152 = vsub.s32 1, %v151
    %v153 = vrot.slane %v134, %v152
    %v157 = vlaneseq
    %v158 = vshrl.u32 %v157, 7
    %v159 = vsub.s32 0, %v158
    %v160 = vrot.slane %v144, %v159
    %v161 = vlaneseq
    %v162 = vshrl.u32 %v161, 7
    %v163 = vsub.s32 1, %v162
    %v164 = vrot.slane %v144, %v163
    %vm167 = vcmask 1040384
    %v168 = vsel %vm167, %v149, %v160
    %v169 = vsel %vm167, %v153, %v164
    %s170 = sld [smem:[#allocation2 + $0x2]]
    %s171 = sshra.s32 %s170, 3
    %s172 = sand.u32 %s170, 7
    %s173 = sshra.s32 %s170, 3
    %s174 = sand.u32 %s170, 7
    %s175 = smul.u32 %s171, 2
    %s176 = smul.u32 %s175, 8
    %s177 = sadd.s32 %s176, %s174
    %s178 = scalar_lea.vmem [#allocation6], %s177
    %v179 = vld [vmem:[%s178] ss:$8 sm:$0x3]
    %s180 = sld [smem:[#allocation2 + $0x3]]
    %s181 = sshra.s32 %s180, 3
    %s182 = sand.u32 %s180, 7
    %s183 = sshra.s32 %s180, 3
    %s184 = sand.u32 %s180, 7
    %s185 = smul.u32 %s181, 2
    %s186 = smul.u32 %s185, 8
    %s187 = sadd.s32 %s186, %s184
    %s188 = scalar_lea.vmem [#allocation6], %s187
    %v189 = vld [vmem:[%s188] ss:$8 sm:$0x3]
    %v191 = vlaneseq
    %v192 = vshrl.u32 %v191, 7
    %v193 = vsub.s32 0, %v192
    %v194 = vrot.slane %v179, %v193
    %v195 = vlaneseq
    %v196 = vshrl.u32 %v195, 7
    %v197 = vsub.s32 1, %v196
    %v198 = vrot.slane %v179, %v197
    %v202 = vlaneseq
    %v203 = vshrl.u32 %v202, 7
    %v204 = vsub.s32 0, %v203
    %v205 = vrot.slane %v189, %v204
    %v206 = vlaneseq
    %v207 = vshrl.u32 %v206, 7
    %v208 = vsub.s32 1, %v207
    %v209 = vrot.slane %v189, %v208
    %v212 = vsel %vm167, %v194, %v205
    %v213 = vsel %vm167, %v198, %v209
    %s214 = sld [smem:[#allocation2 + $0x4]]
    %s215 = sshra.s32 %s214, 3
    %s216 = sand.u32 %s214, 7
    %s217 = sshra.s32 %s214, 3
    %s218 = sand.u32 %s214, 7
    %s219 = smul.u32 %s215, 2
    %s220 = smul.u32 %s219, 8
    %s221 = sadd.s32 %s220, %s218
    %s222 = scalar_lea.vmem [#allocation6], %s221
    %v223 = vld [vmem:[%s222] ss:$8 sm:$0x3]
    %s224 = sld [smem:[#allocation2 + $0x5]]
    %s225 = sshra.s32 %s224, 3
    %s226 = sand.u32 %s224, 7
    %s227 = sshra.s32 %s224, 3
    %s228 = sand.u32 %s224, 7
    %s229 = smul.u32 %s225, 2
    %s230 = smul.u32 %s229, 8
    %s231 = sadd.s32 %s230, %s228
    %s232 = scalar_lea.vmem [#allocation6], %s231
    %v233 = vld [vmem:[%s232] ss:$8 sm:$0x3]
    %v235 = vlaneseq
    %v236 = vshrl.u32 %v235, 7
    %v237 = vsub.s32 0, %v236
    %v238 = vrot.slane %v223, %v237
    %v239 = vlaneseq
    %v240 = vshrl.u32 %v239, 7
    %v241 = vsub.s32 1, %v240
    %v242 = vrot.slane %v223, %v241
    %v246 = vlaneseq
    %v247 = vshrl.u32 %v246, 7
    %v248 = vsub.s32 0, %v247
    %v249 = vrot.slane %v233, %v248
    %v250 = vlaneseq
    %v251 = vshrl.u32 %v250, 7
    %v252 = vsub.s32 1, %v251
    %v253 = vrot.slane %v233, %v252
    %v256 = vsel %vm167, %v238, %v249
    %v257 = vsel %vm167, %v242, %v253
    %s258 = sld [smem:[#allocation2 + $0x6]]
    %s259 = sshra.s32 %s258, 3
    %s260 = sand.u32 %s258, 7
    %s261 = sshra.s32 %s258, 3
    %s262 = sand.u32 %s258, 7
    %s263 = smul.u32 %s259, 2
    %s264 = smul.u32 %s263, 8
    %s265 = sadd.s32 %s264, %s262
    %s266 = scalar_lea.vmem [#allocation6], %s265
    %v267 = vld [vmem:[%s266] ss:$8 sm:$0x3]
    %s268 = sld [smem:[#allocation2 + $0x7]]
    %s269 = sshra.s32 %s268, 3
    %s270 = sand.u32 %s268, 7
    %s271 = sshra.s32 %s268, 3
    %s272 = sand.u32 %s268, 7
    %s273 = smul.u32 %s269, 2
    %s274 = smul.u32 %s273, 8
    %s275 = sadd.s32 %s274, %s272
    %s276 = scalar_lea.vmem [#allocation6], %s275
    %v277 = vld [vmem:[%s276] ss:$8 sm:$0x3]
    %v279 = vlaneseq
    %v280 = vshrl.u32 %v279, 7
    %v281 = vsub.s32 0, %v280
    %v282 = vrot.slane %v267, %v281
    %v283 = vlaneseq
    %v284 = vshrl.u32 %v283, 7
    %v285 = vsub.s32 1, %v284
    %v286 = vrot.slane %v267, %v285
    %v290 = vlaneseq
    %v291 = vshrl.u32 %v290, 7
    %v292 = vsub.s32 0, %v291
    %v293 = vrot.slane %v277, %v292
    %v294 = vlaneseq
    %v295 = vshrl.u32 %v294, 7
    %v296 = vsub.s32 1, %v295
    %v297 = vrot.slane %v277, %v296
    %v300 = vsel %vm167, %v282, %v293
    %v301 = vsel %vm167, %v286, %v297
    %s302 = sld [smem:[#allocation2 + $0x8]]
    %s303 = sshra.s32 %s302, 3
    %s304 = sand.u32 %s302, 7
    %s305 = sshra.s32 %s302, 3
    %s306 = sand.u32 %s302, 7
    %s307 = smul.u32 %s303, 2
    %s308 = smul.u32 %s307, 8
    %s309 = sadd.s32 %s308, %s306
    %s310 = scalar_lea.vmem [#allocation6], %s309
    %v311 = vld [vmem:[%s310] ss:$8 sm:$0x3]
    %s312 = sld [smem:[#allocation2 + $0x9]]
    %s313 = sshra.s32 %s312, 3
    %s314 = sand.u32 %s312, 7
    %s315 = sshra.s32 %s312, 3
    %s316 = sand.u32 %s312, 7
    %s317 = smul.u32 %s313, 2
    %s318 = smul.u32 %s317, 8
    %s319 = sadd.s32 %s318, %s316
    %s320 = scalar_lea.vmem [#allocation6], %s319
    %v321 = vld [vmem:[%s320] ss:$8 sm:$0x3]
    %v323 = vlaneseq
    %v324 = vshrl.u32 %v323, 7
    %v325 = vsub.s32 0, %v324
    %v326 = vrot.slane %v311, %v325
    %v327 = vlaneseq
    %v328 = vshrl.u32 %v327, 7
    %v329 = vsub.s32 1, %v328
    %v330 = vrot.slane %v311, %v329
    %v334 = vlaneseq
    %v335 = vshrl.u32 %v334, 7
    %v336 = vsub.s32 0, %v335
    %v337 = vrot.slane %v321, %v336
    %v338 = vlaneseq
    %v339 = vshrl.u32 %v338, 7
    %v340 = vsub.s32 1, %v339
    %v341 = vrot.slane %v321, %v340
    %v344 = vsel %vm167, %v326, %v337
    %v345 = vsel %vm167, %v330, %v341
    %s346 = sld [smem:[#allocation2 + $0xa]]
    %s347 = sshra.s32 %s346, 3
    %s348 = sand.u32 %s346, 7
    %s349 = sshra.s32 %s346, 3
    %s350 = sand.u32 %s346, 7
    %s351 = smul.u32 %s347, 2
    %s352 = smul.u32 %s351, 8
    %s353 = sadd.s32 %s352, %s350
    %s354 = scalar_lea.vmem [#allocation6], %s353
    %v355 = vld [vmem:[%s354] ss:$8 sm:$0x3]
    %s356 = sld [smem:[#allocation2 + $0xb]]
    %s357 = sshra.s32 %s356, 3
    %s358 = sand.u32 %s356, 7
    %s359 = sshra.s32 %s356, 3
    %s360 = sand.u32 %s356, 7
    %s361 = smul.u32 %s357, 2
    %s362 = smul.u32 %s361, 8
    %s363 = sadd.s32 %s362, %s360
    %s364 = scalar_lea.vmem [#allocation6], %s363
    %v365 = vld [vmem:[%s364] ss:$8 sm:$0x3]
    %v367 = vlaneseq
    %v368 = vshrl.u32 %v367, 7
    %v369 = vsub.s32 0, %v368
    %v370 = vrot.slane %v355, %v369
    %v371 = vlaneseq
    %v372 = vshrl.u32 %v371, 7
    %v373 = vsub.s32 1, %v372
    %v374 = vrot.slane %v355, %v373
    %v378 = vlaneseq
    %v379 = vshrl.u32 %v378, 7
    %v380 = vsub.s32 0, %v379
    %v381 = vrot.slane %v365, %v380
    %v382 = vlaneseq
    %v383 = vshrl.u32 %v382, 7
    %v384 = vsub.s32 1, %v383
    %v385 = vrot.slane %v365, %v384
    %v388 = vsel %vm167, %v370, %v381
    %v389 = vsel %vm167, %v374, %v385
    %s390 = sld [smem:[#allocation2 + $0xc]]
    %s391 = sshra.s32 %s390, 3
    %s392 = sand.u32 %s390, 7
    %s393 = sshra.s32 %s390, 3
    %s394 = sand.u32 %s390, 7
    %s395 = smul.u32 %s391, 2
    %s396 = smul.u32 %s395, 8
    %s397 = sadd.s32 %s396, %s394
    %s398 = scalar_lea.vmem [#allocation6], %s397
    %v399 = vld [vmem:[%s398] ss:$8 sm:$0x3]
    %s400 = sld [smem:[#allocation2 + $0xd]]
    %s401 = sshra.s32 %s400, 3
    %s402 = sand.u32 %s400, 7
    %s403 = sshra.s32 %s400, 3
    %s404 = sand.u32 %s400, 7
    %s405 = smul.u32 %s401, 2
    %s406 = smul.u32 %s405, 8
    %s407 = sadd.s32 %s406, %s404
    %s408 = scalar_lea.vmem [#allocation6], %s407
    %v409 = vld [vmem:[%s408] ss:$8 sm:$0x3]
    %v411 = vlaneseq
    %v412 = vshrl.u32 %v411, 7
    %v413 = vsub.s32 0, %v412
    %v414 = vrot.slane %v399, %v413
    %v415 = vlaneseq
    %v416 = vshrl.u32 %v415, 7
    %v417 = vsub.s32 1, %v416
    %v418 = vrot.slane %v399, %v417
    %v422 = vlaneseq
    %v423 = vshrl.u32 %v422, 7
    %v424 = vsub.s32 0, %v423
    %v425 = vrot.slane %v409, %v424
    %v426 = vlaneseq
    %v427 = vshrl.u32 %v426, 7
    %v428 = vsub.s32 1, %v427
    %v429 = vrot.slane %v409, %v428
    %v432 = vsel %vm167, %v414, %v425
    %v433 = vsel %vm167, %v418, %v429
    %s434 = sld [smem:[#allocation2 + $0xe]]
    %s435 = sshra.s32 %s434, 3
    %s436 = sand.u32 %s434, 7
    %s437 = sshra.s32 %s434, 3
    %s438 = sand.u32 %s434, 7
    %s439 = smul.u32 %s435, 2
    %s440 = smul.u32 %s439, 8
    %s441 = sadd.s32 %s440, %s438
    %s442 = scalar_lea.vmem [#allocation6], %s441
    %v443 = vld [vmem:[%s442] ss:$8 sm:$0x3]
    %s444 = sld [smem:[#allocation2 + $0xf]]
    %s445 = sshra.s32 %s444, 3
    %s446 = sand.u32 %s444, 7
    %s447 = sshra.s32 %s444, 3
    %s448 = sand.u32 %s444, 7
    %s449 = smul.u32 %s445, 2
    %s450 = smul.u32 %s449, 8
    %s451 = sadd.s32 %s450, %s448
    %s452 = scalar_lea.vmem [#allocation6], %s451
    %v453 = vld [vmem:[%s452] ss:$8 sm:$0x3]
    %v455 = vlaneseq
    %v456 = vshrl.u32 %v455, 7
    %v457 = vsub.s32 0, %v456
    %v458 = vrot.slane %v443, %v457
    %v459 = vlaneseq
    %v460 = vshrl.u32 %v459, 7
    %v461 = vsub.s32 1, %v460
    %v462 = vrot.slane %v443, %v461
    %v466 = vlaneseq
    %v467 = vshrl.u32 %v466, 7
    %v468 = vsub.s32 0, %v467
    %v469 = vrot.slane %v453, %v468
    %v470 = vlaneseq
    %v471 = vshrl.u32 %v470, 7
    %v472 = vsub.s32 1, %v471
    %v473 = vrot.slane %v453, %v472
    %v476 = vsel %vm167, %v458, %v469
    %v477 = vsel %vm167, %v462, %v473
    %v478 = vld [vmem:[#allocation7] sm:$0xff]
    %v479 = vld [vmem:[#allocation7 + $0x8] sm:$0xff]
    %v480 = vld [vmem:[#allocation7 + $0x10] sm:$0xff]
    %v481 = vld [vmem:[#allocation7 + $0x18] sm:$0xff]
    %v482 = vld [vmem:[#allocation7 + $0x20] sm:$0xff]
    %v483 = vld [vmem:[#allocation7 + $0x28] sm:$0xff]
    %v484 = vld [vmem:[#allocation7 + $0x30] sm:$0xff]
    %v485 = vld [vmem:[#allocation7 + $0x38] sm:$0xff]
    %v486 = vld [vmem:[#allocation7 + $0x40] sm:$0xff]
    %v487 = vld [vmem:[#allocation7 + $0x48] sm:$0xff]
    %v488 = vld [vmem:[#allocation7 + $0x50] sm:$0xff]
    %v489 = vld [vmem:[#allocation7 + $0x58] sm:$0xff]
    %v490 = vld [vmem:[#allocation7 + $0x60] sm:$0xff]
    %v491 = vld [vmem:[#allocation7 + $0x68] sm:$0xff]
    %v492 = vld [vmem:[#allocation7 + $0x70] sm:$0xff]
    %v493 = vld [vmem:[#allocation7 + $0x78] sm:$0xff]
    %v494 = vsel %vm116, %v168, %v476
    %v495 = vsel %vm117, %v169, %v477
    %vm496 = vcmask 523264
    %v498 = vsel %vm496, 0.0, 0
    %500 = vmatprep.subr.mxu0 %v479
    %501 = vmatpush1.msra.mxu0 %v478
    %502 = vmatprep.subr.mxu0 %v481
    %503 = vmatpush1.msra.mxu0 %v480
    %504 = vmatprep.subr.mxu0 %v483
    %505 = vmatpush1.msra.mxu0 %v482
    %506 = vmatprep.subr.mxu0 %v485
    %507 = vmatpush1.msra.mxu0 %v484
    %508 = vmatprep.subr.mxu0 %v487
    %509 = vmatpush1.msra.mxu0 %v486
    %510 = vmatprep.subr.mxu0 %v489
    %511 = vmatpush1.msra.mxu0 %v488
    %512 = vmatprep.subr.mxu0 %v491
    %513 = vmatpush1.msra.mxu0 %v490
    %514 = vmatprep.subr.mxu0 %v493
    %515 = vmatpush1.msra.mxu0 %v492
    %516 = vmatprep.subr.mxu0 0.0
    %517 = vmatpush1.msra.mxu0 0.0
    %518 = vmatprep.subr.mxu0 0.0
    %519 = vmatpush1.msra.mxu0 0.0
    %520 = vmatprep.subr.mxu0 0.0
    %521 = vmatpush1.msra.mxu0 0.0
    %522 = vmatprep.subr.mxu0 0.0
    %523 = vmatpush1.msra.mxu0 0.0
    %524 = vmatprep.subr.mxu0 0.0
    %525 = vmatpush1.msra.mxu0 0.0
    %526 = vmatprep.subr.mxu0 0.0
    %527 = vmatpush1.msra.mxu0 0.0
    %528 = vmatprep.subr.mxu0 0.0
    %529 = vmatpush1.msra.mxu0 0.0
    %530 = vmatprep.subr.mxu0 0.0
    %531 = vmatpush1.msra.mxu0 0.0
    %532 = vmatprep.subr.mxu0 0.0
    %533 = vmatpush1.msra.mxu0 0.0
    %534 = vmatprep.subr.mxu0 0.0
    %535 = vmatpush1.msra.mxu0 0.0
    %536 = vmatprep.subr.mxu0 0.0
    %537 = vmatpush1.msra.mxu0 0.0
    %538 = vmatprep.subr.mxu0 0.0
    %539 = vmatpush1.msra.mxu0 0.0
    %540 = vmatprep.subr.mxu0 0.0
    %541 = vmatpush1.msra.mxu0 0.0
    %542 = vmatprep.subr.mxu0 0.0
    %543 = vmatpush1.msra.mxu0 0.0
    %544 = vmatprep.subr.mxu0 0.0
    %545 = vmatpush1.msra.mxu0 0.0
    %546 = vmatprep.subr.mxu0 0.0
    %547 = vmatpush1.msra.mxu0 0.0
    %548 = vmatprep.subr.mxu0 0.0
    %549 = vmatpush1.msra.mxu0 0.0
    %550 = vmatprep.subr.mxu0 0.0
    %551 = vmatpush1.msra.mxu0 0.0
    %552 = vmatprep.subr.mxu0 0.0
    %553 = vmatpush1.msra.mxu0 0.0
    %554 = vmatprep.subr.mxu0 0.0
    %555 = vmatpush1.msra.mxu0 0.0
    %556 = vmatprep.subr.mxu0 0.0
    %557 = vmatpush1.msra.mxu0 0.0
    %558 = vmatprep.subr.mxu0 0.0
    %559 = vmatpush1.msra.mxu0 0.0
    %560 = vmatprep.subr.mxu0 0.0
    %561 = vmatpush1.msra.mxu0 0.0
    %562 = vmatprep.subr.mxu0 0.0
    %563 = vmatpush1.msra.mxu0 0.0
    %564 = vmatprep.mubr.f32.mxu0 0.0
    %565 = vmatmul.mubr.f32.gmra.mrb[0].mxu0 %v498
    %v566 = vpop.f32.mrb[0].mxu0
    %v567 = vadd.f32 0.0, %v566
    %v568 = vpop.f32.mrb[0].mxu0
    %v569 = vadd.f32 0.0, %v568
    %570 = vdwg.mxu0
    %v571 = vadd.f32 %v494, %v567
    %v572 = vadd.f32 %v495, %v569
    %v573 = vtanh.pop %v571
    %v574 = vtanh.pop %v572
    %v575 = vxor.u32 %v571, 2147483648
    %v576 = vxor.u32 %v572, 2147483648
    %v577 = vmul.f32 %v575, 1.442695
    %v578 = vpow.pop %v577
    %v579 = vmul.f32 %v576, 1.442695
    %v580 = vpow.pop %v579
    %v581 = vadd.f32 %v578, 1.0
    %v582 = vadd.f32 %v580, 1.0
    %v583 = vrcp.pop %v581
    %v584 = vmul.f32 1.0, %v583
    %v585 = vrcp.pop %v582
    %v586 = vmul.f32 1.0, %v585
    %v587 = vsel %vm122, %v573, %v584
    %v588 = vsel %vm123, %v574, %v586
    %v589 = vmul.f32 %v587, 0.0
    %v590 = vmul.f32 %v587, %v588
    %592 = vrot.lane.b32.xlu0 %v590, 64
    %v593 = vpop.permute.xlu0 %592
    %v595 = vadd.f32 %v589, %v593
    %v596 = vtanh.pop %v595
    %v597 = vmul.f32 %v588, %v596
    %v598 = vsel %vm116, %v212, %v432
    %v599 = vsel %vm117, %v213, %v433
    %601 = vrot.lane.b32.xlu0 %v597, 64
    %v602 = vpop.permute.xlu0 %601
    %v603 = vsel %vm496, %v602, 0
    %605 = vmatprep.subr.mxu0 %v479
    %606 = vmatpush1.msra.mxu0 %v478
    %607 = vmatprep.subr.mxu0 %v481
    %608 = vmatpush1.msra.mxu0 %v480
    %609 = vmatprep.subr.mxu0 %v483
    %610 = vmatpush1.msra.mxu0 %v482
    %611 = vmatprep.subr.mxu0 %v485
    %612 = vmatpush1.msra.mxu0 %v484
    %613 = vmatprep.subr.mxu0 %v487
    %614 = vmatpush1.msra.mxu0 %v486
    %615 = vmatprep.subr.mxu0 %v489
    %616 = vmatpush1.msra.mxu0 %v488
    %617 = vmatprep.subr.mxu0 %v491
    %618 = vmatpush1.msra.mxu0 %v490
    %619 = vmatprep.subr.mxu0 %v493
    %620 = vmatpush1.msra.mxu0 %v492
    %621 = vmatprep.subr.mxu0 0.0
    %622 = vmatpush1.msra.mxu0 0.0
    %623 = vmatprep.subr.mxu0 0.0
    %624 = vmatpush1.msra.mxu0 0.0
    %625 = vmatprep.subr.mxu0 0.0
    %626 = vmatpush1.msra.mxu0 0.0
    %627 = vmatprep.subr.mxu0 0.0
    %628 = vmatpush1.msra.mxu0 0.0
    %629 = vmatprep.subr.mxu0 0.0
    %630 = vmatpush1.msra.mxu0 0.0
    %631 = vmatprep.subr.mxu0 0.0
    %632 = vmatpush1.msra.mxu0 0.0
    %633 = vmatprep.subr.mxu0 0.0
    %634 = vmatpush1.msra.mxu0 0.0
    %635 = vmatprep.subr.mxu0 0.0
    %636 = vmatpush1.msra.mxu0 0.0
    %637 = vmatprep.subr.mxu0 0.0
    %638 = vmatpush1.msra.mxu0 0.0
    %639 = vmatprep.subr.mxu0 0.0
    %640 = vmatpush1.msra.mxu0 0.0
    %641 = vmatprep.subr.mxu0 0.0
    %642 = vmatpush1.msra.mxu0 0.0
    %643 = vmatprep.subr.mxu0 0.0
    %644 = vmatpush1.msra.mxu0 0.0
    %645 = vmatprep.subr.mxu0 0.0
    %646 = vmatpush1.msra.mxu0 0.0
    %647 = vmatprep.subr.mxu0 0.0
    %648 = vmatpush1.msra.mxu0 0.0
    %649 = vmatprep.subr.mxu0 0.0
    %650 = vmatpush1.msra.mxu0 0.0
    %651 = vmatprep.subr.mxu0 0.0
    %652 = vmatpush1.msra.mxu0 0.0
    %653 = vmatprep.subr.mxu0 0.0
    %654 = vmatpush1.msra.mxu0 0.0
    %655 = vmatprep.subr.mxu0 0.0
    %656 = vmatpush1.msra.mxu0 0.0
    %657 = vmatprep.subr.mxu0 0.0
    %658 = vmatpush1.msra.mxu0 0.0
    %659 = vmatprep.subr.mxu0 0.0
    %660 = vmatpush1.msra.mxu0 0.0
    %661 = vmatprep.subr.mxu0 0.0
    %662 = vmatpush1.msra.mxu0 0.0
    %663 = vmatprep.subr.mxu0 0.0
    %664 = vmatpush1.msra.mxu0 0.0
    %665 = vmatprep.subr.mxu0 0.0
    %666 = vmatpush1.msra.mxu0 0.0
    %667 = vmatprep.subr.mxu0 0.0
    %668 = vmatpush1.msra.mxu0 0.0
    %669 = vmatprep.mubr.f32.mxu0 0.0
    %670 = vmatmul.mubr.f32.gmra.mrb[0].mxu0 %v603
    %v671 = vpop.f32.mrb[0].mxu0
    %v672 = vadd.f32 0.0, %v671
    %v673 = vpop.f32.mrb[0].mxu0
    %v674 = vadd.f32 0.0, %v673
    %675 = vdwg.mxu0
    %v676 = vadd.f32 %v598, %v672
    %v677 = vadd.f32 %v599, %v674
    %v678 = vtanh.pop %v676
    %v679 = vtanh.pop %v677
    %v680 = vxor.u32 %v676, 2147483648
    %v681 = vxor.u32 %v677, 2147483648
    %v682 = vmul.f32 %v680, 1.442695
    %v683 = vpow.pop %v682
    %v684 = vmul.f32 %v681, 1.442695
    %v685 = vpow.pop %v684
    %v686 = vadd.f32 %v683, 1.0
    %v687 = vadd.f32 %v685, 1.0
    %v688 = vrcp.pop %v686
    %v689 = vmul.f32 1.0, %v688
    %v690 = vrcp.pop %v687
    %v691 = vmul.f32 1.0, %v690
    %v692 = vsel %vm122, %v678, %v689
    %v693 = vsel %vm123, %v679, %v691
    %v694 = vmul.f32 %v692, %v595
    %v695 = vmul.f32 %v692, %v693
    %697 = vrot.lane.b32.xlu0 %v695, 64
    %v698 = vpop.permute.xlu0 %697
    %v700 = vadd.f32 %v694, %v698
    %v701 = vtanh.pop %v700
    %v702 = vmul.f32 %v693, %v701
    %v703 = vsel %vm116, %v256, %v388
    %v704 = vsel %vm117, %v257, %v389
    %706 = vrot.lane.b32.xlu0 %v702, 64
    %v707 = vpop.permute.xlu0 %706
    %v708 = vsel %vm496, %v707, 0
    %710 = vmatprep.subr.mxu0 %v479
    %711 = vmatpush1.msra.mxu0 %v478
    %712 = vmatprep.subr.mxu0 %v481
    %713 = vmatpush1.msra.mxu0 %v480
    %714 = vmatprep.subr.mxu0 %v483
    %715 = vmatpush1.msra.mxu0 %v482
    %716 = vmatprep.subr.mxu0 %v485
    %717 = vmatpush1.msra.mxu0 %v484
    %718 = vmatprep.subr.mxu0 %v487
    %719 = vmatpush1.msra.mxu0 %v486
    %720 = vmatprep.subr.mxu0 %v489
    %721 = vmatpush1.msra.mxu0 %v488
    %722 = vmatprep.subr.mxu0 %v491
    %723 = vmatpush1.msra.mxu0 %v490
    %724 = vmatprep.subr.mxu0 %v493
    %725 = vmatpush1.msra.mxu0 %v492
    %726 = vmatprep.subr.mxu0 0.0
    %727 = vmatpush1.msra.mxu0 0.0
    %728 = vmatprep.subr.mxu0 0.0
    %729 = vmatpush1.msra.mxu0 0.0
    %730 = vmatprep.subr.mxu0 0.0
    %731 = vmatpush1.msra.mxu0 0.0
    %732 = vmatprep.subr.mxu0 0.0
    %733 = vmatpush1.msra.mxu0 0.0
    %734 = vmatprep.subr.mxu0 0.0
    %735 = vmatpush1.msra.mxu0 0.0
    %736 = vmatprep.subr.mxu0 0.0
    %737 = vmatpush1.msra.mxu0 0.0
    %738 = vmatprep.subr.mxu0 0.0
    %739 = vmatpush1.msra.mxu0 0.0
    %740 = vmatprep.subr.mxu0 0.0
    %741 = vmatpush1.msra.mxu0 0.0
    %742 = vmatprep.subr.mxu0 0.0
    %743 = vmatpush1.msra.mxu0 0.0
    %744 = vmatprep.subr.mxu0 0.0
    %745 = vmatpush1.msra.mxu0 0.0
    %746 = vmatprep.subr.mxu0 0.0
    %747 = vmatpush1.msra.mxu0 0.0
    %748 = vmatprep.subr.mxu0 0.0
    %749 = vmatpush1.msra.mxu0 0.0
    %750 = vmatprep.subr.mxu0 0.0
    %751 = vmatpush1.msra.mxu0 0.0
    %752 = vmatprep.subr.mxu0 0.0
    %753 = vmatpush1.msra.mxu0 0.0
    %754 = vmatprep.subr.mxu0 0.0
    %755 = vmatpush1.msra.mxu0 0.0
    %756 = vmatprep.subr.mxu0 0.0
    %757 = vmatpush1.msra.mxu0 0.0
    %758 = vmatprep.subr.mxu0 0.0
    %759 = vmatpush1.msra.mxu0 0.0
    %760 = vmatprep.subr.mxu0 0.0
    %761 = vmatpush1.msra.mxu0 0.0
    %762 = vmatprep.subr.mxu0 0.0
    %763 = vmatpush1.msra.mxu0 0.0
    %764 = vmatprep.subr.mxu0 0.0
    %765 = vmatpush1.msra.mxu0 0.0
    %766 = vmatprep.subr.mxu0 0.0
    %767 = vmatpush1.msra.mxu0 0.0
    %768 = vmatprep.subr.mxu0 0.0
    %769 = vmatpush1.msra.mxu0 0.0
    %770 = vmatprep.subr.mxu0 0.0
    %771 = vmatpush1.msra.mxu0 0.0
    %772 = vmatprep.subr.mxu0 0.0
    %773 = vmatpush1.msra.mxu0 0.0
    %774 = vmatprep.mubr.f32.mxu0 0.0
    %775 = vmatmul.mubr.f32.gmra.mrb[0].mxu0 %v708
    %v776 = vpop.f32.mrb[0].mxu0
    %v777 = vadd.f32 0.0, %v776
    %v778 = vpop.f32.mrb[0].mxu0
    %v779 = vadd.f32 0.0, %v778
    %780 = vdwg.mxu0
    %v781 = vadd.f32 %v703, %v777
    %v782 = vadd.f32 %v704, %v779
    %v783 = vtanh.pop %v781
    %v784 = vtanh.pop %v782
    %v785 = vxor.u32 %v781, 2147483648
    %v786 = vxor.u32 %v782, 2147483648
    %v787 = vmul.f32 %v785, 1.442695
    %v788 = vpow.pop %v787
    %v789 = vmul.f32 %v786, 1.442695
    %v790 = vpow.pop %v789
    %v791 = vadd.f32 %v788, 1.0
    %v792 = vadd.f32 %v790, 1.0
    %v793 = vrcp.pop %v791
    %v794 = vmul.f32 1.0, %v793
    %v795 = vrcp.pop %v792
    %v796 = vmul.f32 1.0, %v795
    %v797 = vsel %vm122, %v783, %v794
    %v798 = vsel %vm123, %v784, %v796
    %v799 = vmul.f32 %v797, %v700
    %v800 = vmul.f32 %v797, %v798
    %802 = vrot.lane.b32.xlu0 %v800, 64
    %v803 = vpop.permute.xlu0 %802
    %v805 = vadd.f32 %v799, %v803
    %v806 = vtanh.pop %v805
    %v807 = vmul.f32 %v798, %v806
    %v808 = vsel %vm116, %v300, %v344
    %v809 = vsel %vm117, %v301, %v345
    %811 = vrot.lane.b32.xlu0 %v807, 64
    %v812 = vpop.permute.xlu0 %811
    %v813 = vsel %vm496, %v812, 0
    %815 = vmatprep.subr.mxu0 %v479
    %816 = vmatpush1.msra.mxu0 %v478
    %817 = vmatprep.subr.mxu0 %v481
    %818 = vmatpush1.msra.mxu0 %v480
    %819 = vmatprep.subr.mxu0 %v483
    %820 = vmatpush1.msra.mxu0 %v482
    %821 = vmatprep.subr.mxu0 %v485
    %822 = vmatpush1.msra.mxu0 %v484
    %823 = vmatprep.subr.mxu0 %v487
    %824 = vmatpush1.msra.mxu0 %v486
    %825 = vmatprep.subr.mxu0 %v489
    %826 = vmatpush1.msra.mxu0 %v488
    %827 = vmatprep.subr.mxu0 %v491
    %828 = vmatpush1.msra.mxu0 %v490
    %829 = vmatprep.subr.mxu0 %v493
    %830 = vmatpush1.msra.mxu0 %v492
    %831 = vmatprep.subr.mxu0 0.0
    %832 = vmatpush1.msra.mxu0 0.0
    %833 = vmatprep.subr.mxu0 0.0
    %834 = vmatpush1.msra.mxu0 0.0
    %835 = vmatprep.subr.mxu0 0.0
    %836 = vmatpush1.msra.mxu0 0.0
    %837 = vmatprep.subr.mxu0 0.0
    %838 = vmatpush1.msra.mxu0 0.0
    %839 = vmatprep.subr.mxu0 0.0
    %840 = vmatpush1.msra.mxu0 0.0
    %841 = vmatprep.subr.mxu0 0.0
    %842 = vmatpush1.msra.mxu0 0.0
    %843 = vmatprep.subr.mxu0 0.0
    %844 = vmatpush1.msra.mxu0 0.0
    %845 = vmatprep.subr.mxu0 0.0
    %846 = vmatpush1.msra.mxu0 0.0
    %847 = vmatprep.subr.mxu0 0.0
    %848 = vmatpush1.msra.mxu0 0.0
    %849 = vmatprep.subr.mxu0 0.0
    %850 = vmatpush1.msra.mxu0 0.0
    %851 = vmatprep.subr.mxu0 0.0
    %852 = vmatpush1.msra.mxu0 0.0
    %853 = vmatprep.subr.mxu0 0.0
    %854 = vmatpush1.msra.mxu0 0.0
    %855 = vmatprep.subr.mxu0 0.0
    %856 = vmatpush1.msra.mxu0 0.0
    %857 = vmatprep.subr.mxu0 0.0
    %858 = vmatpush1.msra.mxu0 0.0
    %859 = vmatprep.subr.mxu0 0.0
    %860 = vmatpush1.msra.mxu0 0.0
    %861 = vmatprep.subr.mxu0 0.0
    %862 = vmatpush1.msra.mxu0 0.0
    %863 = vmatprep.subr.mxu0 0.0
    %864 = vmatpush1.msra.mxu0 0.0
    %865 = vmatprep.subr.mxu0 0.0
    %866 = vmatpush1.msra.mxu0 0.0
    %867 = vmatprep.subr.mxu0 0.0
    %868 = vmatpush1.msra.mxu0 0.0
    %869 = vmatprep.subr.mxu0 0.0
    %870 = vmatpush1.msra.mxu0 0.0
    %871 = vmatprep.subr.mxu0 0.0
    %872 = vmatpush1.msra.mxu0 0.0
    %873 = vmatprep.subr.mxu0 0.0
    %874 = vmatpush1.msra.mxu0 0.0
    %875 = vmatprep.subr.mxu0 0.0
    %876 = vmatpush1.msra.mxu0 0.0
    %877 = vmatprep.subr.mxu0 0.0
    %878 = vmatpush1.msra.mxu0 0.0
    %879 = vmatprep.mubr.f32.mxu0 0.0
    %880 = vmatmul.mubr.f32.gmra.mrb[0].mxu0 %v813
    %v881 = vpop.f32.mrb[0].mxu0
    %v882 = vadd.f32 0.0, %v881
    %v883 = vpop.f32.mrb[0].mxu0
    %v884 = vadd.f32 0.0, %v883
    %885 = vdwg.mxu0
    %v886 = vadd.f32 %v808, %v882
    %v887 = vadd.f32 %v809, %v884
    %v888 = vtanh.pop %v886
    %v889 = vtanh.pop %v887
    %v890 = vxor.u32 %v886, 2147483648
    %v891 = vxor.u32 %v887, 2147483648
    %v892 = vmul.f32 %v890, 1.442695
    %v893 = vpow.pop %v892
    %v894 = vmul.f32 %v891, 1.442695
    %v895 = vpow.pop %v894
    %v896 = vadd.f32 %v893, 1.0
    %v897 = vadd.f32 %v895, 1.0
    %v898 = vrcp.pop %v896
    %v899 = vmul.f32 1.0, %v898
    %v900 = vrcp.pop %v897
    %v901 = vmul.f32 1.0, %v900
    %v902 = vsel %vm122, %v888, %v899
    %v903 = vsel %vm123, %v889, %v901
    %v904 = vmul.f32 %v902, %v805
    %v905 = vmul.f32 %v902, %v903
    %907 = vrot.lane.b32.xlu0 %v905, 64
    %v908 = vpop.permute.xlu0 %907
    %v910 = vadd.f32 %v904, %v908
    %v911 = vtanh.pop %v910
    %v912 = vmul.f32 %v903, %v911
    %v913 = vsel %vm116, %v344, %v300
    %v914 = vsel %vm117, %v345, %v301
    %916 = vrot.lane.b32.xlu0 %v912, 64
    %v917 = vpop.permute.xlu0 %916
    %v918 = vsel %vm496, %v917, 0
    %920 = vmatprep.subr.mxu0 %v479
    %921 = vmatpush1.msra.mxu0 %v478
    %922 = vmatprep.subr.mxu0 %v481
    %923 = vmatpush1.msra.mxu0 %v480
    %924 = vmatprep.subr.mxu0 %v483
    %925 = vmatpush1.msra.mxu0 %v482
    %926 = vmatprep.subr.mxu0 %v485
    %927 = vmatpush1.msra.mxu0 %v484
    %928 = vmatprep.subr.mxu0 %v487
    %929 = vmatpush1.msra.mxu0 %v486
    %930 = vmatprep.subr.mxu0 %v489
    %931 = vmatpush1.msra.mxu0 %v488
    %932 = vmatprep.subr.mxu0 %v491
    %933 = vmatpush1.msra.mxu0 %v490
    %934 = vmatprep.subr.mxu0 %v493
    %935 = vmatpush1.msra.mxu0 %v492
    %936 = vmatprep.subr.mxu0 0.0
    %937 = vmatpush1.msra.mxu0 0.0
    %938 = vmatprep.subr.mxu0 0.0
    %939 = vmatpush1.msra.mxu0 0.0
    %940 = vmatprep.subr.mxu0 0.0
    %941 = vmatpush1.msra.mxu0 0.0
    %942 = vmatprep.subr.mxu0 0.0
    %943 = vmatpush1.msra.mxu0 0.0
    %944 = vmatprep.subr.mxu0 0.0
    %945 = vmatpush1.msra.mxu0 0.0
    %946 = vmatprep.subr.mxu0 0.0
    %947 = vmatpush1.msra.mxu0 0.0
    %948 = vmatprep.subr.mxu0 0.0
    %949 = vmatpush1.msra.mxu0 0.0
    %950 = vmatprep.subr.mxu0 0.0
    %951 = vmatpush1.msra.mxu0 0.0
    %952 = vmatprep.subr.mxu0 0.0
    %953 = vmatpush1.msra.mxu0 0.0
    %954 = vmatprep.subr.mxu0 0.0
    %955 = vmatpush1.msra.mxu0 0.0
    %956 = vmatprep.subr.mxu0 0.0
    %957 = vmatpush1.msra.mxu0 0.0
    %958 = vmatprep.subr.mxu0 0.0
    %959 = vmatpush1.msra.mxu0 0.0
    %960 = vmatprep.subr.mxu0 0.0
    %961 = vmatpush1.msra.mxu0 0.0
    %962 = vmatprep.subr.mxu0 0.0
    %963 = vmatpush1.msra.mxu0 0.0
    %964 = vmatprep.subr.mxu0 0.0
    %965 = vmatpush1.msra.mxu0 0.0
    %966 = vmatprep.subr.mxu0 0.0
    %967 = vmatpush1.msra.mxu0 0.0
    %968 = vmatprep.subr.mxu0 0.0
    %969 = vmatpush1.msra.mxu0 0.0
    %970 = vmatprep.subr.mxu0 0.0
    %971 = vmatpush1.msra.mxu0 0.0
    %972 = vmatprep.subr.mxu0 0.0
    %973 = vmatpush1.msra.mxu0 0.0
    %974 = vmatprep.subr.mxu0 0.0
    %975 = vmatpush1.msra.mxu0 0.0
    %976 = vmatprep.subr.mxu0 0.0
    %977 = vmatpush1.msra.mxu0 0.0
    %978 = vmatprep.subr.mxu0 0.0
    %979 = vmatpush1.msra.mxu0 0.0
    %980 = vmatprep.subr.mxu0 0.0
    %981 = vmatpush1.msra.mxu0 0.0
    %982 = vmatprep.subr.mxu0 0.0
    %983 = vmatpush1.msra.mxu0 0.0
    %984 = vmatprep.mubr.f32.mxu0 0.0
    %985 = vmatmul.mubr.f32.gmra.mrb[0].mxu0 %v918
    %v986 = vpop.f32.mrb[0].mxu0
    %v987 = vadd.f32 0.0, %v986
    %v988 = vpop.f32.mrb[0].mxu0
    %v989 = vadd.f32 0.0, %v988
    %990 = vdwg.mxu0
    %v991 = vadd.f32 %v913, %v987
    %v992 = vadd.f32 %v914, %v989
    %v993 = vtanh.pop %v991
    %v994 = vtanh.pop %v992
    %v995 = vxor.u32 %v991, 2147483648
    %v996 = vxor.u32 %v992, 2147483648
    %v997 = vmul.f32 %v995, 1.442695
    %v998 = vpow.pop %v997
    %v999 = vmul.f32 %v996, 1.442695
    %v1000 = vpow.pop %v999
    %v1001 = vadd.f32 %v998, 1.0
    %v1002 = vadd.f32 %v1000, 1.0
    %v1003 = vrcp.pop %v1001
    %v1004 = vmul.f32 1.0, %v1003
    %v1005 = vrcp.pop %v1002
    %v1006 = vmul.f32 1.0, %v1005
    %v1007 = vsel %vm122, %v993, %v1004
    %v1008 = vsel %vm123, %v994, %v1006
    %v1009 = vmul.f32 %v1007, %v910
    %v1010 = vmul.f32 %v1007, %v1008
    %1012 = vrot.lane.b32.xlu0 %v1010, 64
    %v1013 = vpop.permute.xlu0 %1012
    %v1015 = vadd.f32 %v1009, %v1013
    %v1016 = vtanh.pop %v1015
    %v1017 = vmul.f32 %v1008, %v1016
    %v1018 = vsel %vm116, %v388, %v256
    %v1019 = vsel %vm117, %v389, %v257
    %1021 = vrot.lane.b32.xlu0 %v1017, 64
    %v1022 = vpop.permute.xlu0 %1021
    %v1023 = vsel %vm496, %v1022, 0
    %1025 = vmatprep.subr.mxu0 %v479
    %1026 = vmatpush1.msra.mxu0 %v478
    %1027 = vmatprep.subr.mxu0 %v481
    %1028 = vmatpush1.msra.mxu0 %v480
    %1029 = vmatprep.subr.mxu0 %v483
    %1030 = vmatpush1.msra.mxu0 %v482
    %1031 = vmatprep.subr.mxu0 %v485
    %1032 = vmatpush1.msra.mxu0 %v484
    %1033 = vmatprep.subr.mxu0 %v487
    %1034 = vmatpush1.msra.mxu0 %v486
    %1035 = vmatprep.subr.mxu0 %v489
    %1036 = vmatpush1.msra.mxu0 %v488
    %1037 = vmatprep.subr.mxu0 %v491
    %1038 = vmatpush1.msra.mxu0 %v490
    %1039 = vmatprep.subr.mxu0 %v493
    %1040 = vmatpush1.msra.mxu0 %v492
    %1041 = vmatprep.subr.mxu0 0.0
    %1042 = vmatpush1.msra.mxu0 0.0
    %1043 = vmatprep.subr.mxu0 0.0
    %1044 = vmatpush1.msra.mxu0 0.0
    %1045 = vmatprep.subr.mxu0 0.0
    %1046 = vmatpush1.msra.mxu0 0.0
    %1047 = vmatprep.subr.mxu0 0.0
    %1048 = vmatpush1.msra.mxu0 0.0
    %1049 = vmatprep.subr.mxu0 0.0
    %1050 = vmatpush1.msra.mxu0 0.0
    %1051 = vmatprep.subr.mxu0 0.0
    %1052 = vmatpush1.msra.mxu0 0.0
    %1053 = vmatprep.subr.mxu0 0.0
    %1054 = vmatpush1.msra.mxu0 0.0
    %1055 = vmatprep.subr.mxu0 0.0
    %1056 = vmatpush1.msra.mxu0 0.0
    %1057 = vmatprep.subr.mxu0 0.0
    %1058 = vmatpush1.msra.mxu0 0.0
    %1059 = vmatprep.subr.mxu0 0.0
    %1060 = vmatpush1.msra.mxu0 0.0
    %1061 = vmatprep.subr.mxu0 0.0
    %1062 = vmatpush1.msra.mxu0 0.0
    %1063 = vmatprep.subr.mxu0 0.0
    %1064 = vmatpush1.msra.mxu0 0.0
    %1065 = vmatprep.subr.mxu0 0.0
    %1066 = vmatpush1.msra.mxu0 0.0
    %1067 = vmatprep.subr.mxu0 0.0
    %1068 = vmatpush1.msra.mxu0 0.0
    %1069 = vmatprep.subr.mxu0 0.0
    %1070 = vmatpush1.msra.mxu0 0.0
    %1071 = vmatprep.subr.mxu0 0.0
    %1072 = vmatpush1.msra.mxu0 0.0
    %1073 = vmatprep.subr.mxu0 0.0
    %1074 = vmatpush1.msra.mxu0 0.0
    %1075 = vmatprep.subr.mxu0 0.0
    %1076 = vmatpush1.msra.mxu0 0.0
    %1077 = vmatprep.subr.mxu0 0.0
    %1078 = vmatpush1.msra.mxu0 0.0
    %1079 = vmatprep.subr.mxu0 0.0
    %1080 = vmatpush1.msra.mxu0 0.0
    %1081 = vmatprep.subr.mxu0 0.0
    %1082 = vmatpush1.msra.mxu0 0.0
    %1083 = vmatprep.subr.mxu0 0.0
    %1084 = vmatpush1.msra.mxu0 0.0
    %1085 = vmatprep.subr.mxu0 0.0
    %1086 = vmatpush1.msra.mxu0 0.0
    %1087 = vmatprep.subr.mxu0 0.0
    %1088 = vmatpush1.msra.mxu0 0.0
    %1089 = vmatprep.mubr.f32.mxu0 0.0
    %1090 = vmatmul.mubr.f32.gmra.mrb[0].mxu0 %v1023
    %v1091 = vpop.f32.mrb[0].mxu0
    %v1092 = vadd.f32 0.0, %v1091
    %v1093 = vpop.f32.mrb[0].mxu0
    %v1094 = vadd.f32 0.0, %v1093
    %1095 = vdwg.mxu0
    %v1096 = vadd.f32 %v1018, %v1092
    %v1097 = vadd.f32 %v1019, %v1094
    %v1098 = vtanh.pop %v1096
    %v1099 = vtanh.pop %v1097
    %v1100 = vxor.u32 %v1096, 2147483648
    %v1101 = vxor.u32 %v1097, 2147483648
    %v1102 = vmul.f32 %v1100, 1.442695
    %v1103 = vpow.pop %v1102
    %v1104 = vmul.f32 %v1101, 1.442695
    %v1105 = vpow.pop %v1104
    %v1106 = vadd.f32 %v1103, 1.0
    %v1107 = vadd.f32 %v1105, 1.0
    %v1108 = vrcp.pop %v1106
    %v1109 = vmul.f32 1.0, %v1108
    %v1110 = vrcp.pop %v1107
    %v1111 = vmul.f32 1.0, %v1110
    %v1112 = vsel %vm122, %v1098, %v1109
    %v1113 = vsel %vm123, %v1099, %v1111
    %v1114 = vmul.f32 %v1112, %v1015
    %v1115 = vmul.f32 %v1112, %v1113
    %1117 = vrot.lane.b32.xlu0 %v1115, 64
    %v1118 = vpop.permute.xlu0 %1117
    %v1120 = vadd.f32 %v1114, %v1118
    %v1121 = vtanh.pop %v1120
    %v1122 = vmul.f32 %v1113, %v1121
    %v1123 = vsel %vm116, %v432, %v212
    %v1124 = vsel %vm117, %v433, %v213
    %1126 = vrot.lane.b32.xlu0 %v1122, 64
    %v1127 = vpop.permute.xlu0 %1126
    %v1128 = vsel %vm496, %v1127, 0
    %1130 = vmatprep.subr.mxu0 %v479
    %1131 = vmatpush1.msra.mxu0 %v478
    %1132 = vmatprep.subr.mxu0 %v481
    %1133 = vmatpush1.msra.mxu0 %v480
    %1134 = vmatprep.subr.mxu0 %v483
    %1135 = vmatpush1.msra.mxu0 %v482
    %1136 = vmatprep.subr.mxu0 %v485
    %1137 = vmatpush1.msra.mxu0 %v484
    %1138 = vmatprep.subr.mxu0 %v487
    %1139 = vmatpush1.msra.mxu0 %v486
    %1140 = vmatprep.subr.mxu0 %v489
    %1141 = vmatpush1.msra.mxu0 %v488
    %1142 = vmatprep.subr.mxu0 %v491
    %1143 = vmatpush1.msra.mxu0 %v490
    %1144 = vmatprep.subr.mxu0 %v493
    %1145 = vmatpush1.msra.mxu0 %v492
    %1146 = vmatprep.subr.mxu0 0.0
    %1147 = vmatpush1.msra.mxu0 0.0
    %1148 = vmatprep.subr.mxu0 0.0
    %1149 = vmatpush1.msra.mxu0 0.0
    %1150 = vmatprep.subr.mxu0 0.0
    %1151 = vmatpush1.msra.mxu0 0.0
    %1152 = vmatprep.subr.mxu0 0.0
    %1153 = vmatpush1.msra.mxu0 0.0
    %1154 = vmatprep.subr.mxu0 0.0
    %1155 = vmatpush1.msra.mxu0 0.0
    %1156 = vmatprep.subr.mxu0 0.0
    %1157 = vmatpush1.msra.mxu0 0.0
    %1158 = vmatprep.subr.mxu0 0.0
    %1159 = vmatpush1.msra.mxu0 0.0
    %1160 = vmatprep.subr.mxu0 0.0
    %1161 = vmatpush1.msra.mxu0 0.0
    %1162 = vmatprep.subr.mxu0 0.0
    %1163 = vmatpush1.msra.mxu0 0.0
    %1164 = vmatprep.subr.mxu0 0.0
    %1165 = vmatpush1.msra.mxu0 0.0
    %1166 = vmatprep.subr.mxu0 0.0
    %1167 = vmatpush1.msra.mxu0 0.0
    %1168 = vmatprep.subr.mxu0 0.0
    %1169 = vmatpush1.msra.mxu0 0.0
    %1170 = vmatprep.subr.mxu0 0.0
    %1171 = vmatpush1.msra.mxu0 0.0
    %1172 = vmatprep.subr.mxu0 0.0
    %1173 = vmatpush1.msra.mxu0 0.0
    %1174 = vmatprep.subr.mxu0 0.0
    %1175 = vmatpush1.msra.mxu0 0.0
    %1176 = vmatprep.subr.mxu0 0.0
    %1177 = vmatpush1.msra.mxu0 0.0
    %1178 = vmatprep.subr.mxu0 0.0
    %1179 = vmatpush1.msra.mxu0 0.0
    %1180 = vmatprep.subr.mxu0 0.0
    %1181 = vmatpush1.msra.mxu0 0.0
    %1182 = vmatprep.subr.mxu0 0.0
    %1183 = vmatpush1.msra.mxu0 0.0
    %1184 = vmatprep.subr.mxu0 0.0
    %1185 = vmatpush1.msra.mxu0 0.0
    %1186 = vmatprep.subr.mxu0 0.0
    %1187 = vmatpush1.msra.mxu0 0.0
    %1188 = vmatprep.subr.mxu0 0.0
    %1189 = vmatpush1.msra.mxu0 0.0
    %1190 = vmatprep.subr.mxu0 0.0
    %1191 = vmatpush1.msra.mxu0 0.0
    %1192 = vmatprep.subr.mxu0 0.0
    %1193 = vmatpush1.msra.mxu0 0.0
    %1194 = vmatprep.mubr.f32.mxu0 0.0
    %1195 = vmatmul.mubr.f32.gmra.mrb[0].mxu0 %v1128
    %v1196 = vpop.f32.mrb[0].mxu0
    %v1197 = vadd.f32 0.0, %v1196
    %v1198 = vpop.f32.mrb[0].mxu0
    %v1199 = vadd.f32 0.0, %v1198
    %1200 = vdwg.mxu0
    %v1201 = vadd.f32 %v1123, %v1197
    %v1202 = vadd.f32 %v1124, %v1199
    %v1203 = vtanh.pop %v1201
    %v1204 = vtanh.pop %v1202
    %v1205 = vxor.u32 %v1201, 2147483648
    %v1206 = vxor.u32 %v1202, 2147483648
    %v1207 = vmul.f32 %v1205, 1.442695
    %v1208 = vpow.pop %v1207
    %v1209 = vmul.f32 %v1206, 1.442695
    %v1210 = vpow.pop %v1209
    %v1211 = vadd.f32 %v1208, 1.0
    %v1212 = vadd.f32 %v1210, 1.0
    %v1213 = vrcp.pop %v1211
    %v1214 = vmul.f32 1.0, %v1213
    %v1215 = vrcp.pop %v1212
    %v1216 = vmul.f32 1.0, %v1215
    %v1217 = vsel %vm122, %v1203, %v1214
    %v1218 = vsel %vm123, %v1204, %v1216
    %v1219 = vmul.f32 %v1217, %v1120
    %v1220 = vmul.f32 %v1217, %v1218
    %1222 = vrot.lane.b32.xlu0 %v1220, 64
    %v1223 = vpop.permute.xlu0 %1222
    %v1225 = vadd.f32 %v1219, %v1223
    %v1226 = vtanh.pop %v1225
    %v1227 = vmul.f32 %v1218, %v1226
    %v1228 = vsel %vm116, %v476, %v168
    %v1229 = vsel %vm117, %v477, %v169
    %1231 = vrot.lane.b32.xlu0 %v1227, 64
    %v1232 = vpop.permute.xlu0 %1231
    %v1233 = vsel %vm496, %v1232, 0
    %1235 = vmatprep.subr.mxu0 %v479
    %1236 = vmatpush1.msra.mxu0 %v478
    %1237 = vmatprep.subr.mxu0 %v481
    %1238 = vmatpush1.msra.mxu0 %v480
    %1239 = vmatprep.subr.mxu0 %v483
    %1240 = vmatpush1.msra.mxu0 %v482
    %1241 = vmatprep.subr.mxu0 %v485
    %1242 = vmatpush1.msra.mxu0 %v484
    %1243 = vmatprep.subr.mxu0 %v487
    %1244 = vmatpush1.msra.mxu0 %v486
    %1245 = vmatprep.subr.mxu0 %v489
    %1246 = vmatpush1.msra.mxu0 %v488
    %1247 = vmatprep.subr.mxu0 %v491
    %1248 = vmatpush1.msra.mxu0 %v490
    %1249 = vmatprep.subr.mxu0 %v493
    %1250 = vmatpush1.msra.mxu0 %v492
    %1251 = vmatprep.subr.mxu0 0.0
    %1252 = vmatpush1.msra.mxu0 0.0
    %1253 = vmatprep.subr.mxu0 0.0
    %1254 = vmatpush1.msra.mxu0 0.0
    %1255 = vmatprep.subr.mxu0 0.0
    %1256 = vmatpush1.msra.mxu0 0.0
    %1257 = vmatprep.subr.mxu0 0.0
    %1258 = vmatpush1.msra.mxu0 0.0
    %1259 = vmatprep.subr.mxu0 0.0
    %1260 = vmatpush1.msra.mxu0 0.0
    %1261 = vmatprep.subr.mxu0 0.0
    %1262 = vmatpush1.msra.mxu0 0.0
    %1263 = vmatprep.subr.mxu0 0.0
    %1264 = vmatpush1.msra.mxu0 0.0
    %1265 = vmatprep.subr.mxu0 0.0
    %1266 = vmatpush1.msra.mxu0 0.0
    %1267 = vmatprep.subr.mxu0 0.0
    %1268 = vmatpush1.msra.mxu0 0.0
    %1269 = vmatprep.subr.mxu0 0.0
    %1270 = vmatpush1.msra.mxu0 0.0
    %1271 = vmatprep.subr.mxu0 0.0
    %1272 = vmatpush1.msra.mxu0 0.0
    %1273 = vmatprep.subr.mxu0 0.0
    %1274 = vmatpush1.msra.mxu0 0.0
    %1275 = vmatprep.subr.mxu0 0.0
    %1276 = vmatpush1.msra.mxu0 0.0
    %1277 = vmatprep.subr.mxu0 0.0
    %1278 = vmatpush1.msra.mxu0 0.0
    %1279 = vmatprep.subr.mxu0 0.0
    %1280 = vmatpush1.msra.mxu0 0.0
    %1281 = vmatprep.subr.mxu0 0.0
    %1282 = vmatpush1.msra.mxu0 0.0
    %1283 = vmatprep.subr.mxu0 0.0
    %1284 = vmatpush1.msra.mxu0 0.0
    %1285 = vmatprep.subr.mxu0 0.0
    %1286 = vmatpush1.msra.mxu0 0.0
    %1287 = vmatprep.subr.mxu0 0.0
    %1288 = vmatpush1.msra.mxu0 0.0
    %1289 = vmatprep.subr.mxu0 0.0
    %1290 = vmatpush1.msra.mxu0 0.0
    %1291 = vmatprep.subr.mxu0 0.0
    %1292 = vmatpush1.msra.mxu0 0.0
    %1293 = vmatprep.subr.mxu0 0.0
    %1294 = vmatpush1.msra.mxu0 0.0
    %1295 = vmatprep.subr.mxu0 0.0
    %1296 = vmatpush1.msra.mxu0 0.0
    %1297 = vmatprep.subr.mxu0 0.0
    %1298 = vmatpush1.msra.mxu0 0.0
    %1299 = vmatprep.mubr.f32.mxu0 0.0
    %1300 = vmatmul.mubr.f32.gmra.mrb[0].mxu0 %v1233
    %v1301 = vpop.f32.mrb[0].mxu0
    %v1302 = vadd.f32 0.0, %v1301
    %v1303 = vpop.f32.mrb[0].mxu0
    %v1304 = vadd.f32 0.0, %v1303
    %1305 = vdwg.mxu0
    %v1306 = vadd.f32 %v1228, %v1302
    %v1307 = vadd.f32 %v1229, %v1304
    %v1308 = vtanh.pop %v1306
    %v1309 = vtanh.pop %v1307
    %v1310 = vxor.u32 %v1306, 2147483648
    %v1311 = vxor.u32 %v1307, 2147483648
    %v1312 = vmul.f32 %v1310, 1.442695
    %v1313 = vpow.pop %v1312
    %v1314 = vmul.f32 %v1311, 1.442695
    %v1315 = vpow.pop %v1314
    %v1316 = vadd.f32 %v1313, 1.0
    %v1317 = vadd.f32 %v1315, 1.0
    %v1318 = vrcp.pop %v1316
    %v1319 = vmul.f32 1.0, %v1318
    %v1320 = vrcp.pop %v1317
    %v1321 = vmul.f32 1.0, %v1320
    %v1322 = vsel %vm122, %v1308, %v1319
    %v1323 = vsel %vm123, %v1309, %v1321
    %v1324 = vmul.f32 %v1322, %v1225
    %v1325 = vmul.f32 %v1322, %v1323
    %1327 = vrot.lane.b32.xlu0 %v1325, 64
    %v1328 = vpop.permute.xlu0 %1327
    %v1330 = vadd.f32 %v1324, %v1328
    %v1331 = vtanh.pop %v1330
    %v1332 = vmul.f32 %v1323, %v1331
    %1335 = vrot.lane.b32.xlu0 %v1332, 64
    %v1336 = vpop.permute.xlu0 %1335
    %v1338 = vsel %vm124, %v602, %v1336
    %v1341 = vsel %vm124, %v707, %v1232
    %v1344 = vsel %vm124, %v812, %v1127
    %v1347 = vsel %vm124, %v917, %v1022
    %v1348 = vsel %vm124, %v1022, %v917
    %v1349 = vsel %vm124, %v1127, %v812
    %v1350 = vsel %vm124, %v1232, %v707
    %v1351 = vsel %vm124, %v1336, %v602
    %v1352 = vld [vmem:[#allocation9] sm:$0xff]
    %v1353 = vld [vmem:[#allocation9 + $0x8] sm:$0xff]
    %v1354 = vld [vmem:[#allocation9 + $0x10] sm:$0xff]
    %v1355 = vld [vmem:[#allocation9 + $0x18] sm:$0xff]
    %v1356 = vld [vmem:[#allocation9 + $0x20] sm:$0xff]
    %v1357 = vld [vmem:[#allocation9 + $0x28] sm:$0xff]
    %v1358 = vld [vmem:[#allocation9 + $0x30] sm:$0xff]
    %v1359 = vld [vmem:[#allocation9 + $0x38] sm:$0xff]
    %v1360 = vld [vmem:[#allocation9 + $0x40] sm:$0xff]
    %v1361 = vld [vmem:[#allocation9 + $0x48] sm:$0xff]
    %v1362 = vld [vmem:[#allocation9 + $0x50] sm:$0xff]
    %v1363 = vld [vmem:[#allocation9 + $0x58] sm:$0xff]
    %v1364 = vld [vmem:[#allocation9 + $0x60] sm:$0xff]
    %v1365 = vld [vmem:[#allocation9 + $0x68] sm:$0xff]
    %v1366 = vld [vmem:[#allocation9 + $0x70] sm:$0xff]
    %v1367 = vld [vmem:[#allocation9 + $0x78] sm:$0xff]
    %v1368 = vld [vmem:[%s4] sm:$0x3]
    %v1370 = vlaneseq
    %v1371 = vshrl.u32 %v1370, 7
    %v1372 = vsub.s32 0, %v1371
    %v1373 = vrot.slane %v1368, %v1372
    %v1374 = vlaneseq
    %v1375 = vshrl.u32 %v1374, 7
    %v1376 = vsub.s32 1, %v1375
    %v1377 = vrot.slane %v1368, %v1376
    %v1381 = vsel %vm496, %v1338, 0
    %1383 = vmatprep.subr.mxu0 %v1353
    %1384 = vmatpush1.msra.mxu0 %v1352
    %1385 = vmatprep.subr.mxu0 %v1355
    %1386 = vmatpush1.msra.mxu0 %v1354
    %1387 = vmatprep.subr.mxu0 %v1357
    %1388 = vmatpush1.msra.mxu0 %v1356
    %1389 = vmatprep.subr.mxu0 %v1359
    %1390 = vmatpush1.msra.mxu0 %v1358
    %1391 = vmatprep.subr.mxu0 %v1361
    %1392 = vmatpush1.msra.mxu0 %v1360
    %1393 = vmatprep.subr.mxu0 %v1363
    %1394 = vmatpush1.msra.mxu0 %v1362
    %1395 = vmatprep.subr.mxu0 %v1365
    %1396 = vmatpush1.msra.mxu0 %v1364
    %1397 = vmatprep.subr.mxu0 %v1367
    %1398 = vmatpush1.msra.mxu0 %v1366
    %1399 = vmatprep.subr.mxu0 0.0
    %1400 = vmatpush1.msra.mxu0 0.0
    %1401 = vmatprep.subr.mxu0 0.0
    %1402 = vmatpush1.msra.mxu0 0.0
    %1403 = vmatprep.subr.mxu0 0.0
    %1404 = vmatpush1.msra.mxu0 0.0
    %1405 = vmatprep.subr.mxu0 0.0
    %1406 = vmatpush1.msra.mxu0 0.0
    %1407 = vmatprep.subr.mxu0 0.0
    %1408 = vmatpush1.msra.mxu0 0.0
    %1409 = vmatprep.subr.mxu0 0.0
    %1410 = vmatpush1.msra.mxu0 0.0
    %1411 = vmatprep.subr.mxu0 0.0
    %1412 = vmatpush1.msra.mxu0 0.0
    %1413 = vmatprep.subr.mxu0 0.0
    %1414 = vmatpush1.msra.mxu0 0.0
    %1415 = vmatprep.subr.mxu0 0.0
    %1416 = vmatpush1.msra.mxu0 0.0
    %1417 = vmatprep.subr.mxu0 0.0
    %1418 = vmatpush1.msra.mxu0 0.0
    %1419 = vmatprep.subr.mxu0 0.0
    %1420 = vmatpush1.msra.mxu0 0.0
    %1421 = vmatprep.subr.mxu0 0.0
    %1422 = vmatpush1.msra.mxu0 0.0
    %1423 = vmatprep.subr.mxu0 0.0
    %1424 = vmatpush1.msra.mxu0 0.0
    %1425 = vmatprep.subr.mxu0 0.0
    %1426 = vmatpush1.msra.mxu0 0.0
    %1427 = vmatprep.subr.mxu0 0.0
    %1428 = vmatpush1.msra.mxu0 0.0
    %1429 = vmatprep.subr.mxu0 0.0
    %1430 = vmatpush1.msra.mxu0 0.0
    %1431 = vmatprep.subr.mxu0 0.0
    %1432 = vmatpush1.msra.mxu0 0.0
    %1433 = vmatprep.subr.mxu0 0.0
    %1434 = vmatpush1.msra.mxu0 0.0
    %1435 = vmatprep.subr.mxu0 0.0
    %1436 = vmatpush1.msra.mxu0 0.0
    %1437 = vmatprep.subr.mxu0 0.0
    %1438 = vmatpush1.msra.mxu0 0.0
    %1439 = vmatprep.subr.mxu0 0.0
    %1440 = vmatpush1.msra.mxu0 0.0
    %1441 = vmatprep.subr.mxu0 0.0
    %1442 = vmatpush1.msra.mxu0 0.0
    %1443 = vmatprep.subr.mxu0 0.0
    %1444 = vmatpush1.msra.mxu0 0.0
    %1445 = vmatprep.subr.mxu0 0.0
    %1446 = vmatpush1.msra.mxu0 0.0
    %1447 = vmatprep.mubr.f32.mxu0 0.0
    %1448 = vmatmul.mubr.f32.gmra.mrb[0].mxu0 %v1381
    %v1449 = vpop.f32.mrb[0].mxu0
    %v1450 = vadd.f32 %v1373, %v1449
    %v1451 = vpop.f32.mrb[0].mxu0
    %v1452 = vadd.f32 %v1377, %v1451
    %1453 = vdwg.mxu0
    %v1455 = vsel %vm496, %v1341, 0
    %1457 = vmatprep.subr.mxu0 %v1353
    %1458 = vmatpush1.msra.mxu0 %v1352
    %1459 = vmatprep.subr.mxu0 %v1355
    %1460 = vmatpush1.msra.mxu0 %v1354
    %1461 = vmatprep.subr.mxu0 %v1357
    %1462 = vmatpush1.msra.mxu0 %v1356
    %1463 = vmatprep.subr.mxu0 %v1359
    %1464 = vmatpush1.msra.mxu0 %v1358
    %1465 = vmatprep.subr.mxu0 %v1361
    %1466 = vmatpush1.msra.mxu0 %v1360
    %1467 = vmatprep.subr.mxu0 %v1363
    %1468 = vmatpush1.msra.mxu0 %v1362
    %1469 = vmatprep.subr.mxu0 %v1365
    %1470 = vmatpush1.msra.mxu0 %v1364
    %1471 = vmatprep.subr.mxu0 %v1367
    %1472 = vmatpush1.msra.mxu0 %v1366
    %1473 = vmatprep.subr.mxu0 0.0
    %1474 = vmatpush1.msra.mxu0 0.0
    %1475 = vmatprep.subr.mxu0 0.0
    %1476 = vmatpush1.msra.mxu0 0.0
    %1477 = vmatprep.subr.mxu0 0.0
    %1478 = vmatpush1.msra.mxu0 0.0
    %1479 = vmatprep.subr.mxu0 0.0
    %1480 = vmatpush1.msra.mxu0 0.0
    %1481 = vmatprep.subr.mxu0 0.0
    %1482 = vmatpush1.msra.mxu0 0.0
    %1483 = vmatprep.subr.mxu0 0.0
    %1484 = vmatpush1.msra.mxu0 0.0
    %1485 = vmatprep.subr.mxu0 0.0
    %1486 = vmatpush1.msra.mxu0 0.0
    %1487 = vmatprep.subr.mxu0 0.0
    %1488 = vmatpush1.msra.mxu0 0.0
    %1489 = vmatprep.subr.mxu0 0.0
    %1490 = vmatpush1.msra.mxu0 0.0
    %1491 = vmatprep.subr.mxu0 0.0
    %1492 = vmatpush1.msra.mxu0 0.0
    %1493 = vmatprep.subr.mxu0 0.0
    %1494 = vmatpush1.msra.mxu0 0.0
    %1495 = vmatprep.subr.mxu0 0.0
    %1496 = vmatpush1.msra.mxu0 0.0
    %1497 = vmatprep.subr.mxu0 0.0
    %1498 = vmatpush1.msra.mxu0 0.0
    %1499 = vmatprep.subr.mxu0 0.0
    %1500 = vmatpush1.msra.mxu0 0.0
    %1501 = vmatprep.subr.mxu0 0.0
    %1502 = vmatpush1.msra.mxu0 0.0
    %1503 = vmatprep.subr.mxu0 0.0
    %1504 = vmatpush1.msra.mxu0 0.0
    %1505 = vmatprep.subr.mxu0 0.0
    %1506 = vmatpush1.msra.mxu0 0.0
    %1507 = vmatprep.subr.mxu0 0.0
    %1508 = vmatpush1.msra.mxu0 0.0
    %1509 = vmatprep.subr.mxu0 0.0
    %1510 = vmatpush1.msra.mxu0 0.0
    %1511 = vmatprep.subr.mxu0 0.0
    %1512 = vmatpush1.msra.mxu0 0.0
    %1513 = vmatprep.subr.mxu0 0.0
    %1514 = vmatpush1.msra.mxu0 0.0
    %1515 = vmatprep.subr.mxu0 0.0
    %1516 = vmatpush1.msra.mxu0 0.0
    %1517 = vmatprep.subr.mxu0 0.0
    %1518 = vmatpush1.msra.mxu0 0.0
    %1519 = vmatprep.subr.mxu0 0.0
    %1520 = vmatpush1.msra.mxu0 0.0
    %1521 = vmatprep.mubr.f32.mxu0 0.0
    %1522 = vmatmul.mubr.f32.gmra.mrb[0].mxu0 %v1455
    %v1523 = vpop.f32.mrb[0].mxu0
    %v1524 = vadd.f32 %v1373, %v1523
    %v1525 = vpop.f32.mrb[0].mxu0
    %v1526 = vadd.f32 %v1377, %v1525
    %1527 = vdwg.mxu0
    %v1529 = vsel %vm496, %v1344, 0
    %1531 = vmatprep.subr.mxu0 %v1353
    %1532 = vmatpush1.msra.mxu0 %v1352
    %1533 = vmatprep.subr.mxu0 %v1355
    %1534 = vmatpush1.msra.mxu0 %v1354
    %1535 = vmatprep.subr.mxu0 %v1357
    %1536 = vmatpush1.msra.mxu0 %v1356
    %1537 = vmatprep.subr.mxu0 %v1359
    %1538 = vmatpush1.msra.mxu0 %v1358
    %1539 = vmatprep.subr.mxu0 %v1361
    %1540 = vmatpush1.msra.mxu0 %v1360
    %1541 = vmatprep.subr.mxu0 %v1363
    %1542 = vmatpush1.msra.mxu0 %v1362
    %1543 = vmatprep.subr.mxu0 %v1365
    %1544 = vmatpush1.msra.mxu0 %v1364
    %1545 = vmatprep.subr.mxu0 %v1367
    %1546 = vmatpush1.msra.mxu0 %v1366
    %1547 = vmatprep.subr.mxu0 0.0
    %1548 = vmatpush1.msra.mxu0 0.0
    %1549 = vmatprep.subr.mxu0 0.0
    %1550 = vmatpush1.msra.mxu0 0.0
    %1551 = vmatprep.subr.mxu0 0.0
    %1552 = vmatpush1.msra.mxu0 0.0
    %1553 = vmatprep.subr.mxu0 0.0
    %1554 = vmatpush1.msra.mxu0 0.0
    %1555 = vmatprep.subr.mxu0 0.0
    %1556 = vmatpush1.msra.mxu0 0.0
    %1557 = vmatprep.subr.mxu0 0.0
    %1558 = vmatpush1.msra.mxu0 0.0
    %1559 = vmatprep.subr.mxu0 0.0
    %1560 = vmatpush1.msra.mxu0 0.0
    %1561 = vmatprep.subr.mxu0 0.0
    %1562 = vmatpush1.msra.mxu0 0.0
    %1563 = vmatprep.subr.mxu0 0.0
    %1564 = vmatpush1.msra.mxu0 0.0
    %1565 = vmatprep.subr.mxu0 0.0
    %1566 = vmatpush1.msra.mxu0 0.0
    %1567 = vmatprep.subr.mxu0 0.0
    %1568 = vmatpush1.msra.mxu0 0.0
    %1569 = vmatprep.subr.mxu0 0.0
    %1570 = vmatpush1.msra.mxu0 0.0
    %1571 = vmatprep.subr.mxu0 0.0
    %1572 = vmatpush1.msra.mxu0 0.0
    %1573 = vmatprep.subr.mxu0 0.0
    %1574 = vmatpush1.msra.mxu0 0.0
    %1575 = vmatprep.subr.mxu0 0.0
    %1576 = vmatpush1.msra.mxu0 0.0
    %1577 = vmatprep.subr.mxu0 0.0
    %1578 = vmatpush1.msra.mxu0 0.0
    %1579 = vmatprep.subr.mxu0 0.0
    %1580 = vmatpush1.msra.mxu0 0.0
    %1581 = vmatprep.subr.mxu0 0.0
    %1582 = vmatpush1.msra.mxu0 0.0
    %1583 = vmatprep.subr.mxu0 0.0
    %1584 = vmatpush1.msra.mxu0 0.0
    %1585 = vmatprep.subr.mxu0 0.0
    %1586 = vmatpush1.msra.mxu0 0.0
    %1587 = vmatprep.subr.mxu0 0.0
    %1588 = vmatpush1.msra.mxu0 0.0
    %1589 = vmatprep.subr.mxu0 0.0
    %1590 = vmatpush1.msra.mxu0 0.0
    %1591 = vmatprep.subr.mxu0 0.0
    %1592 = vmatpush1.msra.mxu0 0.0
    %1593 = vmatprep.subr.mxu0 0.0
    %1594 = vmatpush1.msra.mxu0 0.0
    %1595 = vmatprep.mubr.f32.mxu0 0.0
    %1596 = vmatmul.mubr.f32.gmra.mrb[0].mxu0 %v1529
    %v1597 = vpop.f32.mrb[0].mxu0
    %v1598 = vadd.f32 %v1373, %v1597
    %v1599 = vpop.f32.mrb[0].mxu0
    %v1600 = vadd.f32 %v1377, %v1599
    %1601 = vdwg.mxu0
    %v1603 = vsel %vm496, %v1347, 0
    %1605 = vmatprep.subr.mxu0 %v1353
    %1606 = vmatpush1.msra.mxu0 %v1352
    %1607 = vmatprep.subr.mxu0 %v1355
    %1608 = vmatpush1.msra.mxu0 %v1354
    %1609 = vmatprep.subr.mxu0 %v1357
    %1610 = vmatpush1.msra.mxu0 %v1356
    %1611 = vmatprep.subr.mxu0 %v1359
    %1612 = vmatpush1.msra.mxu0 %v1358
    %1613 = vmatprep.subr.mxu0 %v1361
    %1614 = vmatpush1.msra.mxu0 %v1360
    %1615 = vmatprep.subr.mxu0 %v1363
    %1616 = vmatpush1.msra.mxu0 %v1362
    %1617 = vmatprep.subr.mxu0 %v1365
    %1618 = vmatpush1.msra.mxu0 %v1364
    %1619 = vmatprep.subr.mxu0 %v1367
    %1620 = vmatpush1.msra.mxu0 %v1366
    %1621 = vmatprep.subr.mxu0 0.0
    %1622 = vmatpush1.msra.mxu0 0.0
    %1623 = vmatprep.subr.mxu0 0.0
    %1624 = vmatpush1.msra.mxu0 0.0
    %1625 = vmatprep.subr.mxu0 0.0
    %1626 = vmatpush1.msra.mxu0 0.0
    %1627 = vmatprep.subr.mxu0 0.0
    %1628 = vmatpush1.msra.mxu0 0.0
    %1629 = vmatprep.subr.mxu0 0.0
    %1630 = vmatpush1.msra.mxu0 0.0
    %1631 = vmatprep.subr.mxu0 0.0
    %1632 = vmatpush1.msra.mxu0 0.0
    %1633 = vmatprep.subr.mxu0 0.0
    %1634 = vmatpush1.msra.mxu0 0.0
    %1635 = vmatprep.subr.mxu0 0.0
    %1636 = vmatpush1.msra.mxu0 0.0
    %1637 = vmatprep.subr.mxu0 0.0
    %1638 = vmatpush1.msra.mxu0 0.0
    %1639 = vmatprep.subr.mxu0 0.0
    %1640 = vmatpush1.msra.mxu0 0.0
    %1641 = vmatprep.subr.mxu0 0.0
    %1642 = vmatpush1.msra.mxu0 0.0
    %1643 = vmatprep.subr.mxu0 0.0
    %1644 = vmatpush1.msra.mxu0 0.0
    %1645 = vmatprep.subr.mxu0 0.0
    %1646 = vmatpush1.msra.mxu0 0.0
    %1647 = vmatprep.subr.mxu0 0.0
    %1648 = vmatpush1.msra.mxu0 0.0
    %1649 = vmatprep.subr.mxu0 0.0
    %1650 = vmatpush1.msra.mxu0 0.0
    %1651 = vmatprep.subr.mxu0 0.0
    %1652 = vmatpush1.msra.mxu0 0.0
    %1653 = vmatprep.subr.mxu0 0.0
    %1654 = vmatpush1.msra.mxu0 0.0
    %1655 = vmatprep.subr.mxu0 0.0
    %1656 = vmatpush1.msra.mxu0 0.0
    %1657 = vmatprep.subr.mxu0 0.0
    %1658 = vmatpush1.msra.mxu0 0.0
    %1659 = vmatprep.subr.mxu0 0.0
    %1660 = vmatpush1.msra.mxu0 0.0
    %1661 = vmatprep.subr.mxu0 0.0
    %1662 = vmatpush1.msra.mxu0 0.0
    %1663 = vmatprep.subr.mxu0 0.0
    %1664 = vmatpush1.msra.mxu0 0.0
    %1665 = vmatprep.subr.mxu0 0.0
    %1666 = vmatpush1.msra.mxu0 0.0
    %1667 = vmatprep.subr.mxu0 0.0
    %1668 = vmatpush1.msra.mxu0 0.0
    %1669 = vmatprep.mubr.f32.mxu0 0.0
    %1670 = vmatmul.mubr.f32.gmra.mrb[0].mxu0 %v1603
    %v1671 = vpop.f32.mrb[0].mxu0
    %v1672 = vadd.f32 %v1373, %v1671
    %v1673 = vpop.f32.mrb[0].mxu0
    %v1674 = vadd.f32 %v1377, %v1673
    %1675 = vdwg.mxu0
    %v1677 = vsel %vm496, %v1348, 0
    %1679 = vmatprep.subr.mxu0 %v1353
    %1680 = vmatpush1.msra.mxu0 %v1352
    %1681 = vmatprep.subr.mxu0 %v1355
    %1682 = vmatpush1.msra.mxu0 %v1354
    %1683 = vmatprep.subr.mxu0 %v1357
    %1684 = vmatpush1.msra.mxu0 %v1356
    %1685 = vmatprep.subr.mxu0 %v1359
    %1686 = vmatpush1.msra.mxu0 %v1358
    %1687 = vmatprep.subr.mxu0 %v1361
    %1688 = vmatpush1.msra.mxu0 %v1360
    %1689 = vmatprep.subr.mxu0 %v1363
    %1690 = vmatpush1.msra.mxu0 %v1362
    %1691 = vmatprep.subr.mxu0 %v1365
    %1692 = vmatpush1.msra.mxu0 %v1364
    %1693 = vmatprep.subr.mxu0 %v1367
    %1694 = vmatpush1.msra.mxu0 %v1366
    %1695 = vmatprep.subr.mxu0 0.0
    %1696 = vmatpush1.msra.mxu0 0.0
    %1697 = vmatprep.subr.mxu0 0.0
    %1698 = vmatpush1.msra.mxu0 0.0
    %1699 = vmatprep.subr.mxu0 0.0
    %1700 = vmatpush1.msra.mxu0 0.0
    %1701 = vmatprep.subr.mxu0 0.0
    %1702 = vmatpush1.msra.mxu0 0.0
    %1703 = vmatprep.subr.mxu0 0.0
    %1704 = vmatpush1.msra.mxu0 0.0
    %1705 = vmatprep.subr.mxu0 0.0
    %1706 = vmatpush1.msra.mxu0 0.0
    %1707 = vmatprep.subr.mxu0 0.0
    %1708 = vmatpush1.msra.mxu0 0.0
    %1709 = vmatprep.subr.mxu0 0.0
    %1710 = vmatpush1.msra.mxu0 0.0
    %1711 = vmatprep.subr.mxu0 0.0
    %1712 = vmatpush1.msra.mxu0 0.0
    %1713 = vmatprep.subr.mxu0 0.0
    %1714 = vmatpush1.msra.mxu0 0.0
    %1715 = vmatprep.subr.mxu0 0.0
    %1716 = vmatpush1.msra.mxu0 0.0
    %1717 = vmatprep.subr.mxu0 0.0
    %1718 = vmatpush1.msra.mxu0 0.0
    %1719 = vmatprep.subr.mxu0 0.0
    %1720 = vmatpush1.msra.mxu0 0.0
    %1721 = vmatprep.subr.mxu0 0.0
    %1722 = vmatpush1.msra.mxu0 0.0
    %1723 = vmatprep.subr.mxu0 0.0
    %1724 = vmatpush1.msra.mxu0 0.0
    %1725 = vmatprep.subr.mxu0 0.0
    %1726 = vmatpush1.msra.mxu0 0.0
    %1727 = vmatprep.subr.mxu0 0.0
    %1728 = vmatpush1.msra.mxu0 0.0
    %1729 = vmatprep.subr.mxu0 0.0
    %1730 = vmatpush1.msra.mxu0 0.0
    %1731 = vmatprep.subr.mxu0 0.0
    %1732 = vmatpush1.msra.mxu0 0.0
    %1733 = vmatprep.subr.mxu0 0.0
    %1734 = vmatpush1.msra.mxu0 0.0
    %1735 = vmatprep.subr.mxu0 0.0
    %1736 = vmatpush1.msra.mxu0 0.0
    %1737 = vmatprep.subr.mxu0 0.0
    %1738 = vmatpush1.msra.mxu0 0.0
    %1739 = vmatprep.subr.mxu0 0.0
    %1740 = vmatpush1.msra.mxu0 0.0
    %1741 = vmatprep.subr.mxu0 0.0
    %1742 = vmatpush1.msra.mxu0 0.0
    %1743 = vmatprep.mubr.f32.mxu0 0.0
    %1744 = vmatmul.mubr.f32.gmra.mrb[0].mxu0 %v1677
    %v1745 = vpop.f32.mrb[0].mxu0
    %v1746 = vadd.f32 %v1373, %v1745
    %v1747 = vpop.f32.mrb[0].mxu0
    %v1748 = vadd.f32 %v1377, %v1747
    %1749 = vdwg.mxu0
    %v1751 = vsel %vm496, %v1349, 0
    %1753 = vmatprep.subr.mxu0 %v1353
    %1754 = vmatpush1.msra.mxu0 %v1352
    %1755 = vmatprep.subr.mxu0 %v1355
    %1756 = vmatpush1.msra.mxu0 %v1354
    %1757 = vmatprep.subr.mxu0 %v1357
    %1758 = vmatpush1.msra.mxu0 %v1356
    %1759 = vmatprep.subr.mxu0 %v1359
    %1760 = vmatpush1.msra.mxu0 %v1358
    %1761 = vmatprep.subr.mxu0 %v1361
    %1762 = vmatpush1.msra.mxu0 %v1360
    %1763 = vmatprep.subr.mxu0 %v1363
    %1764 = vmatpush1.msra.mxu0 %v1362
    %1765 = vmatprep.subr.mxu0 %v1365
    %1766 = vmatpush1.msra.mxu0 %v1364
    %1767 = vmatprep.subr.mxu0 %v1367
    %1768 = vmatpush1.msra.mxu0 %v1366
    %1769 = vmatprep.subr.mxu0 0.0
    %1770 = vmatpush1.msra.mxu0 0.0
    %1771 = vmatprep.subr.mxu0 0.0
    %1772 = vmatpush1.msra.mxu0 0.0
    %1773 = vmatprep.subr.mxu0 0.0
    %1774 = vmatpush1.msra.mxu0 0.0
    %1775 = vmatprep.subr.mxu0 0.0
    %1776 = vmatpush1.msra.mxu0 0.0
    %1777 = vmatprep.subr.mxu0 0.0
    %1778 = vmatpush1.msra.mxu0 0.0
    %1779 = vmatprep.subr.mxu0 0.0
    %1780 = vmatpush1.msra.mxu0 0.0
    %1781 = vmatprep.subr.mxu0 0.0
    %1782 = vmatpush1.msra.mxu0 0.0
    %1783 = vmatprep.subr.mxu0 0.0
    %1784 = vmatpush1.msra.mxu0 0.0
    %1785 = vmatprep.subr.mxu0 0.0
    %1786 = vmatpush1.msra.mxu0 0.0
    %1787 = vmatprep.subr.mxu0 0.0
    %1788 = vmatpush1.msra.mxu0 0.0
    %1789 = vmatprep.subr.mxu0 0.0
    %1790 = vmatpush1.msra.mxu0 0.0
    %1791 = vmatprep.subr.mxu0 0.0
    %1792 = vmatpush1.msra.mxu0 0.0
    %1793 = vmatprep.subr.mxu0 0.0
    %1794 = vmatpush1.msra.mxu0 0.0
    %1795 = vmatprep.subr.mxu0 0.0
    %1796 = vmatpush1.msra.mxu0 0.0
    %1797 = vmatprep.subr.mxu0 0.0
    %1798 = vmatpush1.msra.mxu0 0.0
    %1799 = vmatprep.subr.mxu0 0.0
    %1800 = vmatpush1.msra.mxu0 0.0
    %1801 = vmatprep.subr.mxu0 0.0
    %1802 = vmatpush1.msra.mxu0 0.0
    %1803 = vmatprep.subr.mxu0 0.0
    %1804 = vmatpush1.msra.mxu0 0.0
    %1805 = vmatprep.subr.mxu0 0.0
    %1806 = vmatpush1.msra.mxu0 0.0
    %1807 = vmatprep.subr.mxu0 0.0
    %1808 = vmatpush1.msra.mxu0 0.0
    %1809 = vmatprep.subr.mxu0 0.0
    %1810 = vmatpush1.msra.mxu0 0.0
    %1811 = vmatprep.subr.mxu0 0.0
    %1812 = vmatpush1.msra.mxu0 0.0
    %1813 = vmatprep.subr.mxu0 0.0
    %1814 = vmatpush1.msra.mxu0 0.0
    %1815 = vmatprep.subr.mxu0 0.0
    %1816 = vmatpush1.msra.mxu0 0.0
    %1817 = vmatprep.mubr.f32.mxu0 0.0
    %1818 = vmatmul.mubr.f32.gmra.mrb[0].mxu0 %v1751
    %v1819 = vpop.f32.mrb[0].mxu0
    %v1820 = vadd.f32 %v1373, %v1819
    %v1821 = vpop.f32.mrb[0].mxu0
    %v1822 = vadd.f32 %v1377, %v1821
    %1823 = vdwg.mxu0
    %v1825 = vsel %vm496, %v1350, 0
    %1827 = vmatprep.subr.mxu0 %v1353
    %1828 = vmatpush1.msra.mxu0 %v1352
    %1829 = vmatprep.subr.mxu0 %v1355
    %1830 = vmatpush1.msra.mxu0 %v1354
    %1831 = vmatprep.subr.mxu0 %v1357
    %1832 = vmatpush1.msra.mxu0 %v1356
    %1833 = vmatprep.subr.mxu0 %v1359
    %1834 = vmatpush1.msra.mxu0 %v1358
    %1835 = vmatprep.subr.mxu0 %v1361
    %1836 = vmatpush1.msra.mxu0 %v1360
    %1837 = vmatprep.subr.mxu0 %v1363
    %1838 = vmatpush1.msra.mxu0 %v1362
    %1839 = vmatprep.subr.mxu0 %v1365
    %1840 = vmatpush1.msra.mxu0 %v1364
    %1841 = vmatprep.subr.mxu0 %v1367
    %1842 = vmatpush1.msra.mxu0 %v1366
    %1843 = vmatprep.subr.mxu0 0.0
    %1844 = vmatpush1.msra.mxu0 0.0
    %1845 = vmatprep.subr.mxu0 0.0
    %1846 = vmatpush1.msra.mxu0 0.0
    %1847 = vmatprep.subr.mxu0 0.0
    %1848 = vmatpush1.msra.mxu0 0.0
    %1849 = vmatprep.subr.mxu0 0.0
    %1850 = vmatpush1.msra.mxu0 0.0
    %1851 = vmatprep.subr.mxu0 0.0
    %1852 = vmatpush1.msra.mxu0 0.0
    %1853 = vmatprep.subr.mxu0 0.0
    %1854 = vmatpush1.msra.mxu0 0.0
    %1855 = vmatprep.subr.mxu0 0.0
    %1856 = vmatpush1.msra.mxu0 0.0
    %1857 = vmatprep.subr.mxu0 0.0
    %1858 = vmatpush1.msra.mxu0 0.0
    %1859 = vmatprep.subr.mxu0 0.0
    %1860 = vmatpush1.msra.mxu0 0.0
    %1861 = vmatprep.subr.mxu0 0.0
    %1862 = vmatpush1.msra.mxu0 0.0
    %1863 = vmatprep.subr.mxu0 0.0
    %1864 = vmatpush1.msra.mxu0 0.0
    %1865 = vmatprep.subr.mxu0 0.0
    %1866 = vmatpush1.msra.mxu0 0.0
    %1867 = vmatprep.subr.mxu0 0.0
    %1868 = vmatpush1.msra.mxu0 0.0
    %1869 = vmatprep.subr.mxu0 0.0
    %1870 = vmatpush1.msra.mxu0 0.0
    %1871 = vmatprep.subr.mxu0 0.0
    %1872 = vmatpush1.msra.mxu0 0.0
    %1873 = vmatprep.subr.mxu0 0.0
    %1874 = vmatpush1.msra.mxu0 0.0
    %1875 = vmatprep.subr.mxu0 0.0
    %1876 = vmatpush1.msra.mxu0 0.0
    %1877 = vmatprep.subr.mxu0 0.0
    %1878 = vmatpush1.msra.mxu0 0.0
    %1879 = vmatprep.subr.mxu0 0.0
    %1880 = vmatpush1.msra.mxu0 0.0
    %1881 = vmatprep.subr.mxu0 0.0
    %1882 = vmatpush1.msra.mxu0 0.0
    %1883 = vmatprep.subr.mxu0 0.0
    %1884 = vmatpush1.msra.mxu0 0.0
    %1885 = vmatprep.subr.mxu0 0.0
    %1886 = vmatpush1.msra.mxu0 0.0
    %1887 = vmatprep.subr.mxu0 0.0
    %1888 = vmatpush1.msra.mxu0 0.0
    %1889 = vmatprep.subr.mxu0 0.0
    %1890 = vmatpush1.msra.mxu0 0.0
    %1891 = vmatprep.mubr.f32.mxu0 0.0
    %1892 = vmatmul.mubr.f32.gmra.mrb[0].mxu0 %v1825
    %v1893 = vpop.f32.mrb[0].mxu0
    %v1894 = vadd.f32 %v1373, %v1893
    %v1895 = vpop.f32.mrb[0].mxu0
    %v1896 = vadd.f32 %v1377, %v1895
    %1897 = vdwg.mxu0
    %v1899 = vsel %vm496, %v1351, 0
    %1901 = vmatprep.subr.mxu0 %v1353
    %1902 = vmatpush1.msra.mxu0 %v1352
    %1903 = vmatprep.subr.mxu0 %v1355
    %1904 = vmatpush1.msra.mxu0 %v1354
    %1905 = vmatprep.subr.mxu0 %v1357
    %1906 = vmatpush1.msra.mxu0 %v1356
    %1907 = vmatprep.subr.mxu0 %v1359
    %1908 = vmatpush1.msra.mxu0 %v1358
    %1909 = vmatprep.subr.mxu0 %v1361
    %1910 = vmatpush1.msra.mxu0 %v1360
    %1911 = vmatprep.subr.mxu0 %v1363
    %1912 = vmatpush1.msra.mxu0 %v1362
    %1913 = vmatprep.subr.mxu0 %v1365
    %1914 = vmatpush1.msra.mxu0 %v1364
    %1915 = vmatprep.subr.mxu0 %v1367
    %1916 = vmatpush1.msra.mxu0 %v1366
    %1917 = vmatprep.subr.mxu0 0.0
    %1918 = vmatpush1.msra.mxu0 0.0
    %1919 = vmatprep.subr.mxu0 0.0
    %1920 = vmatpush1.msra.mxu0 0.0
    %1921 = vmatprep.subr.mxu0 0.0
    %1922 = vmatpush1.msra.mxu0 0.0
    %1923 = vmatprep.subr.mxu0 0.0
    %1924 = vmatpush1.msra.mxu0 0.0
    %1925 = vmatprep.subr.mxu0 0.0
    %1926 = vmatpush1.msra.mxu0 0.0
    %1927 = vmatprep.subr.mxu0 0.0
    %1928 = vmatpush1.msra.mxu0 0.0
    %1929 = vmatprep.subr.mxu0 0.0
    %1930 = vmatpush1.msra.mxu0 0.0
    %1931 = vmatprep.subr.mxu0 0.0
    %1932 = vmatpush1.msra.mxu0 0.0
    %1933 = vmatprep.subr.mxu0 0.0
    %1934 = vmatpush1.msra.mxu0 0.0
    %1935 = vmatprep.subr.mxu0 0.0
    %1936 = vmatpush1.msra.mxu0 0.0
    %1937 = vmatprep.subr.mxu0 0.0
    %1938 = vmatpush1.msra.mxu0 0.0
    %1939 = vmatprep.subr.mxu0 0.0
    %1940 = vmatpush1.msra.mxu0 0.0
    %1941 = vmatprep.subr.mxu0 0.0
    %1942 = vmatpush1.msra.mxu0 0.0
    %1943 = vmatprep.subr.mxu0 0.0
    %1944 = vmatpush1.msra.mxu0 0.0
    %1945 = vmatprep.subr.mxu0 0.0
    %1946 = vmatpush1.msra.mxu0 0.0
    %1947 = vmatprep.subr.mxu0 0.0
    %1948 = vmatpush1.msra.mxu0 0.0
    %1949 = vmatprep.subr.mxu0 0.0
    %1950 = vmatpush1.msra.mxu0 0.0
    %1951 = vmatprep.subr.mxu0 0.0
    %1952 = vmatpush1.msra.mxu0 0.0
    %1953 = vmatprep.subr.mxu0 0.0
    %1954 = vmatpush1.msra.mxu0 0.0
    %1955 = vmatprep.subr.mxu0 0.0
    %1956 = vmatpush1.msra.mxu0 0.0
    %1957 = vmatprep.subr.mxu0 0.0
    %1958 = vmatpush1.msra.mxu0 0.0
    %1959 = vmatprep.subr.mxu0 0.0
    %1960 = vmatpush1.msra.mxu0 0.0
    %1961 = vmatprep.subr.mxu0 0.0
    %1962 = vmatpush1.msra.mxu0 0.0
    %1963 = vmatprep.subr.mxu0 0.0
    %1964 = vmatpush1.msra.mxu0 0.0
    %1965 = vmatprep.mubr.f32.mxu0 0.0
    %1966 = vmatmul.mubr.f32.gmra.mrb[0].mxu0 %v1899
    %v1967 = vpop.f32.mrb[0].mxu0
    %v1968 = vadd.f32 %v1373, %v1967
    %v1969 = vpop.f32.mrb[0].mxu0
    %v1970 = vadd.f32 %v1377, %v1969
    %1971 = vdwg.mxu0
    %v1972 = vld [vmem:[#allocation10] sm:$0xff]
    %v1973 = vld [vmem:[#allocation10 + $0x8] sm:$0xff]
    %v1974 = vld [vmem:[#allocation10 + $0x10] sm:$0xff]
    %v1975 = vld [vmem:[#allocation10 + $0x18] sm:$0xff]
    %v1976 = vld [vmem:[#allocation10 + $0x20] sm:$0xff]
    %v1977 = vld [vmem:[#allocation10 + $0x28] sm:$0xff]
    %v1978 = vld [vmem:[#allocation10 + $0x30] sm:$0xff]
    %v1979 = vld [vmem:[#allocation10 + $0x38] sm:$0xff]
    %v1980 = vld [vmem:[#allocation10 + $0x40] sm:$0xff]
    %v1981 = vld [vmem:[#allocation10 + $0x48] sm:$0xff]
    %v1982 = vld [vmem:[#allocation10 + $0x50] sm:$0xff]
    %v1983 = vld [vmem:[#allocation10 + $0x58] sm:$0xff]
    %v1984 = vld [vmem:[#allocation10 + $0x60] sm:$0xff]
    %v1985 = vld [vmem:[#allocation10 + $0x68] sm:$0xff]
    %v1986 = vld [vmem:[#allocation10 + $0x70] sm:$0xff]
    %v1987 = vld [vmem:[#allocation10 + $0x78] sm:$0xff]
    %v1988 = vsel %vm116, %v1450, %v1968
    %v1989 = vsel %vm117, %v1452, %v1970
    %1990 = vmatprep.subr.mxu0 %v1973
    %1991 = vmatpush1.msra.mxu0 %v1972
    %1992 = vmatprep.subr.mxu0 %v1975
    %1993 = vmatpush1.msra.mxu0 %v1974
    %1994 = vmatprep.subr.mxu0 %v1977
    %1995 = vmatpush1.msra.mxu0 %v1976
    %1996 = vmatprep.subr.mxu0 %v1979
    %1997 = vmatpush1.msra.mxu0 %v1978
    %1998 = vmatprep.subr.mxu0 %v1981
    %1999 = vmatpush1.msra.mxu0 %v1980
    %2000 = vmatprep.subr.mxu0 %v1983
    %2001 = vmatpush1.msra.mxu0 %v1982
    %2002 = vmatprep.subr.mxu0 %v1985
    %2003 = vmatpush1.msra.mxu0 %v1984
    %2004 = vmatprep.subr.mxu0 %v1987
    %2005 = vmatpush1.msra.mxu0 %v1986
    %2006 = vmatprep.subr.mxu0 0.0
    %2007 = vmatpush1.msra.mxu0 0.0
    %2008 = vmatprep.subr.mxu0 0.0
    %2009 = vmatpush1.msra.mxu0 0.0
    %2010 = vmatprep.subr.mxu0 0.0
    %2011 = vmatpush1.msra.mxu0 0.0
    %2012 = vmatprep.subr.mxu0 0.0
    %2013 = vmatpush1.msra.mxu0 0.0
    %2014 = vmatprep.subr.mxu0 0.0
    %2015 = vmatpush1.msra.mxu0 0.0
    %2016 = vmatprep.subr.mxu0 0.0
    %2017 = vmatpush1.msra.mxu0 0.0
    %2018 = vmatprep.subr.mxu0 0.0
    %2019 = vmatpush1.msra.mxu0 0.0
    %2020 = vmatprep.subr.mxu0 0.0
    %2021 = vmatpush1.msra.mxu0 0.0
    %2022 = vmatprep.subr.mxu0 0.0
    %2023 = vmatpush1.msra.mxu0 0.0
    %2024 = vmatprep.subr.mxu0 0.0
    %2025 = vmatpush1.msra.mxu0 0.0
    %2026 = vmatprep.subr.mxu0 0.0
    %2027 = vmatpush1.msra.mxu0 0.0
    %2028 = vmatprep.subr.mxu0 0.0
    %2029 = vmatpush1.msra.mxu0 0.0
    %2030 = vmatprep.subr.mxu0 0.0
    %2031 = vmatpush1.msra.mxu0 0.0
    %2032 = vmatprep.subr.mxu0 0.0
    %2033 = vmatpush1.msra.mxu0 0.0
    %2034 = vmatprep.subr.mxu0 0.0
    %2035 = vmatpush1.msra.mxu0 0.0
    %2036 = vmatprep.subr.mxu0 0.0
    %2037 = vmatpush1.msra.mxu0 0.0
    %2038 = vmatprep.subr.mxu0 0.0
    %2039 = vmatpush1.msra.mxu0 0.0
    %2040 = vmatprep.subr.mxu0 0.0
    %2041 = vmatpush1.msra.mxu0 0.0
    %2042 = vmatprep.subr.mxu0 0.0
    %2043 = vmatpush1.msra.mxu0 0.0
    %2044 = vmatprep.subr.mxu0 0.0
    %2045 = vmatpush1.msra.mxu0 0.0
    %2046 = vmatprep.subr.mxu0 0.0
    %2047 = vmatpush1.msra.mxu0 0.0
    %2048 = vmatprep.subr.mxu0 0.0
    %2049 = vmatpush1.msra.mxu0 0.0
    %2050 = vmatprep.subr.mxu0 0.0
    %2051 = vmatpush1.msra.mxu0 0.0
    %2052 = vmatprep.subr.mxu0 0.0
    %2053 = vmatpush1.msra.mxu0 0.0
    %2054 = vmatprep.mubr.f32.mxu0 0.0
    %2055 = vmatmul.mubr.f32.gmra.mrb[0].mxu0 %v498
    %v2056 = vpop.f32.mrb[0].mxu0
    %v2057 = vadd.f32 0.0, %v2056
    %v2058 = vpop.f32.mrb[0].mxu0
    %v2059 = vadd.f32 0.0, %v2058
    %2060 = vdwg.mxu0
    %v2061 = vadd.f32 %v1988, %v2057
    %v2062 = vadd.f32 %v1989, %v2059
    %v2063 = vtanh.pop %v2061
    %v2064 = vtanh.pop %v2062
    %v2065 = vxor.u32 %v2061, 2147483648
    %v2066 = vxor.u32 %v2062, 2147483648
    %v2067 = vmul.f32 %v2065, 1.442695
    %v2068 = vpow.pop %v2067
    %v2069 = vmul.f32 %v2066, 1.442695
    %v2070 = vpow.pop %v2069
    %v2071 = vadd.f32 %v2068, 1.0
    %v2072 = vadd.f32 %v2070, 1.0
    %v2073 = vrcp.pop %v2071
    %v2074 = vmul.f32 1.0, %v2073
    %v2075 = vrcp.pop %v2072
    %v2076 = vmul.f32 1.0, %v2075
    %v2077 = vsel %vm122, %v2063, %v2074
    %v2078 = vsel %vm123, %v2064, %v2076
    %v2079 = vmul.f32 %v2077, 0.0
    %v2080 = vmul.f32 %v2077, %v2078
    %2082 = vrot.lane.b32.xlu0 %v2080, 64
    %v2083 = vpop.permute.xlu0 %2082
    %v2085 = vadd.f32 %v2079, %v2083
    %v2086 = vtanh.pop %v2085
    %v2087 = vmul.f32 %v2078, %v2086
    %v2088 = vsel %vm116, %v1524, %v1894
    %v2089 = vsel %vm117, %v1526, %v1896
    %2091 = vrot.lane.b32.xlu0 %v2087, 64
    %v2092 = vpop.permute.xlu0 %2091
    %v2093 = vsel %vm496, %v2092, 0
    %2095 = vmatprep.subr.mxu0 %v1973
    %2096 = vmatpush1.msra.mxu0 %v1972
    %2097 = vmatprep.subr.mxu0 %v1975
    %2098 = vmatpush1.msra.mxu0 %v1974
    %2099 = vmatprep.subr.mxu0 %v1977
    %2100 = vmatpush1.msra.mxu0 %v1976
    %2101 = vmatprep.subr.mxu0 %v1979
    %2102 = vmatpush1.msra.mxu0 %v1978
    %2103 = vmatprep.subr.mxu0 %v1981
    %2104 = vmatpush1.msra.mxu0 %v1980
    %2105 = vmatprep.subr.mxu0 %v1983
    %2106 = vmatpush1.msra.mxu0 %v1982
    %2107 = vmatprep.subr.mxu0 %v1985
    %2108 = vmatpush1.msra.mxu0 %v1984
    %2109 = vmatprep.subr.mxu0 %v1987
    %2110 = vmatpush1.msra.mxu0 %v1986
    %2111 = vmatprep.subr.mxu0 0.0
    %2112 = vmatpush1.msra.mxu0 0.0
    %2113 = vmatprep.subr.mxu0 0.0
    %2114 = vmatpush1.msra.mxu0 0.0
    %2115 = vmatprep.subr.mxu0 0.0
    %2116 = vmatpush1.msra.mxu0 0.0
    %2117 = vmatprep.subr.mxu0 0.0
    %2118 = vmatpush1.msra.mxu0 0.0
    %2119 = vmatprep.subr.mxu0 0.0
    %2120 = vmatpush1.msra.mxu0 0.0
    %2121 = vmatprep.subr.mxu0 0.0
    %2122 = vmatpush1.msra.mxu0 0.0
    %2123 = vmatprep.subr.mxu0 0.0
    %2124 = vmatpush1.msra.mxu0 0.0
    %2125 = vmatprep.subr.mxu0 0.0
    %2126 = vmatpush1.msra.mxu0 0.0
    %2127 = vmatprep.subr.mxu0 0.0
    %2128 = vmatpush1.msra.mxu0 0.0
    %2129 = vmatprep.subr.mxu0 0.0
    %2130 = vmatpush1.msra.mxu0 0.0
    %2131 = vmatprep.subr.mxu0 0.0
    %2132 = vmatpush1.msra.mxu0 0.0
    %2133 = vmatprep.subr.mxu0 0.0
    %2134 = vmatpush1.msra.mxu0 0.0
    %2135 = vmatprep.subr.mxu0 0.0
    %2136 = vmatpush1.msra.mxu0 0.0
    %2137 = vmatprep.subr.mxu0 0.0
    %2138 = vmatpush1.msra.mxu0 0.0
    %2139 = vmatprep.subr.mxu0 0.0
    %2140 = vmatpush1.msra.mxu0 0.0
    %2141 = vmatprep.subr.mxu0 0.0
    %2142 = vmatpush1.msra.mxu0 0.0
    %2143 = vmatprep.subr.mxu0 0.0
    %2144 = vmatpush1.msra.mxu0 0.0
    %2145 = vmatprep.subr.mxu0 0.0
    %2146 = vmatpush1.msra.mxu0 0.0
    %2147 = vmatprep.subr.mxu0 0.0
    %2148 = vmatpush1.msra.mxu0 0.0
    %2149 = vmatprep.subr.mxu0 0.0
    %2150 = vmatpush1.msra.mxu0 0.0
    %2151 = vmatprep.subr.mxu0 0.0
    %2152 = vmatpush1.msra.mxu0 0.0
    %2153 = vmatprep.subr.mxu0 0.0
    %2154 = vmatpush1.msra.mxu0 0.0
    %2155 = vmatprep.subr.mxu0 0.0
    %2156 = vmatpush1.msra.mxu0 0.0
    %2157 = vmatprep.subr.mxu0 0.0
    %2158 = vmatpush1.msra.mxu0 0.0
    %2159 = vmatprep.mubr.f32.mxu0 0.0
    %2160 = vmatmul.mubr.f32.gmra.mrb[0].mxu0 %v2093
    %v2161 = vpop.f32.mrb[0].mxu0
    %v2162 = vadd.f32 0.0, %v2161
    %v2163 = vpop.f32.mrb[0].mxu0
    %v2164 = vadd.f32 0.0, %v2163
    %2165 = vdwg.mxu0
    %v2166 = vadd.f32 %v2088, %v2162
    %v2167 = vadd.f32 %v2089, %v2164
    %v2168 = vtanh.pop %v2166
    %v2169 = vtanh.pop %v2167
    %v2170 = vxor.u32 %v2166, 2147483648
    %v2171 = vxor.u32 %v2167, 2147483648
    %v2172 = vmul.f32 %v2170, 1.442695
    %v2173 = vpow.pop %v2172
    %v2174 = vmul.f32 %v2171, 1.442695
    %v2175 = vpow.pop %v2174
    %v2176 = vadd.f32 %v2173, 1.0
    %v2177 = vadd.f32 %v2175, 1.0
    %v2178 = vrcp.pop %v2176
    %v2179 = vmul.f32 1.0, %v2178
    %v2180 = vrcp.pop %v2177
    %v2181 = vmul.f32 1.0, %v2180
    %v2182 = vsel %vm122, %v2168, %v2179
    %v2183 = vsel %vm123, %v2169, %v2181
    %v2184 = vmul.f32 %v2182, %v2085
    %v2185 = vmul.f32 %v2182, %v2183
    %2187 = vrot.lane.b32.xlu0 %v2185, 64
    %v2188 = vpop.permute.xlu0 %2187
    %v2190 = vadd.f32 %v2184, %v2188
    %v2191 = vtanh.pop %v2190
    %v2192 = vmul.f32 %v2183, %v2191
    %v2193 = vsel %vm116, %v1598, %v1820
    %v2194 = vsel %vm117, %v1600, %v1822
    %2196 = vrot.lane.b32.xlu0 %v2192, 64
    %v2197 = vpop.permute.xlu0 %2196
    %v2198 = vsel %vm496, %v2197, 0
    %2200 = vmatprep.subr.mxu0 %v1973
    %2201 = vmatpush1.msra.mxu0 %v1972
    %2202 = vmatprep.subr.mxu0 %v1975
    %2203 = vmatpush1.msra.mxu0 %v1974
    %2204 = vmatprep.subr.mxu0 %v1977
    %2205 = vmatpush1.msra.mxu0 %v1976
    %2206 = vmatprep.subr.mxu0 %v1979
    %2207 = vmatpush1.msra.mxu0 %v1978
    %2208 = vmatprep.subr.mxu0 %v1981
    %2209 = vmatpush1.msra.mxu0 %v1980
    %2210 = vmatprep.subr.mxu0 %v1983
    %2211 = vmatpush1.msra.mxu0 %v1982
    %2212 = vmatprep.subr.mxu0 %v1985
    %2213 = vmatpush1.msra.mxu0 %v1984
    %2214 = vmatprep.subr.mxu0 %v1987
    %2215 = vmatpush1.msra.mxu0 %v1986
    %2216 = vmatprep.subr.mxu0 0.0
    %2217 = vmatpush1.msra.mxu0 0.0
    %2218 = vmatprep.subr.mxu0 0.0
    %2219 = vmatpush1.msra.mxu0 0.0
    %2220 = vmatprep.subr.mxu0 0.0
    %2221 = vmatpush1.msra.mxu0 0.0
    %2222 = vmatprep.subr.mxu0 0.0
    %2223 = vmatpush1.msra.mxu0 0.0
    %2224 = vmatprep.subr.mxu0 0.0
    %2225 = vmatpush1.msra.mxu0 0.0
    %2226 = vmatprep.subr.mxu0 0.0
    %2227 = vmatpush1.msra.mxu0 0.0
    %2228 = vmatprep.subr.mxu0 0.0
    %2229 = vmatpush1.msra.mxu0 0.0
    %2230 = vmatprep.subr.mxu0 0.0
    %2231 = vmatpush1.msra.mxu0 0.0
    %2232 = vmatprep.subr.mxu0 0.0
    %2233 = vmatpush1.msra.mxu0 0.0
    %2234 = vmatprep.subr.mxu0 0.0
    %2235 = vmatpush1.msra.mxu0 0.0
    %2236 = vmatprep.subr.mxu0 0.0
    %2237 = vmatpush1.msra.mxu0 0.0
    %2238 = vmatprep.subr.mxu0 0.0
    %2239 = vmatpush1.msra.mxu0 0.0
    %2240 = vmatprep.subr.mxu0 0.0
    %2241 = vmatpush1.msra.mxu0 0.0
    %2242 = vmatprep.subr.mxu0 0.0
    %2243 = vmatpush1.msra.mxu0 0.0
    %2244 = vmatprep.subr.mxu0 0.0
    %2245 = vmatpush1.msra.mxu0 0.0
    %2246 = vmatprep.subr.mxu0 0.0
    %2247 = vmatpush1.msra.mxu0 0.0
    %2248 = vmatprep.subr.mxu0 0.0
    %2249 = vmatpush1.msra.mxu0 0.0
    %2250 = vmatprep.subr.mxu0 0.0
    %2251 = vmatpush1.msra.mxu0 0.0
    %2252 = vmatprep.subr.mxu0 0.0
    %2253 = vmatpush1.msra.mxu0 0.0
    %2254 = vmatprep.subr.mxu0 0.0
    %2255 = vmatpush1.msra.mxu0 0.0
    %2256 = vmatprep.subr.mxu0 0.0
    %2257 = vmatpush1.msra.mxu0 0.0
    %2258 = vmatprep.subr.mxu0 0.0
    %2259 = vmatpush1.msra.mxu0 0.0
    %2260 = vmatprep.subr.mxu0 0.0
    %2261 = vmatpush1.msra.mxu0 0.0
    %2262 = vmatprep.subr.mxu0 0.0
    %2263 = vmatpush1.msra.mxu0 0.0
    %2264 = vmatprep.mubr.f32.mxu0 0.0
    %2265 = vmatmul.mubr.f32.gmra.mrb[0].mxu0 %v2198
    %v2266 = vpop.f32.mrb[0].mxu0
    %v2267 = vadd.f32 0.0, %v2266
    %v2268 = vpop.f32.mrb[0].mxu0
    %v2269 = vadd.f32 0.0, %v2268
    %2270 = vdwg.mxu0
    %v2271 = vadd.f32 %v2193, %v2267
    %v2272 = vadd.f32 %v2194, %v2269
    %v2273 = vtanh.pop %v2271
    %v2274 = vtanh.pop %v2272
    %v2275 = vxor.u32 %v2271, 2147483648
    %v2276 = vxor.u32 %v2272, 2147483648
    %v2277 = vmul.f32 %v2275, 1.442695
    %v2278 = vpow.pop %v2277
    %v2279 = vmul.f32 %v2276, 1.442695
    %v2280 = vpow.pop %v2279
    %v2281 = vadd.f32 %v2278, 1.0
    %v2282 = vadd.f32 %v2280, 1.0
    %v2283 = vrcp.pop %v2281
    %v2284 = vmul.f32 1.0, %v2283
    %v2285 = vrcp.pop %v2282
    %v2286 = vmul.f32 1.0, %v2285
    %v2287 = vsel %vm122, %v2273, %v2284
    %v2288 = vsel %vm123, %v2274, %v2286
    %v2289 = vmul.f32 %v2287, %v2190
    %v2290 = vmul.f32 %v2287, %v2288
    %2292 = vrot.lane.b32.xlu0 %v2290, 64
    %v2293 = vpop.permute.xlu0 %2292
    %v2295 = vadd.f32 %v2289, %v2293
    %v2296 = vtanh.pop %v2295
    %v2297 = vmul.f32 %v2288, %v2296
    %v2298 = vsel %vm116, %v1672, %v1746
    %v2299 = vsel %vm117, %v1674, %v1748
    %2301 = vrot.lane.b32.xlu0 %v2297, 64
    %v2302 = vpop.permute.xlu0 %2301
    %v2303 = vsel %vm496, %v2302, 0
    %2305 = vmatprep.subr.mxu0 %v1973
    %2306 = vmatpush1.msra.mxu0 %v1972
    %2307 = vmatprep.subr.mxu0 %v1975
    %2308 = vmatpush1.msra.mxu0 %v1974
    %2309 = vmatprep.subr.mxu0 %v1977
    %2310 = vmatpush1.msra.mxu0 %v1976
    %2311 = vmatprep.subr.mxu0 %v1979
    %2312 = vmatpush1.msra.mxu0 %v1978
    %2313 = vmatprep.subr.mxu0 %v1981
    %2314 = vmatpush1.msra.mxu0 %v1980
    %2315 = vmatprep.subr.mxu0 %v1983
    %2316 = vmatpush1.msra.mxu0 %v1982
    %2317 = vmatprep.subr.mxu0 %v1985
    %2318 = vmatpush1.msra.mxu0 %v1984
    %2319 = vmatprep.subr.mxu0 %v1987
    %2320 = vmatpush1.msra.mxu0 %v1986
    %2321 = vmatprep.subr.mxu0 0.0
    %2322 = vmatpush1.msra.mxu0 0.0
    %2323 = vmatprep.subr.mxu0 0.0
    %2324 = vmatpush1.msra.mxu0 0.0
    %2325 = vmatprep.subr.mxu0 0.0
    %2326 = vmatpush1.msra.mxu0 0.0
    %2327 = vmatprep.subr.mxu0 0.0
    %2328 = vmatpush1.msra.mxu0 0.0
    %2329 = vmatprep.subr.mxu0 0.0
    %2330 = vmatpush1.msra.mxu0 0.0
    %2331 = vmatprep.subr.mxu0 0.0
    %2332 = vmatpush1.msra.mxu0 0.0
    %2333 = vmatprep.subr.mxu0 0.0
    %2334 = vmatpush1.msra.mxu0 0.0
    %2335 = vmatprep.subr.mxu0 0.0
    %2336 = vmatpush1.msra.mxu0 0.0
    %2337 = vmatprep.subr.mxu0 0.0
    %2338 = vmatpush1.msra.mxu0 0.0
    %2339 = vmatprep.subr.mxu0 0.0
    %2340 = vmatpush1.msra.mxu0 0.0
    %2341 = vmatprep.subr.mxu0 0.0
    %2342 = vmatpush1.msra.mxu0 0.0
    %2343 = vmatprep.subr.mxu0 0.0
    %2344 = vmatpush1.msra.mxu0 0.0
    %2345 = vmatprep.subr.mxu0 0.0
    %2346 = vmatpush1.msra.mxu0 0.0
    %2347 = vmatprep.subr.mxu0 0.0
    %2348 = vmatpush1.msra.mxu0 0.0
    %2349 = vmatprep.subr.mxu0 0.0
    %2350 = vmatpush1.msra.mxu0 0.0
    %2351 = vmatprep.subr.mxu0 0.0
    %2352 = vmatpush1.msra.mxu0 0.0
    %2353 = vmatprep.subr.mxu0 0.0
    %2354 = vmatpush1.msra.mxu0 0.0
    %2355 = vmatprep.subr.mxu0 0.0
    %2356 = vmatpush1.msra.mxu0 0.0
    %2357 = vmatprep.subr.mxu0 0.0
    %2358 = vmatpush1.msra.mxu0 0.0
    %2359 = vmatprep.subr.mxu0 0.0
    %2360 = vmatpush1.msra.mxu0 0.0
    %2361 = vmatprep.subr.mxu0 0.0
    %2362 = vmatpush1.msra.mxu0 0.0
    %2363 = vmatprep.subr.mxu0 0.0
    %2364 = vmatpush1.msra.mxu0 0.0
    %2365 = vmatprep.subr.mxu0 0.0
    %2366 = vmatpush1.msra.mxu0 0.0
    %2367 = vmatprep.subr.mxu0 0.0
    %2368 = vmatpush1.msra.mxu0 0.0
    %2369 = vmatprep.mubr.f32.mxu0 0.0
    %2370 = vmatmul.mubr.f32.gmra.mrb[0].mxu0 %v2303
    %v2371 = vpop.f32.mrb[0].mxu0
    %v2372 = vadd.f32 0.0, %v2371
    %v2373 = vpop.f32.mrb[0].mxu0
    %v2374 = vadd.f32 0.0, %v2373
    %2375 = vdwg.mxu0
    %v2376 = vadd.f32 %v2298, %v2372
    %v2377 = vadd.f32 %v2299, %v2374
    %v2378 = vtanh.pop %v2376
    %v2379 = vtanh.pop %v2377
    %v2380 = vxor.u32 %v2376, 2147483648
    %v2381 = vxor.u32 %v2377, 2147483648
    %v2382 = vmul.f32 %v2380, 1.442695
    %v2383 = vpow.pop %v2382
    %v2384 = vmul.f32 %v2381, 1.442695
    %v2385 = vpow.pop %v2384
    %v2386 = vadd.f32 %v2383, 1.0
    %v2387 = vadd.f32 %v2385, 1.0
    %v2388 = vrcp.pop %v2386
    %v2389 = vmul.f32 1.0, %v2388
    %v2390 = vrcp.pop %v2387
    %v2391 = vmul.f32 1.0, %v2390
    %v2392 = vsel %vm122, %v2378, %v2389
    %v2393 = vsel %vm123, %v2379, %v2391
    %v2394 = vmul.f32 %v2392, %v2295
    %v2395 = vmul.f32 %v2392, %v2393
    %2397 = vrot.lane.b32.xlu0 %v2395, 64
    %v2398 = vpop.permute.xlu0 %2397
    %v2400 = vadd.f32 %v2394, %v2398
    %v2401 = vtanh.pop %v2400
    %v2402 = vmul.f32 %v2393, %v2401
    %v2403 = vsel %vm116, %v1746, %v1672
    %v2404 = vsel %vm117, %v1748, %v1674
    %2406 = vrot.lane.b32.xlu0 %v2402, 64
    %v2407 = vpop.permute.xlu0 %2406
    %v2408 = vsel %vm496, %v2407, 0
    %2410 = vmatprep.subr.mxu0 %v1973
    %2411 = vmatpush1.msra.mxu0 %v1972
    %2412 = vmatprep.subr.mxu0 %v1975
    %2413 = vmatpush1.msra.mxu0 %v1974
    %2414 = vmatprep.subr.mxu0 %v1977
    %2415 = vmatpush1.msra.mxu0 %v1976
    %2416 = vmatprep.subr.mxu0 %v1979
    %2417 = vmatpush1.msra.mxu0 %v1978
    %2418 = vmatprep.subr.mxu0 %v1981
    %2419 = vmatpush1.msra.mxu0 %v1980
    %2420 = vmatprep.subr.mxu0 %v1983
    %2421 = vmatpush1.msra.mxu0 %v1982
    %2422 = vmatprep.subr.mxu0 %v1985
    %2423 = vmatpush1.msra.mxu0 %v1984
    %2424 = vmatprep.subr.mxu0 %v1987
    %2425 = vmatpush1.msra.mxu0 %v1986
    %2426 = vmatprep.subr.mxu0 0.0
    %2427 = vmatpush1.msra.mxu0 0.0
    %2428 = vmatprep.subr.mxu0 0.0
    %2429 = vmatpush1.msra.mxu0 0.0
    %2430 = vmatprep.subr.mxu0 0.0
    %2431 = vmatpush1.msra.mxu0 0.0
    %2432 = vmatprep.subr.mxu0 0.0
    %2433 = vmatpush1.msra.mxu0 0.0
    %2434 = vmatprep.subr.mxu0 0.0
    %2435 = vmatpush1.msra.mxu0 0.0
    %2436 = vmatprep.subr.mxu0 0.0
    %2437 = vmatpush1.msra.mxu0 0.0
    %2438 = vmatprep.subr.mxu0 0.0
    %2439 = vmatpush1.msra.mxu0 0.0
    %2440 = vmatprep.subr.mxu0 0.0
    %2441 = vmatpush1.msra.mxu0 0.0
    %2442 = vmatprep.subr.mxu0 0.0
    %2443 = vmatpush1.msra.mxu0 0.0
    %2444 = vmatprep.subr.mxu0 0.0
    %2445 = vmatpush1.msra.mxu0 0.0
    %2446 = vmatprep.subr.mxu0 0.0
    %2447 = vmatpush1.msra.mxu0 0.0
    %2448 = vmatprep.subr.mxu0 0.0
    %2449 = vmatpush1.msra.mxu0 0.0
    %2450 = vmatprep.subr.mxu0 0.0
    %2451 = vmatpush1.msra.mxu0 0.0
    %2452 = vmatprep.subr.mxu0 0.0
    %2453 = vmatpush1.msra.mxu0 0.0
    %2454 = vmatprep.subr.mxu0 0.0
    %2455 = vmatpush1.msra.mxu0 0.0
    %2456 = vmatprep.subr.mxu0 0.0
    %2457 = vmatpush1.msra.mxu0 0.0
    %2458 = vmatprep.subr.mxu0 0.0
    %2459 = vmatpush1.msra.mxu0 0.0
    %2460 = vmatprep.subr.mxu0 0.0
    %2461 = vmatpush1.msra.mxu0 0.0
    %2462 = vmatprep.subr.mxu0 0.0
    %2463 = vmatpush1.msra.mxu0 0.0
    %2464 = vmatprep.subr.mxu0 0.0
    %2465 = vmatpush1.msra.mxu0 0.0
    %2466 = vmatprep.subr.mxu0 0.0
    %2467 = vmatpush1.msra.mxu0 0.0
    %2468 = vmatprep.subr.mxu0 0.0
    %2469 = vmatpush1.msra.mxu0 0.0
    %2470 = vmatprep.subr.mxu0 0.0
    %2471 = vmatpush1.msra.mxu0 0.0
    %2472 = vmatprep.subr.mxu0 0.0
    %2473 = vmatpush1.msra.mxu0 0.0
    %2474 = vmatprep.mubr.f32.mxu0 0.0
    %2475 = vmatmul.mubr.f32.gmra.mrb[0].mxu0 %v2408
    %v2476 = vpop.f32.mrb[0].mxu0
    %v2477 = vadd.f32 0.0, %v2476
    %v2478 = vpop.f32.mrb[0].mxu0
    %v2479 = vadd.f32 0.0, %v2478
    %2480 = vdwg.mxu0
    %v2481 = vadd.f32 %v2403, %v2477
    %v2482 = vadd.f32 %v2404, %v2479
    %v2483 = vtanh.pop %v2481
    %v2484 = vtanh.pop %v2482
    %v2485 = vxor.u32 %v2481, 2147483648
    %v2486 = vxor.u32 %v2482, 2147483648
    %v2487 = vmul.f32 %v2485, 1.442695
    %v2488 = vpow.pop %v2487
    %v2489 = vmul.f32 %v2486, 1.442695
    %v2490 = vpow.pop %v2489
    %v2491 = vadd.f32 %v2488, 1.0
    %v2492 = vadd.f32 %v2490, 1.0
    %v2493 = vrcp.pop %v2491
    %v2494 = vmul.f32 1.0, %v2493
    %v2495 = vrcp.pop %v2492
    %v2496 = vmul.f32 1.0, %v2495
    %v2497 = vsel %vm122, %v2483, %v2494
    %v2498 = vsel %vm123, %v2484, %v2496
    %v2499 = vmul.f32 %v2497, %v2400
    %v2500 = vmul.f32 %v2497, %v2498
    %2502 = vrot.lane.b32.xlu0 %v2500, 64
    %v2503 = vpop.permute.xlu0 %2502
    %v2505 = vadd.f32 %v2499, %v2503
    %v2506 = vtanh.pop %v2505
    %v2507 = vmul.f32 %v2498, %v2506
    %v2508 = vsel %vm116, %v1820, %v1598
    %v2509 = vsel %vm117, %v1822, %v1600
    %2511 = vrot.lane.b32.xlu0 %v2507, 64
    %v2512 = vpop.permute.xlu0 %2511
    %v2513 = vsel %vm496, %v2512, 0
    %2515 = vmatprep.subr.mxu0 %v1973
    %2516 = vmatpush1.msra.mxu0 %v1972
    %2517 = vmatprep.subr.mxu0 %v1975
    %2518 = vmatpush1.msra.mxu0 %v1974
    %2519 = vmatprep.subr.mxu0 %v1977
    %2520 = vmatpush1.msra.mxu0 %v1976
    %2521 = vmatprep.subr.mxu0 %v1979
    %2522 = vmatpush1.msra.mxu0 %v1978
    %2523 = vmatprep.subr.mxu0 %v1981
    %2524 = vmatpush1.msra.mxu0 %v1980
    %2525 = vmatprep.subr.mxu0 %v1983
    %2526 = vmatpush1.msra.mxu0 %v1982
    %2527 = vmatprep.subr.mxu0 %v1985
    %2528 = vmatpush1.msra.mxu0 %v1984
    %2529 = vmatprep.subr.mxu0 %v1987
    %2530 = vmatpush1.msra.mxu0 %v1986
    %2531 = vmatprep.subr.mxu0 0.0
    %2532 = vmatpush1.msra.mxu0 0.0
    %2533 = vmatprep.subr.mxu0 0.0
    %2534 = vmatpush1.msra.mxu0 0.0
    %2535 = vmatprep.subr.mxu0 0.0
    %2536 = vmatpush1.msra.mxu0 0.0
    %2537 = vmatprep.subr.mxu0 0.0
    %2538 = vmatpush1.msra.mxu0 0.0
    %2539 = vmatprep.subr.mxu0 0.0
    %2540 = vmatpush1.msra.mxu0 0.0
    %2541 = vmatprep.subr.mxu0 0.0
    %2542 = vmatpush1.msra.mxu0 0.0
    %2543 = vmatprep.subr.mxu0 0.0
    %2544 = vmatpush1.msra.mxu0 0.0
    %2545 = vmatprep.subr.mxu0 0.0
    %2546 = vmatpush1.msra.mxu0 0.0
    %2547 = vmatprep.subr.mxu0 0.0
    %2548 = vmatpush1.msra.mxu0 0.0
    %2549 = vmatprep.subr.mxu0 0.0
    %2550 = vmatpush1.msra.mxu0 0.0
    %2551 = vmatprep.subr.mxu0 0.0
    %2552 = vmatpush1.msra.mxu0 0.0
    %2553 = vmatprep.subr.mxu0 0.0
    %2554 = vmatpush1.msra.mxu0 0.0
    %2555 = vmatprep.subr.mxu0 0.0
    %2556 = vmatpush1.msra.mxu0 0.0
    %2557 = vmatprep.subr.mxu0 0.0
    %2558 = vmatpush1.msra.mxu0 0.0
    %2559 = vmatprep.subr.mxu0 0.0
    %2560 = vmatpush1.msra.mxu0 0.0
    %2561 = vmatprep.subr.mxu0 0.0
    %2562 = vmatpush1.msra.mxu0 0.0
    %2563 = vmatprep.subr.mxu0 0.0
    %2564 = vmatpush1.msra.mxu0 0.0
    %2565 = vmatprep.subr.mxu0 0.0
    %2566 = vmatpush1.msra.mxu0 0.0
    %2567 = vmatprep.subr.mxu0 0.0
    %2568 = vmatpush1.msra.mxu0 0.0
    %2569 = vmatprep.subr.mxu0 0.0
    %2570 = vmatpush1.msra.mxu0 0.0
    %2571 = vmatprep.subr.mxu0 0.0
    %2572 = vmatpush1.msra.mxu0 0.0
    %2573 = vmatprep.subr.mxu0 0.0
    %2574 = vmatpush1.msra.mxu0 0.0
    %2575 = vmatprep.subr.mxu0 0.0
    %2576 = vmatpush1.msra.mxu0 0.0
    %2577 = vmatprep.subr.mxu0 0.0
    %2578 = vmatpush1.msra.mxu0 0.0
    %2579 = vmatprep.mubr.f32.mxu0 0.0
    %2580 = vmatmul.mubr.f32.gmra.mrb[0].mxu0 %v2513
    %v2581 = vpop.f32.mrb[0].mxu0
    %v2582 = vadd.f32 0.0, %v2581
    %v2583 = vpop.f32.mrb[0].mxu0
    %v2584 = vadd.f32 0.0, %v2583
    %2585 = vdwg.mxu0
    %v2586 = vadd.f32 %v2508, %v2582
    %v2587 = vadd.f32 %v2509, %v2584
    %v2588 = vtanh.pop %v2586
    %v2589 = vtanh.pop %v2587
    %v2590 = vxor.u32 %v2586, 2147483648
    %v2591 = vxor.u32 %v2587, 2147483648
    %v2592 = vmul.f32 %v2590, 1.442695
    %v2593 = vpow.pop %v2592
    %v2594 = vmul.f32 %v2591, 1.442695
    %v2595 = vpow.pop %v2594
    %v2596 = vadd.f32 %v2593, 1.0
    %v2597 = vadd.f32 %v2595, 1.0
    %v2598 = vrcp.pop %v2596
    %v2599 = vmul.f32 1.0, %v2598
    %v2600 = vrcp.pop %v2597
    %v2601 = vmul.f32 1.0, %v2600
    %v2602 = vsel %vm122, %v2588, %v2599
    %v2603 = vsel %vm123, %v2589, %v2601
    %v2604 = vmul.f32 %v2602, %v2505
    %v2605 = vmul.f32 %v2602, %v2603
    %2607 = vrot.lane.b32.xlu0 %v2605, 64
    %v2608 = vpop.permute.xlu0 %2607
    %v2610 = vadd.f32 %v2604, %v2608
    %v2611 = vtanh.pop %v2610
    %v2612 = vmul.f32 %v2603, %v2611
    %v2613 = vsel %vm116, %v1894, %v1524
    %v2614 = vsel %vm117, %v1896, %v1526
    %2616 = vrot.lane.b32.xlu0 %v2612, 64
    %v2617 = vpop.permute.xlu0 %2616
    %v2618 = vsel %vm496, %v2617, 0
    %2620 = vmatprep.subr.mxu0 %v1973
    %2621 = vmatpush1.msra.mxu0 %v1972
    %2622 = vmatprep.subr.mxu0 %v1975
    %2623 = vmatpush1.msra.mxu0 %v1974
    %2624 = vmatprep.subr.mxu0 %v1977
    %2625 = vmatpush1.msra.mxu0 %v1976
    %2626 = vmatprep.subr.mxu0 %v1979
    %2627 = vmatpush1.msra.mxu0 %v1978
    %2628 = vmatprep.subr.mxu0 %v1981
    %2629 = vmatpush1.msra.mxu0 %v1980
    %2630 = vmatprep.subr.mxu0 %v1983
    %2631 = vmatpush1.msra.mxu0 %v1982
    %2632 = vmatprep.subr.mxu0 %v1985
    %2633 = vmatpush1.msra.mxu0 %v1984
    %2634 = vmatprep.subr.mxu0 %v1987
    %2635 = vmatpush1.msra.mxu0 %v1986
    %2636 = vmatprep.subr.mxu0 0.0
    %2637 = vmatpush1.msra.mxu0 0.0
    %2638 = vmatprep.subr.mxu0 0.0
    %2639 = vmatpush1.msra.mxu0 0.0
    %2640 = vmatprep.subr.mxu0 0.0
    %2641 = vmatpush1.msra.mxu0 0.0
    %2642 = vmatprep.subr.mxu0 0.0
    %2643 = vmatpush1.msra.mxu0 0.0
    %2644 = vmatprep.subr.mxu0 0.0
    %2645 = vmatpush1.msra.mxu0 0.0
    %2646 = vmatprep.subr.mxu0 0.0
    %2647 = vmatpush1.msra.mxu0 0.0
    %2648 = vmatprep.subr.mxu0 0.0
    %2649 = vmatpush1.msra.mxu0 0.0
    %2650 = vmatprep.subr.mxu0 0.0
    %2651 = vmatpush1.msra.mxu0 0.0
    %2652 = vmatprep.subr.mxu0 0.0
    %2653 = vmatpush1.msra.mxu0 0.0
    %2654 = vmatprep.subr.mxu0 0.0
    %2655 = vmatpush1.msra.mxu0 0.0
    %2656 = vmatprep.subr.mxu0 0.0
    %2657 = vmatpush1.msra.mxu0 0.0
    %2658 = vmatprep.subr.mxu0 0.0
    %2659 = vmatpush1.msra.mxu0 0.0
    %2660 = vmatprep.subr.mxu0 0.0
    %2661 = vmatpush1.msra.mxu0 0.0
    %2662 = vmatprep.subr.mxu0 0.0
    %2663 = vmatpush1.msra.mxu0 0.0
    %2664 = vmatprep.subr.mxu0 0.0
    %2665 = vmatpush1.msra.mxu0 0.0
    %2666 = vmatprep.subr.mxu0 0.0
    %2667 = vmatpush1.msra.mxu0 0.0
    %2668 = vmatprep.subr.mxu0 0.0
    %2669 = vmatpush1.msra.mxu0 0.0
    %2670 = vmatprep.subr.mxu0 0.0
    %2671 = vmatpush1.msra.mxu0 0.0
    %2672 = vmatprep.subr.mxu0 0.0
    %2673 = vmatpush1.msra.mxu0 0.0
    %2674 = vmatprep.subr.mxu0 0.0
    %2675 = vmatpush1.msra.mxu0 0.0
    %2676 = vmatprep.subr.mxu0 0.0
    %2677 = vmatpush1.msra.mxu0 0.0
    %2678 = vmatprep.subr.mxu0 0.0
    %2679 = vmatpush1.msra.mxu0 0.0
    %2680 = vmatprep.subr.mxu0 0.0
    %2681 = vmatpush1.msra.mxu0 0.0
    %2682 = vmatprep.subr.mxu0 0.0
    %2683 = vmatpush1.msra.mxu0 0.0
    %2684 = vmatprep.mubr.f32.mxu0 0.0
    %2685 = vmatmul.mubr.f32.gmra.mrb[0].mxu0 %v2618
    %v2686 = vpop.f32.mrb[0].mxu0
    %v2687 = vadd.f32 0.0, %v2686
    %v2688 = vpop.f32.mrb[0].mxu0
    %v2689 = vadd.f32 0.0, %v2688
    %2690 = vdwg.mxu0
    %v2691 = vadd.f32 %v2613, %v2687
    %v2692 = vadd.f32 %v2614, %v2689
    %v2693 = vtanh.pop %v2691
    %v2694 = vtanh.pop %v2692
    %v2695 = vxor.u32 %v2691, 2147483648
    %v2696 = vxor.u32 %v2692, 2147483648
    %v2697 = vmul.f32 %v2695, 1.442695
    %v2698 = vpow.pop %v2697
    %v2699 = vmul.f32 %v2696, 1.442695
    %v2700 = vpow.pop %v2699
    %v2701 = vadd.f32 %v2698, 1.0
    %v2702 = vadd.f32 %v2700, 1.0
    %v2703 = vrcp.pop %v2701
    %v2704 = vmul.f32 1.0, %v2703
    %v2705 = vrcp.pop %v2702
    %v2706 = vmul.f32 1.0, %v2705
    %v2707 = vsel %vm122, %v2693, %v2704
    %v2708 = vsel %vm123, %v2694, %v2706
    %v2709 = vmul.f32 %v2707, %v2610
    %v2710 = vmul.f32 %v2707, %v2708
    %2712 = vrot.lane.b32.xlu0 %v2710, 64
    %v2713 = vpop.permute.xlu0 %2712
    %v2715 = vadd.f32 %v2709, %v2713
    %v2716 = vtanh.pop %v2715
    %v2717 = vmul.f32 %v2708, %v2716
    %v2718 = vsel %vm116, %v1968, %v1450
    %v2719 = vsel %vm117, %v1970, %v1452
    %2721 = vrot.lane.b32.xlu0 %v2717, 64
    %v2722 = vpop.permute.xlu0 %2721
    %v2723 = vsel %vm496, %v2722, 0
    %2725 = vmatprep.subr.mxu0 %v1973
    %2726 = vmatpush1.msra.mxu0 %v1972
    %2727 = vmatprep.subr.mxu0 %v1975
    %2728 = vmatpush1.msra.mxu0 %v1974
    %2729 = vmatprep.subr.mxu0 %v1977
    %2730 = vmatpush1.msra.mxu0 %v1976
    %2731 = vmatprep.subr.mxu0 %v1979
    %2732 = vmatpush1.msra.mxu0 %v1978
    %2733 = vmatprep.subr.mxu0 %v1981
    %2734 = vmatpush1.msra.mxu0 %v1980
    %2735 = vmatprep.subr.mxu0 %v1983
    %2736 = vmatpush1.msra.mxu0 %v1982
    %2737 = vmatprep.subr.mxu0 %v1985
    %2738 = vmatpush1.msra.mxu0 %v1984
    %2739 = vmatprep.subr.mxu0 %v1987
    %2740 = vmatpush1.msra.mxu0 %v1986
    %2741 = vmatprep.subr.mxu0 0.0
    %2742 = vmatpush1.msra.mxu0 0.0
    %2743 = vmatprep.subr.mxu0 0.0
    %2744 = vmatpush1.msra.mxu0 0.0
    %2745 = vmatprep.subr.mxu0 0.0
    %2746 = vmatpush1.msra.mxu0 0.0
    %2747 = vmatprep.subr.mxu0 0.0
    %2748 = vmatpush1.msra.mxu0 0.0
    %2749 = vmatprep.subr.mxu0 0.0
    %2750 = vmatpush1.msra.mxu0 0.0
    %2751 = vmatprep.subr.mxu0 0.0
    %2752 = vmatpush1.msra.mxu0 0.0
    %2753 = vmatprep.subr.mxu0 0.0
    %2754 = vmatpush1.msra.mxu0 0.0
    %2755 = vmatprep.subr.mxu0 0.0
    %2756 = vmatpush1.msra.mxu0 0.0
    %2757 = vmatprep.subr.mxu0 0.0
    %2758 = vmatpush1.msra.mxu0 0.0
    %2759 = vmatprep.subr.mxu0 0.0
    %2760 = vmatpush1.msra.mxu0 0.0
    %2761 = vmatprep.subr.mxu0 0.0
    %2762 = vmatpush1.msra.mxu0 0.0
    %2763 = vmatprep.subr.mxu0 0.0
    %2764 = vmatpush1.msra.mxu0 0.0
    %2765 = vmatprep.subr.mxu0 0.0
    %2766 = vmatpush1.msra.mxu0 0.0
    %2767 = vmatprep.subr.mxu0 0.0
    %2768 = vmatpush1.msra.mxu0 0.0
    %2769 = vmatprep.subr.mxu0 0.0
    %2770 = vmatpush1.msra.mxu0 0.0
    %2771 = vmatprep.subr.mxu0 0.0
    %2772 = vmatpush1.msra.mxu0 0.0
    %2773 = vmatprep.subr.mxu0 0.0
    %2774 = vmatpush1.msra.mxu0 0.0
    %2775 = vmatprep.subr.mxu0 0.0
    %2776 = vmatpush1.msra.mxu0 0.0
    %2777 = vmatprep.subr.mxu0 0.0
    %2778 = vmatpush1.msra.mxu0 0.0
    %2779 = vmatprep.subr.mxu0 0.0
    %2780 = vmatpush1.msra.mxu0 0.0
    %2781 = vmatprep.subr.mxu0 0.0
    %2782 = vmatpush1.msra.mxu0 0.0
    %2783 = vmatprep.subr.mxu0 0.0
    %2784 = vmatpush1.msra.mxu0 0.0
    %2785 = vmatprep.subr.mxu0 0.0
    %2786 = vmatpush1.msra.mxu0 0.0
    %2787 = vmatprep.subr.mxu0 0.0
    %2788 = vmatpush1.msra.mxu0 0.0
    %2789 = vmatprep.mubr.f32.mxu0 0.0
    %2790 = vmatmul.mubr.f32.gmra.mrb[0].mxu0 %v2723
    %v2791 = vpop.f32.mrb[0].mxu0
    %v2792 = vadd.f32 0.0, %v2791
    %v2793 = vpop.f32.mrb[0].mxu0
    %v2794 = vadd.f32 0.0, %v2793
    %2795 = vdwg.mxu0
    %v2796 = vadd.f32 %v2718, %v2792
    %v2797 = vadd.f32 %v2719, %v2794
    %v2798 = vtanh.pop %v2796
    %v2799 = vtanh.pop %v2797
    %v2800 = vxor.u32 %v2796, 2147483648
    %v2801 = vxor.u32 %v2797, 2147483648
    %v2802 = vmul.f32 %v2800, 1.442695
    %v2803 = vpow.pop %v2802
    %v2804 = vmul.f32 %v2801, 1.442695
    %v2805 = vpow.pop %v2804
    %v2806 = vadd.f32 %v2803, 1.0
    %v2807 = vadd.f32 %v2805, 1.0
    %v2808 = vrcp.pop %v2806
    %v2809 = vmul.f32 1.0, %v2808
    %v2810 = vrcp.pop %v2807
    %v2811 = vmul.f32 1.0, %v2810
    %v2812 = vsel %vm122, %v2798, %v2809
    %v2813 = vsel %vm123, %v2799, %v2811
    %v2814 = vmul.f32 %v2812, %v2715
    %v2815 = vmul.f32 %v2812, %v2813
    %2817 = vrot.lane.b32.xlu0 %v2815, 64
    %v2818 = vpop.permute.xlu0 %2817
    %v2820 = vadd.f32 %v2814, %v2818
    %v2821 = vtanh.pop %v2820
    %v2822 = vmul.f32 %v2813, %v2821
    %2825 = vrot.lane.b32.xlu0 %v2822, 64
    %v2826 = vpop.permute.xlu0 %2825
    %v2828 = vsel %vm124, %v2092, %v2826
    %v2831 = vsel %vm124, %v2197, %v2722
    %v2834 = vsel %vm124, %v2302, %v2617
    %v2837 = vsel %vm124, %v2407, %v2512
    %v2838 = vsel %vm124, %v2512, %v2407
    %v2839 = vsel %vm124, %v2617, %v2302
    %v2840 = vsel %vm124, %v2722, %v2197
    %v2841 = vsel %vm124, %v2826, %v2092
    %v2844 = vunpack.c.l.s4 1966171168
    %v2845 = vunpack.c.0.s8 %v2844
    %v2846 = vlaneseq
    %v2847 = vshrl.u32 %v2846, 7
    %v2848 = vsub.s32 %v2845, %v2847
    %v2849 = vrot.slane %v2828, %v2848
    %v2850 = vcombine.high %v2849, %v2849
    %v2852 = vunpack.c.l.s4 1966171168
    %v2853 = vunpack.c.0.s8 %v2852
    %v2854 = vlaneseq
    %v2855 = vshrl.u32 %v2854, 7
    %v2856 = vsub.s32 %v2853, %v2855
    %v2857 = vrot.slane %v2849, %v2856
    %v2859 = vunpack.c.l.s4 1966171168
    %v2860 = vunpack.c.0.s8 %v2859
    %v2861 = vlaneseq
    %v2862 = vshrl.u32 %v2861, 7
    %v2863 = vsub.s32 %v2860, %v2862
    %v2864 = vrot.slane %v2850, %v2863
    %v2869 = vunpack.c.l.s4 1966171168
    %v2870 = vunpack.c.0.s8 %v2869
    %v2871 = vlaneseq
    %v2872 = vshrl.u32 %v2871, 7
    %v2873 = vsub.s32 %v2870, %v2872
    %v2874 = vrot.slane %v2831, %v2873
    %v2875 = vcombine.high %v2874, %v2874
    %v2877 = vunpack.c.l.s4 1966171168
    %v2878 = vunpack.c.0.s8 %v2877
    %v2879 = vlaneseq
    %v2880 = vshrl.u32 %v2879, 7
    %v2881 = vsub.s32 %v2878, %v2880
    %v2882 = vrot.slane %v2874, %v2881
    %v2884 = vunpack.c.l.s4 1966171168
    %v2885 = vunpack.c.0.s8 %v2884
    %v2886 = vlaneseq
    %v2887 = vshrl.u32 %v2886, 7
    %v2888 = vsub.s32 %v2885, %v2887
    %v2889 = vrot.slane %v2875, %v2888
    %v2892 = vunpack.c.l.s4 1966171168
    %v2893 = vunpack.c.0.s8 %v2892
    %v2894 = vlaneseq
    %v2895 = vshrl.u32 %v2894, 7
    %v2896 = vsub.s32 %v2893, %v2895
    %v2897 = vrot.slane %v2834, %v2896
    %v2898 = vcombine.high %v2897, %v2897
    %v2900 = vunpack.c.l.s4 1966171168
    %v2901 = vunpack.c.0.s8 %v2900
    %v2902 = vlaneseq
    %v2903 = vshrl.u32 %v2902, 7
    %v2904 = vsub.s32 %v2901, %v2903
    %v2905 = vrot.slane %v2897, %v2904
    %v2907 = vunpack.c.l.s4 1966171168
    %v2908 = vunpack.c.0.s8 %v2907
    %v2909 = vlaneseq
    %v2910 = vshrl.u32 %v2909, 7
    %v2911 = vsub.s32 %v2908, %v2910
    %v2912 = vrot.slane %v2898, %v2911
    %v2915 = vunpack.c.l.s4 1966171168
    %v2916 = vunpack.c.0.s8 %v2915
    %v2917 = vlaneseq
    %v2918 = vshrl.u32 %v2917, 7
    %v2919 = vsub.s32 %v2916, %v2918
    %v2920 = vrot.slane %v2837, %v2919
    %v2921 = vcombine.high %v2920, %v2920
    %v2923 = vunpack.c.l.s4 1966171168
    %v2924 = vunpack.c.0.s8 %v2923
    %v2925 = vlaneseq
    %v2926 = vshrl.u32 %v2925, 7
    %v2927 = vsub.s32 %v2924, %v2926
    %v2928 = vrot.slane %v2920, %v2927
    %v2930 = vunpack.c.l.s4 1966171168
    %v2931 = vunpack.c.0.s8 %v2930
    %v2932 = vlaneseq
    %v2933 = vshrl.u32 %v2932, 7
    %v2934 = vsub.s32 %v2931, %v2933
    %v2935 = vrot.slane %v2921, %v2934
    %v2938 = vunpack.c.l.s4 1966171168
    %v2939 = vunpack.c.0.s8 %v2938
    %v2940 = vlaneseq
    %v2941 = vshrl.u32 %v2940, 7
    %v2942 = vsub.s32 %v2939, %v2941
    %v2943 = vrot.slane %v2838, %v2942
    %v2944 = vcombine.high %v2943, %v2943
    %v2946 = vunpack.c.l.s4 1966171168
    %v2947 = vunpack.c.0.s8 %v2946
    %v2948 = vlaneseq
    %v2949 = vshrl.u32 %v2948, 7
    %v2950 = vsub.s32 %v2947, %v2949
    %v2951 = vrot.slane %v2943, %v2950
    %v2953 = vunpack.c.l.s4 1966171168
    %v2954 = vunpack.c.0.s8 %v2953
    %v2955 = vlaneseq
    %v2956 = vshrl.u32 %v2955, 7
    %v2957 = vsub.s32 %v2954, %v2956
    %v2958 = vrot.slane %v2944, %v2957
    %v2961 = vunpack.c.l.s4 1966171168
    %v2962 = vunpack.c.0.s8 %v2961
    %v2963 = vlaneseq
    %v2964 = vshrl.u32 %v2963, 7
    %v2965 = vsub.s32 %v2962, %v2964
    %v2966 = vrot.slane %v2839, %v2965
    %v2967 = vcombine.high %v2966, %v2966
    %v2969 = vunpack.c.l.s4 1966171168
    %v2970 = vunpack.c.0.s8 %v2969
    %v2971 = vlaneseq
    %v2972 = vshrl.u32 %v2971, 7
    %v2973 = vsub.s32 %v2970, %v2972
    %v2974 = vrot.slane %v2966, %v2973
    %v2976 = vunpack.c.l.s4 1966171168
    %v2977 = vunpack.c.0.s8 %v2976
    %v2978 = vlaneseq
    %v2979 = vshrl.u32 %v2978, 7
    %v2980 = vsub.s32 %v2977, %v2979
    %v2981 = vrot.slane %v2967, %v2980
    %v2984 = vunpack.c.l.s4 1966171168
    %v2985 = vunpack.c.0.s8 %v2984
    %v2986 = vlaneseq
    %v2987 = vshrl.u32 %v2986, 7
    %v2988 = vsub.s32 %v2985, %v2987
    %v2989 = vrot.slane %v2840, %v2988
    %v2990 = vcombine.high %v2989, %v2989
    %v2992 = vunpack.c.l.s4 1966171168
    %v2993 = vunpack.c.0.s8 %v2992
    %v2994 = vlaneseq
    %v2995 = vshrl.u32 %v2994, 7
    %v2996 = vsub.s32 %v2993, %v2995
    %v2997 = vrot.slane %v2989, %v2996
    %v2999 = vunpack.c.l.s4 1966171168
    %v3000 = vunpack.c.0.s8 %v2999
    %v3001 = vlaneseq
    %v3002 = vshrl.u32 %v3001, 7
    %v3003 = vsub.s32 %v3000, %v3002
    %v3004 = vrot.slane %v2990, %v3003
    %v3007 = vunpack.c.l.s4 1966171168
    %v3008 = vunpack.c.0.s8 %v3007
    %v3009 = vlaneseq
    %v3010 = vshrl.u32 %v3009, 7
    %v3011 = vsub.s32 %v3008, %v3010
    %v3012 = vrot.slane %v2841, %v3011
    %v3013 = vcombine.high %v3012, %v3012
    %v3015 = vunpack.c.l.s4 1966171168
    %v3016 = vunpack.c.0.s8 %v3015
    %v3017 = vlaneseq
    %v3018 = vshrl.u32 %v3017, 7
    %v3019 = vsub.s32 %v3016, %v3018
    %v3020 = vrot.slane %v3012, %v3019
    %v3022 = vunpack.c.l.s4 1966171168
    %v3023 = vunpack.c.0.s8 %v3022
    %v3024 = vlaneseq
    %v3025 = vshrl.u32 %v3024, 7
    %v3026 = vsub.s32 %v3023, %v3025
    %v3027 = vrot.slane %v3013, %v3026
    %v3028 = vlaneseq
    %v3029 = vshrl.u32 %v3028, 7
    %v3030 = vsub.s32 0, %v3029
    %v3031 = vrot.slane %v2882, %v3030
    %v3032 = vlaneseq
    %v3033 = vshrl.u32 %v3032, 7
    %v3034 = vsub.s32 0, %v3033
    %v3035 = vrot.slane %v2889, %v3034
    %v3038 = vlaneseq
    %v3039 = vshrl.u32 %v3038, 7
    %v3040 = vsub.s32 0, %v3039
    %v3041 = vrot.slane %v2905, %v3040
    %v3042 = vlaneseq
    %v3043 = vshrl.u32 %v3042, 7
    %v3044 = vsub.s32 0, %v3043
    %v3045 = vrot.slane %v2912, %v3044
    %v3048 = vlaneseq
    %v3049 = vshrl.u32 %v3048, 7
    %v3050 = vsub.s32 0, %v3049
    %v3051 = vrot.slane %v2928, %v3050
    %v3052 = vlaneseq
    %v3053 = vshrl.u32 %v3052, 7
    %v3054 = vsub.s32 0, %v3053
    %v3055 = vrot.slane %v2935, %v3054
    %v3058 = vlaneseq
    %v3059 = vshrl.u32 %v3058, 7
    %v3060 = vsub.s32 0, %v3059
    %v3061 = vrot.slane %v2951, %v3060
    %v3062 = vlaneseq
    %v3063 = vshrl.u32 %v3062, 7
    %v3064 = vsub.s32 0, %v3063
    %v3065 = vrot.slane %v2958, %v3064
    %v3068 = vlaneseq
    %v3069 = vshrl.u32 %v3068, 7
    %v3070 = vsub.s32 0, %v3069
    %v3071 = vrot.slane %v2974, %v3070
    %v3072 = vlaneseq
    %v3073 = vshrl.u32 %v3072, 7
    %v3074 = vsub.s32 0, %v3073
    %v3075 = vrot.slane %v2981, %v3074
    %v3078 = vlaneseq
    %v3079 = vshrl.u32 %v3078, 7
    %v3080 = vsub.s32 0, %v3079
    %v3081 = vrot.slane %v2997, %v3080
    %v3082 = vlaneseq
    %v3083 = vshrl.u32 %v3082, 7
    %v3084 = vsub.s32 0, %v3083
    %v3085 = vrot.slane %v3004, %v3084
    %v3088 = vlaneseq
    %v3089 = vshrl.u32 %v3088, 7
    %v3090 = vsub.s32 0, %v3089
    %v3091 = vrot.slane %v3020, %v3090
    %v3092 = vlaneseq
    %v3093 = vshrl.u32 %v3092, 7
    %v3094 = vsub.s32 0, %v3093
    %v3095 = vrot.slane %v3027, %v3094
    %v3098 = vsel %vm167, %v2857, %v3031
    %v3099 = vsel %vm167, %v2864, %v3035
    %vm3100 = vcmask 1041408
    %v3101 = vsel %vm3100, %v3098, %v3041
    %v3102 = vsel %vm3100, %v3099, %v3045
    %vm3103 = vcmask 1042432
    %v3104 = vsel %vm3103, %v3101, %v3051
    %v3105 = vsel %vm3103, %v3102, %v3055
    %vm3106 = vcmask 1043456
    %v3107 = vsel %vm3106, %v3104, %v3061
    %v3108 = vsel %vm3106, %v3105, %v3065
    %vm3109 = vcmask 1044480
    %v3110 = vsel %vm3109, %v3107, %v3071
    %v3111 = vsel %vm3109, %v3108, %v3075
    %vm3112 = vcmask 1045504
    %v3113 = vsel %vm3112, %v3110, %v3081
    %v3114 = vsel %vm3112, %v3111, %v3085
    %vm3115 = vcmask 1046528
    %v3116 = vsel %vm3115, %v3113, %v3091
    %v3117 = vsel %vm3115, %v3114, %v3095
    %v3119 = vsel %vm496, %v3116, 0
    %3121 = vmatprep.subr.mxu0 0.0
    %3122 = vmatpush1.xpose.msra.mxu0 %v3119
    %3123 = vmatprep.subr.mxu0 0.0
    %3124 = vmatpush1.xpose.msra.mxu0 0.0
    %3125 = vmatprep.subr.mxu0 0.0
    %3126 = vmatpush1.xpose.msra.mxu0 0.0
    %3127 = vmatprep.subr.mxu0 0.0
    %3128 = vmatpush1.xpose.msra.mxu0 0.0
    %3129 = vmatprep.subr.mxu0 0.0
    %3130 = vmatpush1.xpose.msra.mxu0 0.0
    %3131 = vmatprep.subr.mxu0 0.0
    %3132 = vmatpush1.xpose.msra.mxu0 0.0
    %3133 = vmatprep.subr.mxu0 0.0
    %3134 = vmatpush1.xpose.msra.mxu0 0.0
    %3135 = vmatprep.subr.mxu0 0.0
    %3136 = vmatpush1.xpose.msra.mxu0 0.0
    %3137 = vmatprep.subr.mxu0 0.0
    %3138 = vmatpush1.xpose.msra.mxu0 0.0
    %3139 = vmatprep.subr.mxu0 0.0
    %3140 = vmatpush1.xpose.msra.mxu0 0.0
    %3141 = vmatprep.subr.mxu0 0.0
    %3142 = vmatpush1.xpose.msra.mxu0 0.0
    %3143 = vmatprep.subr.mxu0 0.0
    %3144 = vmatpush1.xpose.msra.mxu0 0.0
    %3145 = vmatprep.subr.mxu0 0.0
    %3146 = vmatpush1.xpose.msra.mxu0 0.0
    %3147 = vmatprep.subr.mxu0 0.0
    %3148 = vmatpush1.xpose.msra.mxu0 0.0
    %3149 = vmatprep.subr.mxu0 0.0
    %3150 = vmatpush1.xpose.msra.mxu0 0.0
    %3151 = vmatprep.subr.mxu0 0.0
    %3152 = vmatpush1.xpose.msra.mxu0 0.0
    %3153 = vmatprep.subr.mxu0 0.0
    %3154 = vmatpush1.xpose.msra.mxu0 0.0
    %3155 = vmatprep.subr.mxu0 0.0
    %3156 = vmatpush1.xpose.msra.mxu0 0.0
    %3157 = vmatprep.subr.mxu0 0.0
    %3158 = vmatpush1.xpose.msra.mxu0 0.0
    %3159 = vmatprep.subr.mxu0 0.0
    %3160 = vmatpush1.xpose.msra.mxu0 0.0
    %3161 = vmatprep.subr.mxu0 0.0
    %3162 = vmatpush1.xpose.msra.mxu0 0.0
    %3163 = vmatprep.subr.mxu0 0.0
    %3164 = vmatpush1.xpose.msra.mxu0 0.0
    %3165 = vmatprep.subr.mxu0 0.0
    %3166 = vmatpush1.xpose.msra.mxu0 0.0
    %3167 = vmatprep.subr.mxu0 0.0
    %3168 = vmatpush1.xpose.msra.mxu0 0.0
    %3169 = vmatprep.subr.mxu0 0.0
    %3170 = vmatpush1.xpose.msra.mxu0 0.0
    %3171 = vmatprep.subr.mxu0 0.0
    %3172 = vmatpush1.xpose.msra.mxu0 0.0
    %3173 = vmatprep.subr.mxu0 0.0
    %3174 = vmatpush1.xpose.msra.mxu0 0.0
    %3175 = vmatprep.subr.mxu0 0.0
    %3176 = vmatpush1.xpose.msra.mxu0 0.0
    %3177 = vmatprep.subr.mxu0 0.0
    %3178 = vmatpush1.xpose.msra.mxu0 0.0
    %3179 = vmatprep.subr.mxu0 0.0
    %3180 = vmatpush1.xpose.msra.mxu0 0.0
    %3181 = vmatprep.subr.mxu0 0.0
    %3182 = vmatpush1.xpose.msra.mxu0 0.0
    %3183 = vmatprep.subr.mxu0 0.0
    %3184 = vmatpush1.xpose.msra.mxu0 0.0
    %3185 = vmatprep.mubr.f32.mxu0 0.0
    %3186 = vmatmul.mubr.f32.gmra.mrb[0].mxu0 %v3119
    %v3187 = vpop.f32.mrb[0].mxu0
    %v3188 = vadd.f32 0.0, %v3187
    %v3189 = vpop.f32.mrb[0].mxu0
    %3190 = vdwg.mxu0
    %v3192 = vsel %vm496, %v3117, 0
    %3194 = vmatprep.subr.mxu0 0.0
    %3195 = vmatpush1.xpose.msra.mxu0 %v3192
    %3196 = vmatprep.subr.mxu0 0.0
    %3197 = vmatpush1.xpose.msra.mxu0 0.0
    %3198 = vmatprep.subr.mxu0 0.0
    %3199 = vmatpush1.xpose.msra.mxu0 0.0
    %3200 = vmatprep.subr.mxu0 0.0
    %3201 = vmatpush1.xpose.msra.mxu0 0.0
    %3202 = vmatprep.subr.mxu0 0.0
    %3203 = vmatpush1.xpose.msra.mxu0 0.0
    %3204 = vmatprep.subr.mxu0 0.0
    %3205 = vmatpush1.xpose.msra.mxu0 0.0
    %3206 = vmatprep.subr.mxu0 0.0
    %3207 = vmatpush1.xpose.msra.mxu0 0.0
    %3208 = vmatprep.subr.mxu0 0.0
    %3209 = vmatpush1.xpose.msra.mxu0 0.0
    %3210 = vmatprep.subr.mxu0 0.0
    %3211 = vmatpush1.xpose.msra.mxu0 0.0
    %3212 = vmatprep.subr.mxu0 0.0
    %3213 = vmatpush1.xpose.msra.mxu0 0.0
    %3214 = vmatprep.subr.mxu0 0.0
    %3215 = vmatpush1.xpose.msra.mxu0 0.0
    %3216 = vmatprep.subr.mxu0 0.0
    %3217 = vmatpush1.xpose.msra.mxu0 0.0
    %3218 = vmatprep.subr.mxu0 0.0
    %3219 = vmatpush1.xpose.msra.mxu0 0.0
    %3220 = vmatprep.subr.mxu0 0.0
    %3221 = vmatpush1.xpose.msra.mxu0 0.0
    %3222 = vmatprep.subr.mxu0 0.0
    %3223 = vmatpush1.xpose.msra.mxu0 0.0
    %3224 = vmatprep.subr.mxu0 0.0
    %3225 = vmatpush1.xpose.msra.mxu0 0.0
    %3226 = vmatprep.subr.mxu0 0.0
    %3227 = vmatpush1.xpose.msra.mxu0 0.0
    %3228 = vmatprep.subr.mxu0 0.0
    %3229 = vmatpush1.xpose.msra.mxu0 0.0
    %3230 = vmatprep.subr.mxu0 0.0
    %3231 = vmatpush1.xpose.msra.mxu0 0.0
    %3232 = vmatprep.subr.mxu0 0.0
    %3233 = vmatpush1.xpose.msra.mxu0 0.0
    %3234 = vmatprep.subr.mxu0 0.0
    %3235 = vmatpush1.xpose.msra.mxu0 0.0
    %3236 = vmatprep.subr.mxu0 0.0
    %3237 = vmatpush1.xpose.msra.mxu0 0.0
    %3238 = vmatprep.subr.mxu0 0.0
    %3239 = vmatpush1.xpose.msra.mxu0 0.0
    %3240 = vmatprep.subr.mxu0 0.0
    %3241 = vmatpush1.xpose.msra.mxu0 0.0
    %3242 = vmatprep.subr.mxu0 0.0
    %3243 = vmatpush1.xpose.msra.mxu0 0.0
    %3244 = vmatprep.subr.mxu0 0.0
    %3245 = vmatpush1.xpose.msra.mxu0 0.0
    %3246 = vmatprep.subr.mxu0 0.0
    %3247 = vmatpush1.xpose.msra.mxu0 0.0
    %3248 = vmatprep.subr.mxu0 0.0
    %3249 = vmatpush1.xpose.msra.mxu0 0.0
    %3250 = vmatprep.subr.mxu0 0.0
    %3251 = vmatpush1.xpose.msra.mxu0 0.0
    %3252 = vmatprep.subr.mxu0 0.0
    %3253 = vmatpush1.xpose.msra.mxu0 0.0
    %3254 = vmatprep.subr.mxu0 0.0
    %3255 = vmatpush1.xpose.msra.mxu0 0.0
    %3256 = vmatprep.subr.mxu0 0.0
    %3257 = vmatpush1.xpose.msra.mxu0 0.0
    %3258 = vmatprep.mubr.f32.mxu0 0.0
    %3259 = vmatmul.mubr.f32.gmra.mrb[0].mxu0 %v3192
    %v3260 = vpop.f32.mrb[0].mxu0
    %v3261 = vadd.f32 0.0, %v3260
    %v3262 = vpop.f32.mrb[0].mxu0
    %3263 = vdwg.mxu0
    %v3264 = vmul.f32 %v3188, 0.125
    %v3265 = vmul.f32 %v3261, 0.125
    %vm3266 = vcmask 64512
    %v3267 = vsel %vm3266, %v3264, -inf
    %3268 = vmax.xlane.f32.xlu0 %v3267
    %v3269 = vpop.xlane.xlu0 %3268
    %v3270 = vsel %vm3266, %v3265, -inf
    %3271 = vmax.xlane.f32.xlu0 %v3270
    %v3272 = vpop.xlane.xlu0 %3271
    %v3273 = vsub.f32 %v3264, %v3269
    %v3274 = vsub.f32 %v3265, %v3272
    %v3275 = vmul.f32 %v3273, 1.442695
    %v3276 = vpow.pop %v3275
    %v3277 = vmul.f32 %v3274, 1.442695
    %v3278 = vpow.pop %v3277
    %v3279 = vsel %vm3266, %v3276, 0.0
    %3280 = vadd.xlane.f32.xlu0 %v3279
    %v3281 = vpop.xlane.xlu0 %3280
    %v3282 = vsel %vm3266, %v3278, 0.0
    %3283 = vadd.xlane.f32.xlu0 %v3282
    %v3284 = vpop.xlane.xlu0 %3283
    %v3285 = vrcp.pop %v3281
    %v3286 = vmul.f32 %v3276, %v3285
    %v3287 = vrcp.pop %v3284
    %v3288 = vmul.f32 %v3278, %v3287
    %v3289 = vsel %vm3266, %v3286, 0.0
    %v3290 = vrot.slane %v3289, 4
    %v3291 = vadd.f32 %v3289, %v3290
    %v3292 = vrot.slane %v3291, 2
    %v3293 = vadd.f32 %v3291, %v3292
    %v3294 = vrot.slane %v3293, 1
    %v3295 = vadd.f32 %v3293, %v3294
    %v3296 = vsel %vm3266, %v3288, 0.0
    %v3297 = vrot.slane %v3296, 4
    %v3298 = vadd.f32 %v3296, %v3297
    %v3299 = vrot.slane %v3298, 2
    %v3300 = vadd.f32 %v3298, %v3299
    %v3301 = vrot.slane %v3300, 1
    %v3302 = vadd.f32 %v3300, %v3301
    %3304 = vbcast.lane.b32.xlu0 %v3295, 256
    %v3305 = vpop.permute.xlu0 %3304
    %3307 = vbcast.lane.b32.xlu0 %v3302, 256
    %v3308 = vpop.permute.xlu0 %3307
    %v3309 = vmul.f32 %v3305, %v3116
    %v3310 = vmul.f32 %v3308, %v3117
    %v3311 = vsel %vm496, %v3309, 0.0
    %v3312 = vrot.slane %v3311, 4
    %v3313 = vadd.f32 %v3311, %v3312
    %v3314 = vrot.slane %v3313, 2
    %v3315 = vadd.f32 %v3313, %v3314
    %v3316 = vrot.slane %v3315, 1
    %v3317 = vadd.f32 %v3315, %v3316
    %v3318 = vsel %vm496, %v3310, 0.0
    %v3319 = vrot.slane %v3318, 4
    %v3320 = vadd.f32 %v3318, %v3319
    %v3321 = vrot.slane %v3320, 2
    %v3322 = vadd.f32 %v3320, %v3321
    %v3323 = vrot.slane %v3322, 1
    %v3324 = vadd.f32 %v3322, %v3323
    %v3325 = vld [vmem:[#allocation12] sm:$0xff]
    %v3326 = vld [vmem:[#allocation12 + $0x8] sm:$0xff]
    %v3327 = vld [vmem:[#allocation12 + $0x10] sm:$0xff]
    %v3328 = vld [vmem:[#allocation12 + $0x18] sm:$0xff]
    %v3329 = vld [vmem:[#allocation12 + $0x20] sm:$0xff]
    %v3330 = vld [vmem:[#allocation12 + $0x28] sm:$0xff]
    %v3331 = vld [vmem:[#allocation12 + $0x30] sm:$0xff]
    %v3332 = vld [vmem:[#allocation12 + $0x38] sm:$0xff]
    %v3333 = vld [vmem:[%s7] sm:$0x1]
    %v3335 = vlaneseq
    %v3336 = vshrl.u32 %v3335, 7
    %v3337 = vsub.s32 0, %v3336
    %v3338 = vrot.slane %v3333, %v3337
    %vm3342 = vcmask 1041409
    %v3343 = vsel %vm3342, %v3324, %v3317
    %v3344 = vsel %vm496, %v3343, 0
    %3346 = vmatprep.subr.mxu0 0.0
    %3347 = vmatpush1.msra.mxu0 %v3325
    %3348 = vmatprep.subr.mxu0 0.0
    %3349 = vmatpush1.msra.mxu0 %v3326
    %3350 = vmatprep.subr.mxu0 0.0
    %3351 = vmatpush1.msra.mxu0 %v3327
    %3352 = vmatprep.subr.mxu0 0.0
    %3353 = vmatpush1.msra.mxu0 %v3328
    %3354 = vmatprep.subr.mxu0 0.0
    %3355 = vmatpush1.msra.mxu0 %v3329
    %3356 = vmatprep.subr.mxu0 0.0
    %3357 = vmatpush1.msra.mxu0 %v3330
    %3358 = vmatprep.subr.mxu0 0.0
    %3359 = vmatpush1.msra.mxu0 %v3331
    %3360 = vmatprep.subr.mxu0 0.0
    %3361 = vmatpush1.msra.mxu0 %v3332
    %3362 = vmatprep.subr.mxu0 0.0
    %3363 = vmatpush1.msra.mxu0 0.0
    %3364 = vmatprep.subr.mxu0 0.0
    %3365 = vmatpush1.msra.mxu0 0.0
    %3366 = vmatprep.subr.mxu0 0.0
    %3367 = vmatpush1.msra.mxu0 0.0
    %3368 = vmatprep.subr.mxu0 0.0
    %3369 = vmatpush1.msra.mxu0 0.0
    %3370 = vmatprep.subr.mxu0 0.0
    %3371 = vmatpush1.msra.mxu0 0.0
    %3372 = vmatprep.subr.mxu0 0.0
    %3373 = vmatpush1.msra.mxu0 0.0
    %3374 = vmatprep.subr.mxu0 0.0
    %3375 = vmatpush1.msra.mxu0 0.0
    %3376 = vmatprep.subr.mxu0 0.0
    %3377 = vmatpush1.msra.mxu0 0.0
    %3378 = vmatprep.subr.mxu0 0.0
    %3379 = vmatpush1.msra.mxu0 0.0
    %3380 = vmatprep.subr.mxu0 0.0
    %3381 = vmatpush1.msra.mxu0 0.0
    %3382 = vmatprep.subr.mxu0 0.0
    %3383 = vmatpush1.msra.mxu0 0.0
    %3384 = vmatprep.subr.mxu0 0.0
    %3385 = vmatpush1.msra.mxu0 0.0
    %3386 = vmatprep.subr.mxu0 0.0
    %3387 = vmatpush1.msra.mxu0 0.0
    %3388 = vmatprep.subr.mxu0 0.0
    %3389 = vmatpush1.msra.mxu0 0.0
    %3390 = vmatprep.subr.mxu0 0.0
    %3391 = vmatpush1.msra.mxu0 0.0
    %3392 = vmatprep.subr.mxu0 0.0
    %3393 = vmatpush1.msra.mxu0 0.0
    %3394 = vmatprep.subr.mxu0 0.0
    %3395 = vmatpush1.msra.mxu0 0.0
    %3396 = vmatprep.subr.mxu0 0.0
    %3397 = vmatpush1.msra.mxu0 0.0
    %3398 = vmatprep.subr.mxu0 0.0
    %3399 = vmatpush1.msra.mxu0 0.0
    %3400 = vmatprep.subr.mxu0 0.0
    %3401 = vmatpush1.msra.mxu0 0.0
    %3402 = vmatprep.subr.mxu0 0.0
    %3403 = vmatpush1.msra.mxu0 0.0
    %3404 = vmatprep.subr.mxu0 0.0
    %3405 = vmatpush1.msra.mxu0 0.0
    %3406 = vmatprep.subr.mxu0 0.0
    %3407 = vmatpush1.msra.mxu0 0.0
    %3408 = vmatprep.subr.mxu0 0.0
    %3409 = vmatpush1.msra.mxu0 0.0
    %3410 = vmatprep.mubr.f32.mxu0 0.0
    %3411 = vmatmul.mubr.f32.gmra.mrb[0].mxu0 %v3344
    %v3412 = vpop.f32.mrb[0].mxu0
    %v3413 = vadd.f32 %v3338, %v3412
    %v3414 = vpop.f32.mrb[0].mxu0
    %3415 = vdwg.mxu0
    %3416 = vst [vmem:[#allocation13] sm:$0x3] %v3413
    // Predicated region
    $region58: #{bilstm_attention_forward.1} parent=1 // pred_check
      _
    $region59: #{bilstm_attention_forward.1} parent=1 // pred_check_branch
      %3418 = sbr.rel (0) target = $region61
    $region60: #{bilstm_attention_forward.1} parent=1 // pred_region
      %s3420 = ssub.s32 32, 32
      %3421 = vsyncadd [#allocation4], %s3420
      %s3423 = sshll.u32 [#allocation13], 4
      %s3424 = int_to_ptr.vmem [resolvable:$true] %s3423
      %3426 = dma.vmem_to_hbm [thread:$0]  %s3424, 32, %s8, [#allocation4]
    $region61: #{bilstm_attention_forward.1} parent=1 // pred_fallthru
      _
    // Predicated region
    $region62: #{bilstm_attention_forward.1} parent=1 // pred_check
      _
    $region63: #{bilstm_attention_forward.1} parent=1 // pred_check_branch
      %3428 = sbr.rel (0) target = $region65
    $region64: #{bilstm_attention_forward.1} parent=1 // pred_region
      %3429 = dma.done [#allocation4], 32
    $region65: #{bilstm_attention_forward.1} parent=1 // pred_fallthru
      _
    %3430 = vsyncpa [#allocation3], 1
    %3431 = vsyncpa [#allocation8], 1
    %3432 = vsyncpa [#allocation11], 1
    %3433 = vsyncpa [#allocation4], 1
    %3434 = vsyncpa [#allocation5], 1

</llo_original>
